<compile_context>
chip_gen: v7x
topology: tpu7x:2x2x1
jax: 0.10.0
libtpu: 0.0.40
codegen_flags: <defaults>
</compile_context>

<pallas_src>
import math

import jax
import jax.numpy as jnp
from jax import lax
from jax.experimental import pallas as pl
from jax.experimental.pallas import tpu as pltpu


# ----------------------------------------------------------------------------
# Kernel
# ----------------------------------------------------------------------------
def basic_block_kernel(x_ref, w1_ref, b1_ref, w2_ref, b2_ref,
                       out_ref, x1cat_ref, h1cat_ref, acc_ref):
    # x_ref    : (1, H, W, C)   f32   one image (NHWC)
    # w1_ref   : (3, 3*C, C)    bf16  conv1 weights, bn1 scale folded, kw packed
    # b1_ref   : (1, C)         f32   bn1 bias
    # w2_ref   : (3, 3*C, C)    bf16  conv2 weights, bn2 scale folded, kw packed
    # b2_ref   : (1, C)         f32   bn2 bias
    # out_ref  : (1, H, W, C)   f32
    # x1cat_ref: (H+2, W, 3*C)  bf16  H-padded, kw-packed conv1 input (scratch)
    # h1cat_ref: (H+2, W, 3*C)  bf16  H-padded, kw-packed conv2 input (scratch)
    # acc_ref  : (H*W, C)       f32   MXU accumulator, shared by both convs
    _, H, W, Cin = x_ref.shape
    C = out_ref.shape[3]

    def shifted_cat(a):
        """(H, W, C) f32 -> (H, W, 3C) bf16 with the kw taps packed on channels.

        Packed order along channels is [x[:, w-1], x[:, w], x[:, w+1]] which
        matches the (kw, Cin) flattening of the HWIO weights.
        """
        Hn, Wn, Cn = a.shape
        zcol = jnp.zeros((Hn, 1, Cn), a.dtype)
        am1 = jnp.concatenate([zcol, a[:, :Wn - 1, :]], axis=1)   # x[:, w-1]
        ap1 = jnp.concatenate([a[:, 1:, :], zcol], axis=1)        # x[:, w+1]
        return jnp.concatenate([am1, a, ap1], axis=-1).astype(x1cat_ref.dtype)

    def conv3x3(src_ref, w_ref):
        """3 bf16 MXU matmuls (one per kh row), f32-accumulated into acc_ref."""
        K = src_ref.shape[-1]
        for kh in range(3):
            # Leading-axis (H) slice only -> layout-aligned read.
            patch = src_ref[kh:kh + H].reshape(H * W, K)
            part = jnp.dot(patch, w_ref[kh],
                           preferred_element_type=jnp.float32)
            if kh == 0:
                acc_ref[...] = part
            else:
                acc_ref[...] += part

    # ---- conv1 input: zero H-borders in scratch, pack kw taps ----
    x1cat_ref[0] = jnp.zeros((W, 3 * Cin), x1cat_ref.dtype)
    x1cat_ref[H + 1] = jnp.zeros((W, 3 * Cin), x1cat_ref.dtype)
    x1cat_ref[1:H + 1] = shifted_cat(x_ref[0])

    # ---- conv1 (bn1 scale folded into w1) + bias + relu ----
    conv3x3(x1cat_ref, w1_ref)
    h1 = jnp.maximum(acc_ref[...] + b1_ref[...], 0.0)          # (H*W, C) f32

    # ---- conv2 input ----
    h1cat_ref[0] = jnp.zeros((W, 3 * C), h1cat_ref.dtype)
    h1cat_ref[H + 1] = jnp.zeros((W, 3 * C), h1cat_ref.dtype)
    h1cat_ref[1:H + 1] = shifted_cat(h1.reshape(H, W, C))

    # ---- conv2 (bn2 scale folded into w2) + bias + residual + relu ----
    conv3x3(h1cat_ref, w2_ref)
    residual = x_ref[0].reshape(H * W, Cin)                    # identity path (f32)
    out = jnp.maximum(acc_ref[...] + b2_ref[...] + residual, 0.0)
    out_ref[0] = out.reshape(H, W, C).astype(out_ref.dtype)


# ----------------------------------------------------------------------------
# Wrapper
# ----------------------------------------------------------------------------
def fold_bn(gamma, beta, mean, var, eps=1e-5):
    scale = gamma / jnp.sqrt(var + eps)
    bias = beta - mean * scale
    return scale, bias


def basic_block_forward(x_nchw, params):
    """x_nchw: (N, C, H, W) float32.  Returns (N, C, H, W) float32."""
    x = jnp.transpose(x_nchw, (0, 2, 3, 1))                    # -> NHWC
    N, H, W, Cin = x.shape

    # PyTorch conv weights (O, I, kH, kW) -> HWIO
    w1 = jnp.transpose(params["conv1_w"], (2, 3, 1, 0))
    w2 = jnp.transpose(params["conv2_w"], (2, 3, 1, 0))
    C = w1.shape[-1]
    assert Cin == C, "identity residual requires inplanes == planes"

    s1, b1 = fold_bn(params["bn1_g"], params["bn1_b"],
                     params["bn1_m"], params["bn1_v"])
    s2, b2 = fold_bn(params["bn2_g"], params["bn2_b"],
                     params["bn2_m"], params["bn2_v"])

    # Fold BN scale into the conv output channels, pack kw into the contraction
    # dim ((kh, kw, i, o) -> (kh, kw*Cin+i, o)), hand the MXU bf16 operands.
    w1p = (w1 * s1).reshape(3, 3 * Cin, C).astype(jnp.bfloat16)
    w2p = (w2 * s2).reshape(3, 3 * C, C).astype(jnp.bfloat16)
    b1 = b1.reshape(1, C).astype(jnp.float32)
    b2 = b2.reshape(1, C).astype(jnp.float32)

    out_nhwc = pl.pallas_call(
        basic_block_kernel,
        out_shape=jax.ShapeDtypeStruct((N, H, W, C), x.dtype),
        grid_spec=pltpu.PrefetchScalarGridSpec(
            num_scalar_prefetch=0,
            grid=(N,),
            in_specs=[
                pl.BlockSpec((1, H, W, Cin), lambda n: (n, 0, 0, 0)),
                pl.BlockSpec((3, 3 * Cin, C), lambda n: (0, 0, 0)),
                pl.BlockSpec((1, C), lambda n: (0, 0)),
                pl.BlockSpec((3, 3 * C, C), lambda n: (0, 0, 0)),
                pl.BlockSpec((1, C), lambda n: (0, 0)),
            ],
            out_specs=pl.BlockSpec((1, H, W, C), lambda n: (n, 0, 0, 0)),
            scratch_shapes=[
                pltpu.VMEM((H + 2, W, 3 * Cin), jnp.bfloat16),  # conv1 input
                pltpu.VMEM((H + 2, W, 3 * C), jnp.bfloat16),    # conv2 input
                pltpu.VMEM((H * W, C), jnp.float32),            # accumulator
            ],
        ),
        compiler_params=pltpu.CompilerParams(
            dimension_semantics=("parallel",),
            vmem_limit_bytes=48 * 1024 * 1024,
        ),
    )(x, w1p, b1, w2p, b2)

    return jnp.transpose(out_nhwc, (0, 3, 1, 2))               # -> NCHW


# ----------------------------------------------------------------------------
# Pure-JAX reference (same bf16-operand / f32-accumulation numerics)
# ----------------------------------------------------------------------------
def reference_forward(x_nchw, params):
    x = jnp.transpose(x_nchw, (0, 2, 3, 1))
    dn = ("NHWC", "HWIO", "NHWC")
    w1 = jnp.transpose(params["conv1_w"], (2, 3, 1, 0))
    w2 = jnp.transpose(params["conv2_w"], (2, 3, 1, 0))
    s1, b1 = fold_bn(params["bn1_g"], params["bn1_b"],
                     params["bn1_m"], params["bn1_v"])
    s2, b2 = fold_bn(params["bn2_g"], params["bn2_b"],
                     params["bn2_m"], params["bn2_v"])
    w1f = (w1 * s1).astype(jnp.bfloat16)
    w2f = (w2 * s2).astype(jnp.bfloat16)
    h = lax.conv_general_dilated(x.astype(jnp.bfloat16), w1f, (1, 1), "SAME",
                                 dimension_numbers=dn,
                                 preferred_element_type=jnp.float32)
    h = jnp.maximum(h + b1, 0.0)
    h = lax.conv_general_dilated(h.astype(jnp.bfloat16), w2f, (1, 1), "SAME",
                                 dimension_numbers=dn,
                                 preferred_element_type=jnp.float32)
    out = jnp.maximum(h + b2 + x, 0.0)
    return jnp.transpose(out, (0, 3, 1, 2))


if __name__ == "__main__":
    key = jax.random.PRNGKey(0)
    # inplanes == planes, stride=1 (module defaults); C=128 keeps the output
    # lane dim dense (multiple of 128).
    N, C, H, W = 2, 128, 16, 16
    ks = jax.random.split(key, 9)

    fan = C * 3 * 3
    params = {
        "conv1_w": jax.random.normal(ks[0], (C, C, 3, 3), jnp.float32)
                   * math.sqrt(2.0 / fan),
        "conv2_w": jax.random.normal(ks[1], (C, C, 3, 3), jnp.float32)
                   * math.sqrt(2.0 / fan),
        "bn1_g": 1.0 + 0.1 * jax.random.normal(ks[2], (C,), jnp.float32),
        "bn1_b": 0.1 * jax.random.normal(ks[3], (C,), jnp.float32),
        "bn1_m": 0.05 * jax.random.normal(ks[4], (C,), jnp.float32),
        "bn1_v": jnp.abs(1.0 + 0.1 * jax.random.normal(ks[5], (C,), jnp.float32)),
        "bn2_g": 1.0 + 0.1 * jax.random.normal(ks[6], (C,), jnp.float32),
        "bn2_b": 0.1 * jax.random.normal(ks[7], (C,), jnp.float32),
        "bn2_m": jnp.zeros((C,), jnp.float32),
        "bn2_v": jnp.ones((C,), jnp.float32),
    }
    x = jax.random.normal(ks[8], (N, C, H, W), jnp.float32)

    out = jax.block_until_ready(basic_block_forward(x, params))
    ref = jax.block_until_ready(reference_forward(x, params))

    assert out.shape == (N, C, H, W)
    max_diff = float(jnp.max(jnp.abs(out - ref)))
    assert jnp.allclose(out, ref, atol=2e-2, rtol=2e-2), \
        f"max abs diff {max_diff}"
    print("KERNEL_OK")
</pallas_src>

<mosaic_0001>
module attributes {stable_mosaic.version = 11 : i64} {
  func.func @basic_block_kernel(%arg0: i32, %arg1: memref<1x16x16x128xf32, #tpu.memory_space<vmem>>, %arg2: memref<3x384x128xbf16, #tpu.memory_space<vmem>>, %arg3: memref<1x128xf32, #tpu.memory_space<vmem>>, %arg4: memref<3x384x128xbf16, #tpu.memory_space<vmem>>, %arg5: memref<1x128xf32, #tpu.memory_space<vmem>>, %arg6: memref<1x16x16x128xf32, #tpu.memory_space<vmem>>, %arg7: memref<18x16x384xbf16, #tpu.memory_space<vmem>>, %arg8: memref<18x16x384xbf16, #tpu.memory_space<vmem>>, %arg9: memref<256x128xf32, #tpu.memory_space<vmem>>) attributes {dimension_semantics = [#tpu.dimension_semantics<parallel>], iteration_bounds = array<i64: 2>, scalar_prefetch = 0 : i64, scratch_operands = 3 : i64, tpu.core_type = #tpu.core_type<tc>, window_params = [{transform_indices = @transform_0, window_bounds = array<i64: 1, 16, 16, 128>}, {pipeline_mode = #tpu.pipeline_mode<synchronous>, transform_indices = @transform_1, window_bounds = array<i64: 3, 384, 128>}, {pipeline_mode = #tpu.pipeline_mode<synchronous>, transform_indices = @transform_2, window_bounds = array<i64: 1, 128>}, {pipeline_mode = #tpu.pipeline_mode<synchronous>, transform_indices = @transform_3, window_bounds = array<i64: 3, 384, 128>}, {pipeline_mode = #tpu.pipeline_mode<synchronous>, transform_indices = @transform_4, window_bounds = array<i64: 1, 128>}, {transform_indices = @transform_5, window_bounds = array<i64: 1, 16, 16, 128>}]} {
    %cst = arith.constant 0.000000e+00 : bf16
    %0 = vector.broadcast %cst : bf16 to vector<16x384xbf16>
    %c0 = arith.constant 0 : index
    %c0_0 = arith.constant 0 : index
    %c0_1 = arith.constant 0 : index
    %1 = vector.load %arg7[%c0, %c0_0, %c0_1] : memref<18x16x384xbf16, #tpu.memory_space<vmem>>, vector<1x16x384xbf16>
    %2 = vector.shape_cast %1 : vector<1x16x384xbf16> to vector<16x384xbf16>
    %3 = vector.shape_cast %0 : vector<16x384xbf16> to vector<1x16x384xbf16>
    tpu.vector_store %arg7[%c0, %c0_0, %c0_1], %3 {strides = array<i32>} : memref<18x16x384xbf16, #tpu.memory_space<vmem>>, vector<1x16x384xbf16>,
    %cst_2 = arith.constant 0.000000e+00 : bf16
    %4 = vector.broadcast %cst_2 : bf16 to vector<16x384xbf16>
    %c17 = arith.constant 17 : index
    %c0_3 = arith.constant 0 : index
    %c0_4 = arith.constant 0 : index
    %5 = vector.load %arg7[%c17, %c0_3, %c0_4] : memref<18x16x384xbf16, #tpu.memory_space<vmem>>, vector<1x16x384xbf16>
    %6 = vector.shape_cast %5 : vector<1x16x384xbf16> to vector<16x384xbf16>
    %7 = vector.shape_cast %4 : vector<16x384xbf16> to vector<1x16x384xbf16>
    tpu.vector_store %arg7[%c17, %c0_3, %c0_4], %7 {strides = array<i32>} : memref<18x16x384xbf16, #tpu.memory_space<vmem>>, vector<1x16x384xbf16>,
    %c0_5 = arith.constant 0 : index
    %c0_6 = arith.constant 0 : index
    %c0_7 = arith.constant 0 : index
    %c0_8 = arith.constant 0 : index
    %8 = vector.load %arg1[%c0_5, %c0_6, %c0_7, %c0_8] : memref<1x16x16x128xf32, #tpu.memory_space<vmem>>, vector<1x16x16x128xf32>
    %9 = vector.shape_cast %8 : vector<1x16x16x128xf32> to vector<16x16x128xf32>
    %cst_9 = arith.constant 0.000000e+00 : f32
    %10 = vector.broadcast %cst_9 : f32 to vector<16x1x128xf32>
    %11 = vector.extract_strided_slice %9 {offsets = [0, 0, 0], sizes = [16, 15, 128], strides = [1, 1, 1]} : vector<16x16x128xf32> to vector<16x15x128xf32>
    %12 = tpu.concatenate %10, %11 in 1 : vector<16x1x128xf32>, vector<16x15x128xf32> -> vector<16x16x128xf32>
    %13 = vector.extract_strided_slice %9 {offsets = [0, 1, 0], sizes = [16, 15, 128], strides = [1, 1, 1]} : vector<16x16x128xf32> to vector<16x15x128xf32>
    %14 = tpu.concatenate %13, %10 in 1 : vector<16x15x128xf32>, vector<16x1x128xf32> -> vector<16x16x128xf32>
    %15 = tpu.concatenate %12, %9, %14 in 2 : vector<16x16x128xf32>, vector<16x16x128xf32>, vector<16x16x128xf32> -> vector<16x16x384xf32>
    %16 = arith.truncf %15 : vector<16x16x384xf32> to vector<16x16x384xbf16>
    %c1 = arith.constant 1 : index
    %c0_10 = arith.constant 0 : index
    %c0_11 = arith.constant 0 : index
    %17 = vector.load %arg7[%c1, %c0_10, %c0_11] : memref<18x16x384xbf16, #tpu.memory_space<vmem>>, vector<16x16x384xbf16>
    tpu.vector_store %arg7[%c1, %c0_10, %c0_11], %16 {strides = array<i32>} : memref<18x16x384xbf16, #tpu.memory_space<vmem>>, vector<16x16x384xbf16>,
    %c0_12 = arith.constant 0 : index
    %c0_13 = arith.constant 0 : index
    %c0_14 = arith.constant 0 : index
    %18 = vector.load %arg7[%c0_12, %c0_13, %c0_14] : memref<18x16x384xbf16, #tpu.memory_space<vmem>>, vector<16x16x384xbf16>
    %19 = vector.shape_cast %18 : vector<16x16x384xbf16> to vector<256x384xbf16>
    %c0_15 = arith.constant 0 : index
    %c0_16 = arith.constant 0 : index
    %c0_17 = arith.constant 0 : index
    %20 = vector.load %arg2[%c0_15, %c0_16, %c0_17] : memref<3x384x128xbf16, #tpu.memory_space<vmem>>, vector<1x384x128xbf16>
    %21 = vector.shape_cast %20 : vector<1x384x128xbf16> to vector<384x128xbf16>
    %cst_18 = arith.constant dense<0.000000e+00> : vector<256x128xf32>
    %22 = tpu.matmul %19, %21, %cst_18 {dimension_numbers = #tpu.dot_dimension_numbers<[1], [0], [0], [1], [0, 0, 1, 1], [], []>} : vector<256x384xbf16>, vector<384x128xbf16>, vector<256x128xf32> -> vector<256x128xf32>
    %c0_19 = arith.constant 0 : index
    %c0_20 = arith.constant 0 : index
    %23 = vector.load %arg9[%c0_19, %c0_20] : memref<256x128xf32, #tpu.memory_space<vmem>>, vector<256x128xf32>
    tpu.vector_store %arg9[%c0_19, %c0_20], %22 {strides = array<i32>} : memref<256x128xf32, #tpu.memory_space<vmem>>, vector<256x128xf32>,
    %c1_21 = arith.constant 1 : index
    %c0_22 = arith.constant 0 : index
    %c0_23 = arith.constant 0 : index
    %24 = vector.load %arg7[%c1_21, %c0_22, %c0_23] : memref<18x16x384xbf16, #tpu.memory_space<vmem>>, vector<16x16x384xbf16>
    %25 = vector.shape_cast %24 : vector<16x16x384xbf16> to vector<256x384xbf16>
    %c1_24 = arith.constant 1 : index
    %c0_25 = arith.constant 0 : index
    %c0_26 = arith.constant 0 : index
    %26 = vector.load %arg2[%c1_24, %c0_25, %c0_26] : memref<3x384x128xbf16, #tpu.memory_space<vmem>>, vector<1x384x128xbf16>
    %27 = vector.shape_cast %26 : vector<1x384x128xbf16> to vector<384x128xbf16>
    %cst_27 = arith.constant dense<0.000000e+00> : vector<256x128xf32>
    %28 = tpu.matmul %25, %27, %cst_27 {dimension_numbers = #tpu.dot_dimension_numbers<[1], [0], [0], [1], [0, 0, 1, 1], [], []>} : vector<256x384xbf16>, vector<384x128xbf16>, vector<256x128xf32> -> vector<256x128xf32>
    %c0_28 = arith.constant 0 : index
    %c0_29 = arith.constant 0 : index
    %29 = vector.load %arg9[%c0_28, %c0_29] : memref<256x128xf32, #tpu.memory_space<vmem>>, vector<256x128xf32>
    %30 = arith.addf %29, %28 : vector<256x128xf32>
    %c0_30 = arith.constant 0 : index
    %c0_31 = arith.constant 0 : index
    %31 = vector.load %arg9[%c0_30, %c0_31] : memref<256x128xf32, #tpu.memory_space<vmem>>, vector<256x128xf32>
    tpu.vector_store %arg9[%c0_30, %c0_31], %30 {strides = array<i32>} : memref<256x128xf32, #tpu.memory_space<vmem>>, vector<256x128xf32>,
    %c2 = arith.constant 2 : index
    %c0_32 = arith.constant 0 : index
    %c0_33 = arith.constant 0 : index
    %32 = vector.load %arg7[%c2, %c0_32, %c0_33] : memref<18x16x384xbf16, #tpu.memory_space<vmem>>, vector<16x16x384xbf16>
    %33 = vector.shape_cast %32 : vector<16x16x384xbf16> to vector<256x384xbf16>
    %c2_34 = arith.constant 2 : index
    %c0_35 = arith.constant 0 : index
    %c0_36 = arith.constant 0 : index
    %34 = vector.load %arg2[%c2_34, %c0_35, %c0_36] : memref<3x384x128xbf16, #tpu.memory_space<vmem>>, vector<1x384x128xbf16>
    %35 = vector.shape_cast %34 : vector<1x384x128xbf16> to vector<384x128xbf16>
    %cst_37 = arith.constant dense<0.000000e+00> : vector<256x128xf32>
    %36 = tpu.matmul %33, %35, %cst_37 {dimension_numbers = #tpu.dot_dimension_numbers<[1], [0], [0], [1], [0, 0, 1, 1], [], []>} : vector<256x384xbf16>, vector<384x128xbf16>, vector<256x128xf32> -> vector<256x128xf32>
    %c0_38 = arith.constant 0 : index
    %c0_39 = arith.constant 0 : index
    %37 = vector.load %arg9[%c0_38, %c0_39] : memref<256x128xf32, #tpu.memory_space<vmem>>, vector<256x128xf32>
    %38 = arith.addf %37, %36 : vector<256x128xf32>
    %c0_40 = arith.constant 0 : index
    %c0_41 = arith.constant 0 : index
    %39 = vector.load %arg9[%c0_40, %c0_41] : memref<256x128xf32, #tpu.memory_space<vmem>>, vector<256x128xf32>
    tpu.vector_store %arg9[%c0_40, %c0_41], %38 {strides = array<i32>} : memref<256x128xf32, #tpu.memory_space<vmem>>, vector<256x128xf32>,
    %c0_42 = arith.constant 0 : index
    %c0_43 = arith.constant 0 : index
    %40 = vector.load %arg9[%c0_42, %c0_43] : memref<256x128xf32, #tpu.memory_space<vmem>>, vector<256x128xf32>
    %c0_44 = arith.constant 0 : index
    %c0_45 = arith.constant 0 : index
    %41 = vector.load %arg3[%c0_44, %c0_45] : memref<1x128xf32, #tpu.memory_space<vmem>>, vector<1x128xf32>
    %42 = vector.broadcast %41 : vector<1x128xf32> to vector<256x128xf32>
    %43 = arith.addf %40, %42 : vector<256x128xf32>
    %cst_46 = arith.constant 0.000000e+00 : f32
    %44 = vector.broadcast %cst_46 : f32 to vector<256x128xf32>
    %45 = arith.maximumf %43, %44 : vector<256x128xf32>
    %cst_47 = arith.constant 0.000000e+00 : bf16
    %46 = vector.broadcast %cst_47 : bf16 to vector<16x384xbf16>
    %c0_48 = arith.constant 0 : index
    %c0_49 = arith.constant 0 : index
    %c0_50 = arith.constant 0 : index
    %47 = vector.load %arg8[%c0_48, %c0_49, %c0_50] : memref<18x16x384xbf16, #tpu.memory_space<vmem>>, vector<1x16x384xbf16>
    %48 = vector.shape_cast %47 : vector<1x16x384xbf16> to vector<16x384xbf16>
    %49 = vector.shape_cast %46 : vector<16x384xbf16> to vector<1x16x384xbf16>
    tpu.vector_store %arg8[%c0_48, %c0_49, %c0_50], %49 {strides = array<i32>} : memref<18x16x384xbf16, #tpu.memory_space<vmem>>, vector<1x16x384xbf16>,
    %cst_51 = arith.constant 0.000000e+00 : bf16
    %50 = vector.broadcast %cst_51 : bf16 to vector<16x384xbf16>
    %c17_52 = arith.constant 17 : index
    %c0_53 = arith.constant 0 : index
    %c0_54 = arith.constant 0 : index
    %51 = vector.load %arg8[%c17_52, %c0_53, %c0_54] : memref<18x16x384xbf16, #tpu.memory_space<vmem>>, vector<1x16x384xbf16>
    %52 = vector.shape_cast %51 : vector<1x16x384xbf16> to vector<16x384xbf16>
    %53 = vector.shape_cast %50 : vector<16x384xbf16> to vector<1x16x384xbf16>
    tpu.vector_store %arg8[%c17_52, %c0_53, %c0_54], %53 {strides = array<i32>} : memref<18x16x384xbf16, #tpu.memory_space<vmem>>, vector<1x16x384xbf16>,
    %54 = vector.shape_cast %45 : vector<256x128xf32> to vector<16x16x128xf32>
    %cst_55 = arith.constant 0.000000e+00 : f32
    %55 = vector.broadcast %cst_55 : f32 to vector<16x1x128xf32>
    %56 = vector.extract_strided_slice %54 {offsets = [0, 0, 0], sizes = [16, 15, 128], strides = [1, 1, 1]} : vector<16x16x128xf32> to vector<16x15x128xf32>
    %57 = tpu.concatenate %55, %56 in 1 : vector<16x1x128xf32>, vector<16x15x128xf32> -> vector<16x16x128xf32>
    %58 = vector.extract_strided_slice %54 {offsets = [0, 1, 0], sizes = [16, 15, 128], strides = [1, 1, 1]} : vector<16x16x128xf32> to vector<16x15x128xf32>
    %59 = tpu.concatenate %58, %55 in 1 : vector<16x15x128xf32>, vector<16x1x128xf32> -> vector<16x16x128xf32>
    %60 = tpu.concatenate %57, %54, %59 in 2 : vector<16x16x128xf32>, vector<16x16x128xf32>, vector<16x16x128xf32> -> vector<16x16x384xf32>
    %61 = arith.truncf %60 : vector<16x16x384xf32> to vector<16x16x384xbf16>
    %c1_56 = arith.constant 1 : index
    %c0_57 = arith.constant 0 : index
    %c0_58 = arith.constant 0 : index
    %62 = vector.load %arg8[%c1_56, %c0_57, %c0_58] : memref<18x16x384xbf16, #tpu.memory_space<vmem>>, vector<16x16x384xbf16>
    tpu.vector_store %arg8[%c1_56, %c0_57, %c0_58], %61 {strides = array<i32>} : memref<18x16x384xbf16, #tpu.memory_space<vmem>>, vector<16x16x384xbf16>,
    %c0_59 = arith.constant 0 : index
    %c0_60 = arith.constant 0 : index
    %c0_61 = arith.constant 0 : index
    %63 = vector.load %arg8[%c0_59, %c0_60, %c0_61] : memref<18x16x384xbf16, #tpu.memory_space<vmem>>, vector<16x16x384xbf16>
    %64 = vector.shape_cast %63 : vector<16x16x384xbf16> to vector<256x384xbf16>
    %c0_62 = arith.constant 0 : index
    %c0_63 = arith.constant 0 : index
    %c0_64 = arith.constant 0 : index
    %65 = vector.load %arg4[%c0_62, %c0_63, %c0_64] : memref<3x384x128xbf16, #tpu.memory_space<vmem>>, vector<1x384x128xbf16>
    %66 = vector.shape_cast %65 : vector<1x384x128xbf16> to vector<384x128xbf16>
    %cst_65 = arith.constant dense<0.000000e+00> : vector<256x128xf32>
    %67 = tpu.matmul %64, %66, %cst_65 {dimension_numbers = #tpu.dot_dimension_numbers<[1], [0], [0], [1], [0, 0, 1, 1], [], []>} : vector<256x384xbf16>, vector<384x128xbf16>, vector<256x128xf32> -> vector<256x128xf32>
    %c0_66 = arith.constant 0 : index
    %c0_67 = arith.constant 0 : index
    %68 = vector.load %arg9[%c0_66, %c0_67] : memref<256x128xf32, #tpu.memory_space<vmem>>, vector<256x128xf32>
    tpu.vector_store %arg9[%c0_66, %c0_67], %67 {strides = array<i32>} : memref<256x128xf32, #tpu.memory_space<vmem>>, vector<256x128xf32>,
    %c1_68 = arith.constant 1 : index
    %c0_69 = arith.constant 0 : index
    %c0_70 = arith.constant 0 : index
    %69 = vector.load %arg8[%c1_68, %c0_69, %c0_70] : memref<18x16x384xbf16, #tpu.memory_space<vmem>>, vector<16x16x384xbf16>
    %70 = vector.shape_cast %69 : vector<16x16x384xbf16> to vector<256x384xbf16>
    %c1_71 = arith.constant 1 : index
    %c0_72 = arith.constant 0 : index
    %c0_73 = arith.constant 0 : index
    %71 = vector.load %arg4[%c1_71, %c0_72, %c0_73] : memref<3x384x128xbf16, #tpu.memory_space<vmem>>, vector<1x384x128xbf16>
    %72 = vector.shape_cast %71 : vector<1x384x128xbf16> to vector<384x128xbf16>
    %cst_74 = arith.constant dense<0.000000e+00> : vector<256x128xf32>
    %73 = tpu.matmul %70, %72, %cst_74 {dimension_numbers = #tpu.dot_dimension_numbers<[1], [0], [0], [1], [0, 0, 1, 1], [], []>} : vector<256x384xbf16>, vector<384x128xbf16>, vector<256x128xf32> -> vector<256x128xf32>
    %c0_75 = arith.constant 0 : index
    %c0_76 = arith.constant 0 : index
    %74 = vector.load %arg9[%c0_75, %c0_76] : memref<256x128xf32, #tpu.memory_space<vmem>>, vector<256x128xf32>
    %75 = arith.addf %74, %73 : vector<256x128xf32>
    %c0_77 = arith.constant 0 : index
    %c0_78 = arith.constant 0 : index
    %76 = vector.load %arg9[%c0_77, %c0_78] : memref<256x128xf32, #tpu.memory_space<vmem>>, vector<256x128xf32>
    tpu.vector_store %arg9[%c0_77, %c0_78], %75 {strides = array<i32>} : memref<256x128xf32, #tpu.memory_space<vmem>>, vector<256x128xf32>,
    %c2_79 = arith.constant 2 : index
    %c0_80 = arith.constant 0 : index
    %c0_81 = arith.constant 0 : index
    %77 = vector.load %arg8[%c2_79, %c0_80, %c0_81] : memref<18x16x384xbf16, #tpu.memory_space<vmem>>, vector<16x16x384xbf16>
    %78 = vector.shape_cast %77 : vector<16x16x384xbf16> to vector<256x384xbf16>
    %c2_82 = arith.constant 2 : index
    %c0_83 = arith.constant 0 : index
    %c0_84 = arith.constant 0 : index
    %79 = vector.load %arg4[%c2_82, %c0_83, %c0_84] : memref<3x384x128xbf16, #tpu.memory_space<vmem>>, vector<1x384x128xbf16>
    %80 = vector.shape_cast %79 : vector<1x384x128xbf16> to vector<384x128xbf16>
    %cst_85 = arith.constant dense<0.000000e+00> : vector<256x128xf32>
    %81 = tpu.matmul %78, %80, %cst_85 {dimension_numbers = #tpu.dot_dimension_numbers<[1], [0], [0], [1], [0, 0, 1, 1], [], []>} : vector<256x384xbf16>, vector<384x128xbf16>, vector<256x128xf32> -> vector<256x128xf32>
    %c0_86 = arith.constant 0 : index
    %c0_87 = arith.constant 0 : index
    %82 = vector.load %arg9[%c0_86, %c0_87] : memref<256x128xf32, #tpu.memory_space<vmem>>, vector<256x128xf32>
    %83 = arith.addf %82, %81 : vector<256x128xf32>
    %c0_88 = arith.constant 0 : index
    %c0_89 = arith.constant 0 : index
    %84 = vector.load %arg9[%c0_88, %c0_89] : memref<256x128xf32, #tpu.memory_space<vmem>>, vector<256x128xf32>
    tpu.vector_store %arg9[%c0_88, %c0_89], %83 {strides = array<i32>} : memref<256x128xf32, #tpu.memory_space<vmem>>, vector<256x128xf32>,
    %c0_90 = arith.constant 0 : index
    %c0_91 = arith.constant 0 : index
    %c0_92 = arith.constant 0 : index
    %c0_93 = arith.constant 0 : index
    %85 = vector.load %arg1[%c0_90, %c0_91, %c0_92, %c0_93] : memref<1x16x16x128xf32, #tpu.memory_space<vmem>>, vector<1x16x16x128xf32>
    %86 = vector.shape_cast %85 : vector<1x16x16x128xf32> to vector<16x16x128xf32>
    %87 = vector.shape_cast %86 : vector<16x16x128xf32> to vector<256x128xf32>
    %c0_94 = arith.constant 0 : index
    %c0_95 = arith.constant 0 : index
    %88 = vector.load %arg9[%c0_94, %c0_95] : memref<256x128xf32, #tpu.memory_space<vmem>>, vector<256x128xf32>
    %c0_96 = arith.constant 0 : index
    %c0_97 = arith.constant 0 : index
    %89 = vector.load %arg5[%c0_96, %c0_97] : memref<1x128xf32, #tpu.memory_space<vmem>>, vector<1x128xf32>
    %90 = vector.broadcast %89 : vector<1x128xf32> to vector<256x128xf32>
    %91 = arith.addf %88, %90 : vector<256x128xf32>
    %92 = arith.addf %91, %87 : vector<256x128xf32>
    %cst_98 = arith.constant 0.000000e+00 : f32
    %93 = vector.broadcast %cst_98 : f32 to vector<256x128xf32>
    %94 = arith.maximumf %92, %93 : vector<256x128xf32>
    %95 = vector.shape_cast %94 : vector<256x128xf32> to vector<16x16x128xf32>
    %c0_99 = arith.constant 0 : index
    %c0_100 = arith.constant 0 : index
    %c0_101 = arith.constant 0 : index
    %c0_102 = arith.constant 0 : index
    %96 = vector.load %arg6[%c0_99, %c0_100, %c0_101, %c0_102] : memref<1x16x16x128xf32, #tpu.memory_space<vmem>>, vector<1x16x16x128xf32>
    %97 = vector.shape_cast %96 : vector<1x16x16x128xf32> to vector<16x16x128xf32>
    %98 = vector.shape_cast %95 : vector<16x16x128xf32> to vector<1x16x16x128xf32>
    tpu.vector_store %arg6[%c0_99, %c0_100, %c0_101, %c0_102], %98 {strides = array<i32>} : memref<1x16x16x128xf32, #tpu.memory_space<vmem>>, vector<1x16x16x128xf32>,
    return
  }
  func.func @transform_0(%arg0: i32) -> (i32, i32, i32, i32) {
    %c0_i32 = arith.constant 0 : i32
    %c0_i32_0 = arith.constant 0 : i32
    %c0_i32_1 = arith.constant 0 : i32
    %c0_i32_2 = arith.constant 0 : i32
    return %arg0, %c0_i32, %c0_i32_0, %c0_i32_1 : i32, i32, i32, i32
  }
  func.func @transform_1(%arg0: i32) -> (i32, i32, i32) {
    %c0_i32 = arith.constant 0 : i32
    %c0_i32_0 = arith.constant 0 : i32
    %c0_i32_1 = arith.constant 0 : i32
    %c0_i32_2 = arith.constant 0 : i32
    return %c0_i32, %c0_i32_0, %c0_i32_1 : i32, i32, i32
  }
  func.func @transform_2(%arg0: i32) -> (i32, i32) {
    %c0_i32 = arith.constant 0 : i32
    %c0_i32_0 = arith.constant 0 : i32
    %c0_i32_1 = arith.constant 0 : i32
    return %c0_i32, %c0_i32_0 : i32, i32
  }
  func.func @transform_3(%arg0: i32) -> (i32, i32, i32) {
    %c0_i32 = arith.constant 0 : i32
    %c0_i32_0 = arith.constant 0 : i32
    %c0_i32_1 = arith.constant 0 : i32
    %c0_i32_2 = arith.constant 0 : i32
    return %c0_i32, %c0_i32_0, %c0_i32_1 : i32, i32, i32
  }
  func.func @transform_4(%arg0: i32) -> (i32, i32) {
    %c0_i32 = arith.constant 0 : i32
    %c0_i32_0 = arith.constant 0 : i32
    %c0_i32_1 = arith.constant 0 : i32
    return %c0_i32, %c0_i32_0 : i32, i32
  }
  func.func @transform_5(%arg0: i32) -> (i32, i32, i32, i32) {
    %c0_i32 = arith.constant 0 : i32
    %c0_i32_0 = arith.constant 0 : i32
    %c0_i32_1 = arith.constant 0 : i32
    %c0_i32_2 = arith.constant 0 : i32
    return %arg0, %c0_i32, %c0_i32_0, %c0_i32_1 : i32, i32, i32, i32
  }
}

</mosaic_0001>

<llo_original>
// kernel: tpu_custom_call.1
$region0: #{tpu_custom_call.1}
  #allocation0 [shape = 'u32[]', space=smem, size = 0x4, offset = 0x4, fixed_abs, tag = 'smem constant byte address 0x4 - core index']
  #allocation1 [shape = 'u32[144,128]{1,0:T(1,128)}', space=vmem, size = 0x12000, scoped, tag = 'internal scratch']
  #allocation2 [shape = 'bf16[18,16,384]{2,1,0:T(16,128)(2,1)}', space=vmem, size = 0x36000, scoped, tag = 'scratch operand']
  #allocation3 [shape = 'bf16[18,16,384]{2,1,0:T(16,128)(2,1)}', space=vmem, size = 0x36000, scoped, tag = 'scratch operand']
  #allocation4 [shape = 'f32[256,128]{1,0:T(8,128)}', space=vmem, size = 0x20000, scoped, tag = 'scratch operand']
  %s0 = inlined_call_operand.hbm [shape: f32[2,16,16,128], index: 0, kind: input, shape index: {}]
  %s1 = inlined_call_operand.hbm [shape: bf16[3,384,128], index: 1, kind: input, shape index: {}]
  %s2 = inlined_call_operand.vmem [shape: f32[1,128], index: 2, kind: input, shape index: {}]
  %s3 = inlined_call_operand.hbm [shape: bf16[3,384,128], index: 3, kind: input, shape index: {}]
  %s4 = inlined_call_operand.vmem [shape: f32[1,128], index: 4, kind: input, shape index: {}]
  %s5 = inlined_call_operand.hbm [shape: f32[2,16,16,128], index: 5, kind: output, shape index: {}]
  %s6 = sld [smem:[#allocation0]]
  $region65: #{tpu_custom_call.1} parent=0
    _
  %s8 = ssub.s32 1, %s6
  %s9 = scalar_select 0, %s8, %s6
  $region1: #{tpu_custom_call.1} parent=0
    #allocation5 [shape = 'u8[262144]{0}', space=vmem, size = 0x40000, scoped, tag = 'input window, operand 0']
    #allocation6 [shape = 's32[2]{0}', space=sflag, size = 0x8, scoped, tag = 'scoped memory for tpu_custom_call.1']
    #allocation7 [shape = 's32[2]{0}', space=sflag, size = 0x8, scoped, tag = 'scoped memory for tpu_custom_call.1']
    #allocation8 [shape = 'u8[294912]{0}', space=vmem, size = 0x48000, scoped, tag = 'input window, operand 1, single buffered']
    #allocation9 [shape = 's32[1]{0}', space=sflag, size = 0x4, scoped, tag = 'scoped memory for tpu_custom_call.1']
    #allocation10 [shape = 'u8[294912]{0}', space=vmem, size = 0x48000, scoped, tag = 'input window, operand 3, single buffered']
    #allocation11 [shape = 'u8[262144]{0}', space=vmem, size = 0x40000, scoped, tag = 'output window, operand 0']
    %10 = vsyncpa [#allocation6], 0
    %s11 = scalar_lea.sflag [#allocation6], 1
    %12 = vsyncpa %s11, 0
    %13 = vsyncpa [#allocation9], 0
    %14 = vsyncpa [#allocation7], 0
    %s15 = scalar_lea.sflag [#allocation7], 1
    %16 = vsyncpa %s15, 0
    loop: start=0, step=1, limit=4
    $region2: #{tpu_custom_call.1} parent=1 // loop_pre_header
      _
    $region3: #{tpu_custom_call.1} parent=1 // loop_header
      %s18 = sphi 0, %s22
      %p19 = scmp.ge.s32.totalorder %s18, 4
      %s28 = sphi 0, %s30
      %s31 = sphi 0, %s28
      %s32 = sphi 0, %s31
      %s48 = sphi 0, %s32
      %s52 = sphi 0, %s52
      %s54 = sphi 0, %s52
      %s55 = sphi 0, %s54
      %s69 = sphi 0, %s55
      %s73 = sphi 0, %s73
      %s75 = sphi 0, %s73
      %s76 = sphi 0, %s75
      %s90 = sphi 0, %s76
      %s94 = sphi 0, %s94
      %s96 = sphi 0, %s94
      %s97 = sphi 0, %s96
      %s111 = sphi 0, %s97
      %s115 = sphi 0, %s115
      %s117 = sphi 0, %s115
      %s118 = sphi 0, %s117
      %s132 = sphi 0, %s118
      %s138 = sphi 0, %s140
      %s141 = sphi 0, %s138
      %s142 = sphi 0, %s141
      %s158 = sphi 0, %s142
    $region4: #{tpu_custom_call.1} parent=1 // loop_header_branch
      %21 = sbr.rel (%p19) target = $region8
    $region5: #{tpu_custom_call.1} parent=1 // loop_body
      %s23 = ssub.s32 %s18, 1
      %s24 = ssub.s32 %s18, 2
      %s25 = sadd.s32 %s18, 1
      %s26 = ssub.s32 %s18, %s25
      %p27 = scmp.eq.s32.totalorder %s26, 0
      %s29 = sadd.s32 %s28, 1
      %s30 = scalar_select %p27, %s28, %s29
      %p33 = pneg %p27
      %p34 = scmp.eq.s32.totalorder %s18, 1
      %p35 = por %p33, %p34
      %p36 = scmp.ne.s32.totalorder %s28, %s31
      %p37 = scmp.eq.s32.totalorder %s18, 0
      %p38 = por %p36, %p37
      %p39 = scmp.ne.s32.totalorder %s28, %s31
      %p40 = scmp.eq.s32.totalorder %s23, 1
      %p41 = por %p39, %p40
      %p42 = scmp.ne.s32.totalorder %s31, %s32
      %p43 = scmp.eq.s32.totalorder %s23, 0
      %p44 = por %p42, %p43
      %p45 = scmp.ne.s32.totalorder %s31, %s32
      %p46 = scmp.eq.s32.totalorder %s24, 1
      %p47 = por %p45, %p46
      %p49 = scmp.ne.s32.totalorder %s32, %s48
      %p50 = scmp.eq.s32.totalorder %s24, 0
      %p51 = por %p49, %p50
      %s53 = sadd.s32 %s52, 1
      %p56 = scmp.eq.s32.totalorder %s18, 1
      %p57 = scmp.ne.s32.totalorder %s52, %s54
      %p58 = scmp.eq.s32.totalorder %s18, 0
      %p59 = por %p57, %p58
      %p60 = scmp.ne.s32.totalorder %s52, %s54
      %p61 = scmp.eq.s32.totalorder %s23, 1
      %p62 = por %p60, %p61
      %p63 = scmp.ne.s32.totalorder %s54, %s55
      %p64 = scmp.eq.s32.totalorder %s23, 0
      %p65 = por %p63, %p64
      %p66 = scmp.ne.s32.totalorder %s54, %s55
      %p67 = scmp.eq.s32.totalorder %s24, 1
      %p68 = por %p66, %p67
      %p70 = scmp.ne.s32.totalorder %s55, %s69
      %p71 = scmp.eq.s32.totalorder %s24, 0
      %p72 = por %p70, %p71
      %s74 = sadd.s32 %s73, 1
      %p77 = scmp.eq.s32.totalorder %s18, 1
      %p78 = scmp.ne.s32.totalorder %s73, %s75
      %p79 = scmp.eq.s32.totalorder %s18, 0
      %p80 = por %p78, %p79
      %p81 = scmp.ne.s32.totalorder %s73, %s75
      %p82 = scmp.eq.s32.totalorder %s23, 1
      %p83 = por %p81, %p82
      %p84 = scmp.ne.s32.totalorder %s75, %s76
      %p85 = scmp.eq.s32.totalorder %s23, 0
      %p86 = por %p84, %p85
      %p87 = scmp.ne.s32.totalorder %s75, %s76
      %p88 = scmp.eq.s32.totalorder %s24, 1
      %p89 = por %p87, %p88
      %p91 = scmp.ne.s32.totalorder %s76, %s90
      %p92 = scmp.eq.s32.totalorder %s24, 0
      %p93 = por %p91, %p92
      %s95 = sadd.s32 %s94, 1
      %p98 = scmp.eq.s32.totalorder %s18, 1
      %p99 = scmp.ne.s32.totalorder %s94, %s96
      %p100 = scmp.eq.s32.totalorder %s18, 0
      %p101 = por %p99, %p100
      %p102 = scmp.ne.s32.totalorder %s94, %s96
      %p103 = scmp.eq.s32.totalorder %s23, 1
      %p104 = por %p102, %p103
      %p105 = scmp.ne.s32.totalorder %s96, %s97
      %p106 = scmp.eq.s32.totalorder %s23, 0
      %p107 = por %p105, %p106
      %p108 = scmp.ne.s32.totalorder %s96, %s97
      %p109 = scmp.eq.s32.totalorder %s24, 1
      %p110 = por %p108, %p109
      %p112 = scmp.ne.s32.totalorder %s97, %s111
      %p113 = scmp.eq.s32.totalorder %s24, 0
      %p114 = por %p112, %p113
      %s116 = sadd.s32 %s115, 1
      %p119 = scmp.eq.s32.totalorder %s18, 1
      %p120 = scmp.ne.s32.totalorder %s115, %s117
      %p121 = scmp.eq.s32.totalorder %s18, 0
      %p122 = por %p120, %p121
      %p123 = scmp.ne.s32.totalorder %s115, %s117
      %p124 = scmp.eq.s32.totalorder %s23, 1
      %p125 = por %p123, %p124
      %p126 = scmp.ne.s32.totalorder %s117, %s118
      %p127 = scmp.eq.s32.totalorder %s23, 0
      %p128 = por %p126, %p127
      %p129 = scmp.ne.s32.totalorder %s117, %s118
      %p130 = scmp.eq.s32.totalorder %s24, 1
      %p131 = por %p129, %p130
      %p133 = scmp.ne.s32.totalorder %s118, %s132
      %p134 = scmp.eq.s32.totalorder %s24, 0
      %p135 = por %p133, %p134
      %s136 = ssub.s32 %s18, %s25
      %p137 = scmp.eq.s32.totalorder %s136, 0
      %s139 = sadd.s32 %s138, 1
      %s140 = scalar_select %p137, %s138, %s139
      %p143 = pneg %p137
      %p144 = scmp.eq.s32.totalorder %s18, 1
      %p145 = por %p143, %p144
      %p146 = scmp.ne.s32.totalorder %s138, %s141
      %p147 = scmp.eq.s32.totalorder %s18, 0
      %p148 = por %p146, %p147
      %p149 = scmp.ne.s32.totalorder %s138, %s141
      %p150 = scmp.eq.s32.totalorder %s23, 1
      %p151 = por %p149, %p150
      %p152 = scmp.ne.s32.totalorder %s141, %s142
      %p153 = scmp.eq.s32.totalorder %s23, 0
      %p154 = por %p152, %p153
      %p155 = scmp.ne.s32.totalorder %s141, %s142
      %p156 = scmp.eq.s32.totalorder %s24, 1
      %p157 = por %p155, %p156
      %p159 = scmp.ne.s32.totalorder %s142, %s158
      %p160 = scmp.eq.s32.totalorder %s24, 0
      %p161 = por %p159, %p160
      %p162 = scmp.le.s32.totalorder 1, %s18
      %p163 = scmp.lt.s32.totalorder %s18, 3
      %p164 = pnand %p162, %p163
      %p165 = pneg %p164
      // Predicated region
      $region9: #{tpu_custom_call.1} parent=5 // pred_check
        _
      $region10: #{tpu_custom_call.1} parent=5 // pred_check_branch
        %167 = sbr.rel (%p164) target = $region12
      $region11: #{tpu_custom_call.1} parent=5 // pred_region
        %s168 = ssub.s32 %s18, 1
        // Predicated region
        $region13: #{tpu_custom_call.1} parent=11 // pred_check
          %p169 = pneg %p65
        $region14: #{tpu_custom_call.1} parent=11 // pred_check_branch
          %171 = sbr.rel (%p169) target = $region16
        $region15: #{tpu_custom_call.1} parent=11 // pred_region
          %s173 = ssub.s32 9216, 9216
          %174 = vsyncadd [#allocation9], %s173
          %s175 = sshll.u32 [#allocation8], 4
          %s176 = int_to_ptr.vmem [resolvable:$true] %s175
          %181 = dma.hbm_to_vmem [thread:$0]  %s1, 9216, %s176, [#allocation9], 64, 64, 4
        $region16: #{tpu_custom_call.1} parent=11 // pred_fallthru
          _
        // Predicated region
        $region17: #{tpu_custom_call.1} parent=11 // pred_check
          %p182 = pneg %p86
        $region18: #{tpu_custom_call.1} parent=11 // pred_check_branch
          %184 = sbr.rel (%p182) target = $region20
        $region19: #{tpu_custom_call.1} parent=11 // pred_region
          _
        $region20: #{tpu_custom_call.1} parent=11 // pred_fallthru
          _
        // Predicated region
        $region21: #{tpu_custom_call.1} parent=11 // pred_check
          %p185 = pneg %p107
        $region22: #{tpu_custom_call.1} parent=11 // pred_check_branch
          %187 = sbr.rel (%p185) target = $region24
        $region23: #{tpu_custom_call.1} parent=11 // pred_region
          %s189 = ssub.s32 9216, 9216
          %190 = vsyncadd [#allocation9], %s189
          %s191 = sshll.u32 [#allocation10], 4
          %s192 = int_to_ptr.vmem [resolvable:$true] %s191
          %197 = dma.hbm_to_vmem [thread:$0]  %s3, 9216, %s192, [#allocation9], 64, 64, 4
        $region24: #{tpu_custom_call.1} parent=11 // pred_fallthru
          _
        // Predicated region
        $region25: #{tpu_custom_call.1} parent=11 // pred_check
          %p198 = pneg %p128
        $region26: #{tpu_custom_call.1} parent=11 // pred_check_branch
          %200 = sbr.rel (%p198) target = $region28
        $region27: #{tpu_custom_call.1} parent=11 // pred_region
          _
        $region28: #{tpu_custom_call.1} parent=11 // pred_fallthru
          _
      $region12: #{tpu_custom_call.1} parent=5 // pred_fallthru
        _
      %p201 = scmp.lt.s32.totalorder %s18, 2
      // Predicated region
      $region29: #{tpu_custom_call.1} parent=5 // pred_check
        %p202 = pneg %p201
      $region30: #{tpu_custom_call.1} parent=5 // pred_check_branch
        %204 = sbr.rel (%p202) target = $region32
      $region31: #{tpu_custom_call.1} parent=5 // pred_region
        // Predicated region
        $region33: #{tpu_custom_call.1} parent=31 // pred_check
          %p205 = pneg %p38
        $region34: #{tpu_custom_call.1} parent=31 // pred_check_branch
          %207 = sbr.rel (%p205) target = $region36
        $region35: #{tpu_custom_call.1} parent=31 // pred_region
          %s208 = sand.u32 %s28, 1
          %s209 = scalar_lea.sflag [#allocation6], %s208
          %s210 = sand.u32 %s28, 1
          %s211 = smul.addr %s210, 256
          %s212 = scalar_lea.vmem [#allocation5], %s211
          %s214 = ssub.s32 4096, 4096
          %215 = vsyncadd %s209, %s214
          %s216 = smul.addr %s18, 32
          %s217 = smul.addr %s216, 128
          %s218 = scalar_lea.hbm %s0, %s217
          %s219 = sshll.u32 %s212, 4
          %s220 = int_to_ptr.vmem [resolvable:$true] %s219
          %225 = dma.hbm_to_vmem [thread:$0]  %s218, 4096, %s220, %s209, 128, 128, 8
        $region36: #{tpu_custom_call.1} parent=31 // pred_fallthru
          _
      $region32: #{tpu_custom_call.1} parent=5 // pred_fallthru
        _
      %p226 = scmp.le.s32.totalorder 1, %s18
      %p227 = scmp.lt.s32.totalorder %s18, 3
      %p228 = pnand %p226, %p227
      %p229 = pneg %p228
      // Predicated region
      $region37: #{tpu_custom_call.1} parent=5 // pred_check
        _
      $region38: #{tpu_custom_call.1} parent=5 // pred_check_branch
        %231 = sbr.rel (%p228) target = $region40
      $region39: #{tpu_custom_call.1} parent=5 // pred_region
        %s232 = ssub.s32 %s18, 1
        %s233 = sand.u32 %s31, 1
        %s234 = scalar_lea.sflag [#allocation6], %s233
        %s235 = sand.u32 %s31, 1
        %s236 = smul.addr %s235, 256
        %s237 = scalar_lea.vmem [#allocation5], %s236
        // Predicated region
        $region41: #{tpu_custom_call.1} parent=39 // pred_check
          %p238 = pneg %p44
        $region42: #{tpu_custom_call.1} parent=39 // pred_check_branch
          %240 = sbr.rel (%p238) target = $region44
        $region43: #{tpu_custom_call.1} parent=39 // pred_region
          %241 = dma.done %s234, 4096
        $region44: #{tpu_custom_call.1} parent=39 // pred_fallthru
          _
        // Predicated region
        $region45: #{tpu_custom_call.1} parent=39 // pred_check
          %p242 = pneg %p65
        $region46: #{tpu_custom_call.1} parent=39 // pred_check_branch
          %244 = sbr.rel (%p242) target = $region48
        $region47: #{tpu_custom_call.1} parent=39 // pred_region
          %245 = dma.done [#allocation9], 9216
        $region48: #{tpu_custom_call.1} parent=39 // pred_fallthru
          _
        // Predicated region
        $region49: #{tpu_custom_call.1} parent=39 // pred_check
          %p246 = pneg %p107
        $region50: #{tpu_custom_call.1} parent=39 // pred_check_branch
          %248 = sbr.rel (%p246) target = $region52
        $region51: #{tpu_custom_call.1} parent=39 // pred_region
          %249 = dma.done [#allocation9], 9216
        $region52: #{tpu_custom_call.1} parent=39 // pred_fallthru
          _
        %s250 = sand.u32 %s31, 1
        %s251 = scalar_lea.sflag [#allocation6], %s250
        %s252 = sand.u32 %s31, 1
        %s253 = smul.addr %s252, 256
        %s254 = scalar_lea.vmem [#allocation5], %s253
        %p255 = pneg %p44
        %p256 = pneg %p41
        %p257 = pneg %p65
        %p258 = pneg %p62
        %p259 = pneg %p86
        %p260 = pneg %p83
        %p261 = pneg %p107
        %p262 = pneg %p104
        %p263 = pneg %p128
        %p264 = pneg %p125
        %p265 = pneg %p154
        %p266 = pneg %p151
        %s267 = sand.u32 %s141, 1
        %s268 = scalar_lea.sflag [#allocation7], %s267
        %s269 = sand.u32 %s141, 1
        %s270 = smul.addr %s269, 256
        %s271 = scalar_lea.vmem [#allocation11], %s270
        %273 = vst [vmem:[#allocation2] sm:$0xff] 0
        %274 = vst [vmem:[#allocation2 + $0x8] sm:$0xff] 0
        %275 = vst [vmem:[#allocation2 + $0x10] sm:$0xff] 0
        %s276 = scalar_lea.vmem [#allocation2], 408
        %277 = vst [vmem:[%s276] sm:$0xff] 0
        %278 = vst [vmem:[%s276 + $0x8] sm:$0xff] 0
        %279 = vst [vmem:[%s276 + $0x10] sm:$0xff] 0
        %v280 = vld [vmem:[%s237] sm:$0xff]
        %v281 = vld [vmem:[%s237 + $0x8] sm:$0xff]
        %v282 = vld [vmem:[%s237 + $0x10] sm:$0xff]
        %v283 = vld [vmem:[%s237 + $0x18] sm:$0xff]
        %v284 = vld [vmem:[%s237 + $0x20] sm:$0xff]
        %v285 = vld [vmem:[%s237 + $0x28] sm:$0xff]
        %v286 = vld [vmem:[%s237 + $0x30] sm:$0xff]
        %v287 = vld [vmem:[%s237 + $0x38] sm:$0xff]
        %v288 = vld [vmem:[%s237 + $0x40] sm:$0xff]
        %v289 = vld [vmem:[%s237 + $0x48] sm:$0xff]
        %v290 = vld [vmem:[%s237 + $0x50] sm:$0xff]
        %v291 = vld [vmem:[%s237 + $0x58] sm:$0xff]
        %v292 = vld [vmem:[%s237 + $0x60] sm:$0xff]
        %v293 = vld [vmem:[%s237 + $0x68] sm:$0xff]
        %v294 = vld [vmem:[%s237 + $0x70] sm:$0xff]
        %v295 = vld [vmem:[%s237 + $0x78] sm:$0xff]
        %v296 = vld [vmem:[%s237 + $0x80] sm:$0xff]
        %v297 = vld [vmem:[%s237 + $0x88] sm:$0xff]
        %v298 = vld [vmem:[%s237 + $0x90] sm:$0xff]
        %v299 = vld [vmem:[%s237 + $0x98] sm:$0xff]
        %v300 = vld [vmem:[%s237 + $0xa0] sm:$0xff]
        %v301 = vld [vmem:[%s237 + $0xa8] sm:$0xff]
        %v302 = vld [vmem:[%s237 + $0xb0] sm:$0xff]
        %v303 = vld [vmem:[%s237 + $0xb8] sm:$0xff]
        %v304 = vld [vmem:[%s237 + $0xc0] sm:$0xff]
        %v305 = vld [vmem:[%s237 + $0xc8] sm:$0xff]
        %v306 = vld [vmem:[%s237 + $0xd0] sm:$0xff]
        %v307 = vld [vmem:[%s237 + $0xd8] sm:$0xff]
        %v308 = vld [vmem:[%s237 + $0xe0] sm:$0xff]
        %v309 = vld [vmem:[%s237 + $0xe8] sm:$0xff]
        %v310 = vld [vmem:[%s237 + $0xf0] sm:$0xff]
        %v311 = vld [vmem:[%s237 + $0xf8] sm:$0xff]
        %vm344 = vcmask 1040384
        %v345 = vrot.slane %v280, 7
        %v346 = vrot.slane %v281, 7
        %v347 = vsel %vm344, %v345, %v346
        %v348 = vrot.slane %v282, 7
        %v349 = vrot.slane %v283, 7
        %v350 = vsel %vm344, %v348, %v349
        %v351 = vrot.slane %v284, 7
        %v352 = vrot.slane %v285, 7
        %v353 = vsel %vm344, %v351, %v352
        %v354 = vrot.slane %v286, 7
        %v355 = vrot.slane %v287, 7
        %v356 = vsel %vm344, %v354, %v355
        %v357 = vrot.slane %v288, 7
        %v358 = vrot.slane %v289, 7
        %v359 = vsel %vm344, %v357, %v358
        %v360 = vrot.slane %v290, 7
        %v361 = vrot.slane %v291, 7
        %v362 = vsel %vm344, %v360, %v361
        %v363 = vrot.slane %v292, 7
        %v364 = vrot.slane %v293, 7
        %v365 = vsel %vm344, %v363, %v364
        %v366 = vrot.slane %v294, 7
        %v367 = vrot.slane %v295, 7
        %v368 = vsel %vm344, %v366, %v367
        %v369 = vrot.slane %v296, 7
        %v370 = vrot.slane %v297, 7
        %v371 = vsel %vm344, %v369, %v370
        %v372 = vrot.slane %v298, 7
        %v373 = vrot.slane %v299, 7
        %v374 = vsel %vm344, %v372, %v373
        %v375 = vrot.slane %v300, 7
        %v376 = vrot.slane %v301, 7
        %v377 = vsel %vm344, %v375, %v376
        %v378 = vrot.slane %v302, 7
        %v379 = vrot.slane %v303, 7
        %v380 = vsel %vm344, %v378, %v379
        %v381 = vrot.slane %v304, 7
        %v382 = vrot.slane %v305, 7
        %v383 = vsel %vm344, %v381, %v382
        %v384 = vrot.slane %v306, 7
        %v385 = vrot.slane %v307, 7
        %v386 = vsel %vm344, %v384, %v385
        %v387 = vrot.slane %v308, 7
        %v388 = vrot.slane %v309, 7
        %v389 = vsel %vm344, %v387, %v388
        %v390 = vrot.slane %v310, 7
        %v391 = vrot.slane %v311, 7
        %v392 = vsel %vm344, %v390, %v391
        %v425 = vsel %vm344, 0.0, %v345
        %v426 = vsel %vm344, 0.0, %v348
        %v427 = vsel %vm344, 0.0, %v351
        %v428 = vsel %vm344, 0.0, %v354
        %v429 = vsel %vm344, 0.0, %v357
        %v430 = vsel %vm344, 0.0, %v360
        %v431 = vsel %vm344, 0.0, %v363
        %v432 = vsel %vm344, 0.0, %v366
        %v433 = vsel %vm344, 0.0, %v369
        %v434 = vsel %vm344, 0.0, %v372
        %v435 = vsel %vm344, 0.0, %v375
        %v436 = vsel %vm344, 0.0, %v378
        %v437 = vsel %vm344, 0.0, %v381
        %v438 = vsel %vm344, 0.0, %v384
        %v439 = vsel %vm344, 0.0, %v387
        %v440 = vsel %vm344, 0.0, %v390
        %vm441 = vcmask 1046528
        %v442 = vrot.slane %v280, 1
        %v443 = vrot.slane %v281, 1
        %v444 = vsel %vm441, %v442, %v443
        %v445 = vrot.slane %v282, 1
        %v446 = vrot.slane %v283, 1
        %v447 = vsel %vm441, %v445, %v446
        %v448 = vrot.slane %v284, 1
        %v449 = vrot.slane %v285, 1
        %v450 = vsel %vm441, %v448, %v449
        %v451 = vrot.slane %v286, 1
        %v452 = vrot.slane %v287, 1
        %v453 = vsel %vm441, %v451, %v452
        %v454 = vrot.slane %v288, 1
        %v455 = vrot.slane %v289, 1
        %v456 = vsel %vm441, %v454, %v455
        %v457 = vrot.slane %v290, 1
        %v458 = vrot.slane %v291, 1
        %v459 = vsel %vm441, %v457, %v458
        %v460 = vrot.slane %v292, 1
        %v461 = vrot.slane %v293, 1
        %v462 = vsel %vm441, %v460, %v461
        %v463 = vrot.slane %v294, 1
        %v464 = vrot.slane %v295, 1
        %v465 = vsel %vm441, %v463, %v464
        %v466 = vrot.slane %v296, 1
        %v467 = vrot.slane %v297, 1
        %v468 = vsel %vm441, %v466, %v467
        %v469 = vrot.slane %v298, 1
        %v470 = vrot.slane %v299, 1
        %v471 = vsel %vm441, %v469, %v470
        %v472 = vrot.slane %v300, 1
        %v473 = vrot.slane %v301, 1
        %v474 = vsel %vm441, %v472, %v473
        %v475 = vrot.slane %v302, 1
        %v476 = vrot.slane %v303, 1
        %v477 = vsel %vm441, %v475, %v476
        %v478 = vrot.slane %v304, 1
        %v479 = vrot.slane %v305, 1
        %v480 = vsel %vm441, %v478, %v479
        %v481 = vrot.slane %v306, 1
        %v482 = vrot.slane %v307, 1
        %v483 = vsel %vm441, %v481, %v482
        %v484 = vrot.slane %v308, 1
        %v485 = vrot.slane %v309, 1
        %v486 = vsel %vm441, %v484, %v485
        %v487 = vrot.slane %v310, 1
        %v488 = vrot.slane %v311, 1
        %v489 = vsel %vm441, %v487, %v488
        %v522 = vsel %vm441, %v443, 0.0
        %v523 = vsel %vm441, %v446, 0.0
        %v524 = vsel %vm441, %v449, 0.0
        %v525 = vsel %vm441, %v452, 0.0
        %v526 = vsel %vm441, %v455, 0.0
        %v527 = vsel %vm441, %v458, 0.0
        %v528 = vsel %vm441, %v461, 0.0
        %v529 = vsel %vm441, %v464, 0.0
        %v530 = vsel %vm441, %v467, 0.0
        %v531 = vsel %vm441, %v470, 0.0
        %v532 = vsel %vm441, %v473, 0.0
        %v533 = vsel %vm441, %v476, 0.0
        %v534 = vsel %vm441, %v479, 0.0
        %v535 = vsel %vm441, %v482, 0.0
        %v536 = vsel %vm441, %v485, 0.0
        %v537 = vsel %vm441, %v488, 0.0
        %v538 = vpack.c.bf16 %v347, %v425
        %v539 = vpack.c.bf16 %v281, %v280
        %v540 = vpack.c.bf16 %v522, %v444
        %v541 = vpack.c.bf16 %v350, %v426
        %v542 = vpack.c.bf16 %v283, %v282
        %v543 = vpack.c.bf16 %v523, %v447
        %v544 = vpack.c.bf16 %v353, %v427
        %v545 = vpack.c.bf16 %v285, %v284
        %v546 = vpack.c.bf16 %v524, %v450
        %v547 = vpack.c.bf16 %v356, %v428
        %v548 = vpack.c.bf16 %v287, %v286
        %v549 = vpack.c.bf16 %v525, %v453
        %v550 = vpack.c.bf16 %v359, %v429
        %v551 = vpack.c.bf16 %v289, %v288
        %v552 = vpack.c.bf16 %v526, %v456
        %v553 = vpack.c.bf16 %v362, %v430
        %v554 = vpack.c.bf16 %v291, %v290
        %v555 = vpack.c.bf16 %v527, %v459
        %v556 = vpack.c.bf16 %v365, %v431
        %v557 = vpack.c.bf16 %v293, %v292
        %v558 = vpack.c.bf16 %v528, %v462
        %v559 = vpack.c.bf16 %v368, %v432
        %v560 = vpack.c.bf16 %v295, %v294
        %v561 = vpack.c.bf16 %v529, %v465
        %v562 = vpack.c.bf16 %v371, %v433
        %v563 = vpack.c.bf16 %v297, %v296
        %v564 = vpack.c.bf16 %v530, %v468
        %v565 = vpack.c.bf16 %v374, %v434
        %v566 = vpack.c.bf16 %v299, %v298
        %v567 = vpack.c.bf16 %v531, %v471
        %v568 = vpack.c.bf16 %v377, %v435
        %v569 = vpack.c.bf16 %v301, %v300
        %v570 = vpack.c.bf16 %v532, %v474
        %v571 = vpack.c.bf16 %v380, %v436
        %v572 = vpack.c.bf16 %v303, %v302
        %v573 = vpack.c.bf16 %v533, %v477
        %v574 = vpack.c.bf16 %v383, %v437
        %v575 = vpack.c.bf16 %v305, %v304
        %v576 = vpack.c.bf16 %v534, %v480
        %v577 = vpack.c.bf16 %v386, %v438
        %v578 = vpack.c.bf16 %v307, %v306
        %v579 = vpack.c.bf16 %v535, %v483
        %v580 = vpack.c.bf16 %v389, %v439
        %v581 = vpack.c.bf16 %v309, %v308
        %v582 = vpack.c.bf16 %v536, %v486
        %v583 = vpack.c.bf16 %v392, %v440
        %v584 = vpack.c.bf16 %v311, %v310
        %v585 = vpack.c.bf16 %v537, %v489
        %s586 = scalar_lea.vmem [#allocation2], 24
        %587 = vst [vmem:[%s586] sm:$0xff] %v538
        %588 = vst [vmem:[%s586 + $0x8] sm:$0xff] %v539
        %589 = vst [vmem:[%s586 + $0x10] sm:$0xff] %v540
        %590 = vst [vmem:[%s586 + $0x18] sm:$0xff] %v541
        %591 = vst [vmem:[%s586 + $0x20] sm:$0xff] %v542
        %592 = vst [vmem:[%s586 + $0x28] sm:$0xff] %v543
        %593 = vst [vmem:[%s586 + $0x30] sm:$0xff] %v544
        %594 = vst [vmem:[%s586 + $0x38] sm:$0xff] %v545
        %595 = vst [vmem:[%s586 + $0x40] sm:$0xff] %v546
        %596 = vst [vmem:[%s586 + $0x48] sm:$0xff] %v547
        %597 = vst [vmem:[%s586 + $0x50] sm:$0xff] %v548
        %598 = vst [vmem:[%s586 + $0x58] sm:$0xff] %v549
        %599 = vst [vmem:[%s586 + $0x60] sm:$0xff] %v550
        %600 = vst [vmem:[%s586 + $0x68] sm:$0xff] %v551
        %601 = vst [vmem:[%s586 + $0x70] sm:$0xff] %v552
        %602 = vst [vmem:[%s586 + $0x78] sm:$0xff] %v553
        %603 = vst [vmem:[%s586 + $0x80] sm:$0xff] %v554
        %604 = vst [vmem:[%s586 + $0x88] sm:$0xff] %v555
        %605 = vst [vmem:[%s586 + $0x90] sm:$0xff] %v556
        %606 = vst [vmem:[%s586 + $0x98] sm:$0xff] %v557
        %607 = vst [vmem:[%s586 + $0xa0] sm:$0xff] %v558
        %608 = vst [vmem:[%s586 + $0xa8] sm:$0xff] %v559
        %609 = vst [vmem:[%s586 + $0xb0] sm:$0xff] %v560
        %610 = vst [vmem:[%s586 + $0xb8] sm:$0xff] %v561
        %611 = vst [vmem:[%s586 + $0xc0] sm:$0xff] %v562
        %612 = vst [vmem:[%s586 + $0xc8] sm:$0xff] %v563
        %613 = vst [vmem:[%s586 + $0xd0] sm:$0xff] %v564
        %614 = vst [vmem:[%s586 + $0xd8] sm:$0xff] %v565
        %615 = vst [vmem:[%s586 + $0xe0] sm:$0xff] %v566
        %616 = vst [vmem:[%s586 + $0xe8] sm:$0xff] %v567
        %617 = vst [vmem:[%s586 + $0xf0] sm:$0xff] %v568
        %618 = vst [vmem:[%s586 + $0xf8] sm:$0xff] %v569
        %619 = vst [vmem:[%s586 + $0x100] sm:$0xff] %v570
        %620 = vst [vmem:[%s586 + $0x108] sm:$0xff] %v571
        %621 = vst [vmem:[%s586 + $0x110] sm:$0xff] %v572
        %622 = vst [vmem:[%s586 + $0x118] sm:$0xff] %v573
        %623 = vst [vmem:[%s586 + $0x120] sm:$0xff] %v574
        %624 = vst [vmem:[%s586 + $0x128] sm:$0xff] %v575
        %625 = vst [vmem:[%s586 + $0x130] sm:$0xff] %v576
        %626 = vst [vmem:[%s586 + $0x138] sm:$0xff] %v577
        %627 = vst [vmem:[%s586 + $0x140] sm:$0xff] %v578
        %628 = vst [vmem:[%s586 + $0x148] sm:$0xff] %v579
        %629 = vst [vmem:[%s586 + $0x150] sm:$0xff] %v580
        %630 = vst [vmem:[%s586 + $0x158] sm:$0xff] %v581
        %631 = vst [vmem:[%s586 + $0x160] sm:$0xff] %v582
        %632 = vst [vmem:[%s586 + $0x168] sm:$0xff] %v583
        %633 = vst [vmem:[%s586 + $0x170] sm:$0xff] %v584
        %634 = vst [vmem:[%s586 + $0x178] sm:$0xff] %v585
        %v635 = vld [vmem:[#allocation2] sm:$0xff]
        %v636 = vld [vmem:[#allocation2 + $0x8] sm:$0xff]
        %v637 = vld [vmem:[#allocation2 + $0x10] sm:$0xff]
        %v638 = vld [vmem:[#allocation2 + $0x18] sm:$0xff]
        %v639 = vld [vmem:[#allocation2 + $0x20] sm:$0xff]
        %v640 = vld [vmem:[#allocation2 + $0x28] sm:$0xff]
        %v641 = vld [vmem:[#allocation2 + $0x30] sm:$0xff]
        %v642 = vld [vmem:[#allocation2 + $0x38] sm:$0xff]
        %v643 = vld [vmem:[#allocation2 + $0x40] sm:$0xff]
        %v644 = vld [vmem:[#allocation2 + $0x48] sm:$0xff]
        %v645 = vld [vmem:[#allocation2 + $0x50] sm:$0xff]
        %v646 = vld [vmem:[#allocation2 + $0x58] sm:$0xff]
        %v647 = vld [vmem:[#allocation2 + $0x60] sm:$0xff]
        %v648 = vld [vmem:[#allocation2 + $0x68] sm:$0xff]
        %v649 = vld [vmem:[#allocation2 + $0x70] sm:$0xff]
        %v650 = vld [vmem:[#allocation2 + $0x78] sm:$0xff]
        %v651 = vld [vmem:[#allocation2 + $0x80] sm:$0xff]
        %v652 = vld [vmem:[#allocation2 + $0x88] sm:$0xff]
        %v653 = vld [vmem:[#allocation2 + $0x90] sm:$0xff]
        %v654 = vld [vmem:[#allocation2 + $0x98] sm:$0xff]
        %v655 = vld [vmem:[#allocation2 + $0xa0] sm:$0xff]
        %v656 = vld [vmem:[#allocation2 + $0xa8] sm:$0xff]
        %v657 = vld [vmem:[#allocation2 + $0xb0] sm:$0xff]
        %v658 = vld [vmem:[#allocation2 + $0xb8] sm:$0xff]
        %v659 = vld [vmem:[#allocation2 + $0xc0] sm:$0xff]
        %v660 = vld [vmem:[#allocation2 + $0xc8] sm:$0xff]
        %v661 = vld [vmem:[#allocation2 + $0xd0] sm:$0xff]
        %v662 = vld [vmem:[#allocation2 + $0xd8] sm:$0xff]
        %v663 = vld [vmem:[#allocation2 + $0xe0] sm:$0xff]
        %v664 = vld [vmem:[#allocation2 + $0xe8] sm:$0xff]
        %v665 = vld [vmem:[#allocation2 + $0xf0] sm:$0xff]
        %v666 = vld [vmem:[#allocation2 + $0xf8] sm:$0xff]
        %v667 = vld [vmem:[#allocation2 + $0x100] sm:$0xff]
        %v668 = vld [vmem:[#allocation2 + $0x108] sm:$0xff]
        %v669 = vld [vmem:[#allocation2 + $0x110] sm:$0xff]
        %v670 = vld [vmem:[#allocation2 + $0x118] sm:$0xff]
        %v671 = vld [vmem:[#allocation2 + $0x120] sm:$0xff]
        %v672 = vld [vmem:[#allocation2 + $0x128] sm:$0xff]
        %v673 = vld [vmem:[#allocation2 + $0x130] sm:$0xff]
        %v674 = vld [vmem:[#allocation2 + $0x138] sm:$0xff]
        %v675 = vld [vmem:[#allocation2 + $0x140] sm:$0xff]
        %v676 = vld [vmem:[#allocation2 + $0x148] sm:$0xff]
        %v677 = vld [vmem:[#allocation2 + $0x150] sm:$0xff]
        %v678 = vld [vmem:[#allocation2 + $0x158] sm:$0xff]
        %v679 = vld [vmem:[#allocation2 + $0x160] sm:$0xff]
        %v680 = vld [vmem:[#allocation2 + $0x168] sm:$0xff]
        %v681 = vld [vmem:[#allocation2 + $0x170] sm:$0xff]
        %v682 = vld [vmem:[#allocation2 + $0x178] sm:$0xff]
        %v683 = vld [vmem:[#allocation8] sm:$0xf]
        %v684 = vld [vmem:[#allocation8 + $0x4] sm:$0xf]
        %v685 = vld [vmem:[#allocation8 + $0x8] sm:$0xf]
        %v686 = vld [vmem:[#allocation8 + $0xc] sm:$0xf]
        %v687 = vld [vmem:[#allocation8 + $0x10] sm:$0xf]
        %v688 = vld [vmem:[#allocation8 + $0x14] sm:$0xf]
        %v689 = vld [vmem:[#allocation8 + $0x18] sm:$0xf]
        %v690 = vld [vmem:[#allocation8 + $0x1c] sm:$0xf]
        %v691 = vld [vmem:[#allocation8 + $0x20] sm:$0xf]
        %v692 = vld [vmem:[#allocation8 + $0x24] sm:$0xf]
        %v693 = vld [vmem:[#allocation8 + $0x28] sm:$0xf]
        %v694 = vld [vmem:[#allocation8 + $0x2c] sm:$0xf]
        %v695 = vld [vmem:[#allocation8 + $0x30] sm:$0xf]
        %v696 = vld [vmem:[#allocation8 + $0x34] sm:$0xf]
        %v697 = vld [vmem:[#allocation8 + $0x38] sm:$0xf]
        %v698 = vld [vmem:[#allocation8 + $0x3c] sm:$0xf]
        %v699 = vld [vmem:[#allocation8 + $0x40] sm:$0xf]
        %v700 = vld [vmem:[#allocation8 + $0x44] sm:$0xf]
        %v701 = vld [vmem:[#allocation8 + $0x48] sm:$0xf]
        %v702 = vld [vmem:[#allocation8 + $0x4c] sm:$0xf]
        %v703 = vld [vmem:[#allocation8 + $0x50] sm:$0xf]
        %v704 = vld [vmem:[#allocation8 + $0x54] sm:$0xf]
        %v705 = vld [vmem:[#allocation8 + $0x58] sm:$0xf]
        %v706 = vld [vmem:[#allocation8 + $0x5c] sm:$0xf]
        %v707 = vld [vmem:[#allocation8 + $0x60] sm:$0xf]
        %v708 = vld [vmem:[#allocation8 + $0x64] sm:$0xf]
        %v709 = vld [vmem:[#allocation8 + $0x68] sm:$0xf]
        %v710 = vld [vmem:[#allocation8 + $0x6c] sm:$0xf]
        %v711 = vld [vmem:[#allocation8 + $0x70] sm:$0xf]
        %v712 = vld [vmem:[#allocation8 + $0x74] sm:$0xf]
        %v713 = vld [vmem:[#allocation8 + $0x78] sm:$0xf]
        %v714 = vld [vmem:[#allocation8 + $0x7c] sm:$0xf]
        %v715 = vld [vmem:[#allocation8 + $0x80] sm:$0xf]
        %v716 = vld [vmem:[#allocation8 + $0x84] sm:$0xf]
        %v717 = vld [vmem:[#allocation8 + $0x88] sm:$0xf]
        %v718 = vld [vmem:[#allocation8 + $0x8c] sm:$0xf]
        %v719 = vld [vmem:[#allocation8 + $0x90] sm:$0xf]
        %v720 = vld [vmem:[#allocation8 + $0x94] sm:$0xf]
        %v721 = vld [vmem:[#allocation8 + $0x98] sm:$0xf]
        %v722 = vld [vmem:[#allocation8 + $0x9c] sm:$0xf]
        %v723 = vld [vmem:[#allocation8 + $0xa0] sm:$0xf]
        %v724 = vld [vmem:[#allocation8 + $0xa4] sm:$0xf]
        %v725 = vld [vmem:[#allocation8 + $0xa8] sm:$0xf]
        %v726 = vld [vmem:[#allocation8 + $0xac] sm:$0xf]
        %v727 = vld [vmem:[#allocation8 + $0xb0] sm:$0xf]
        %v728 = vld [vmem:[#allocation8 + $0xb4] sm:$0xf]
        %v729 = vld [vmem:[#allocation8 + $0xb8] sm:$0xf]
        %v730 = vld [vmem:[#allocation8 + $0xbc] sm:$0xf]
        %v779 = vunpack.c.l.b16 %v683
        %v780 = vunpack.c.l.b16 %v684
        %v781 = vunpack.c.l.b16 %v685
        %v782 = vunpack.c.l.b16 %v686
        %v783 = vunpack.c.l.b16 %v687
        %v784 = vunpack.c.l.b16 %v688
        %v785 = vunpack.c.l.b16 %v689
        %v786 = vunpack.c.l.b16 %v690
        %v787 = vunpack.c.l.b16 %v691
        %v788 = vunpack.c.l.b16 %v692
        %v789 = vunpack.c.l.b16 %v693
        %v790 = vunpack.c.l.b16 %v694
        %v791 = vunpack.c.l.b16 %v695
        %v792 = vunpack.c.l.b16 %v696
        %v793 = vunpack.c.l.b16 %v697
        %v794 = vunpack.c.l.b16 %v698
        %v795 = vunpack.c.l.b16 %v699
        %v796 = vunpack.c.l.b16 %v700
        %v797 = vunpack.c.l.b16 %v701
        %v798 = vunpack.c.l.b16 %v702
        %v799 = vunpack.c.l.b16 %v703
        %v800 = vunpack.c.l.b16 %v704
        %v801 = vunpack.c.l.b16 %v705
        %v802 = vunpack.c.l.b16 %v706
        %v803 = vunpack.c.l.b16 %v707
        %v804 = vunpack.c.l.b16 %v708
        %v805 = vunpack.c.l.b16 %v709
        %v806 = vunpack.c.l.b16 %v710
        %v807 = vunpack.c.l.b16 %v711
        %v808 = vunpack.c.l.b16 %v712
        %v809 = vunpack.c.l.b16 %v713
        %v810 = vunpack.c.l.b16 %v714
        %v811 = vunpack.c.l.b16 %v715
        %v812 = vunpack.c.l.b16 %v716
        %v813 = vunpack.c.l.b16 %v717
        %v814 = vunpack.c.l.b16 %v718
        %v815 = vunpack.c.l.b16 %v719
        %v816 = vunpack.c.l.b16 %v720
        %v817 = vunpack.c.l.b16 %v721
        %v818 = vunpack.c.l.b16 %v722
        %v819 = vunpack.c.l.b16 %v723
        %v820 = vunpack.c.l.b16 %v724
        %v821 = vunpack.c.l.b16 %v725
        %v822 = vunpack.c.l.b16 %v726
        %v823 = vunpack.c.l.b16 %v727
        %v824 = vunpack.c.l.b16 %v728
        %v825 = vunpack.c.l.b16 %v729
        %v826 = vunpack.c.l.b16 %v730
        %v827 = vpack.c.b16 %v780, %v779
        %v828 = vpack.c.b16 %v782, %v781
        %v829 = vpack.c.b16 %v784, %v783
        %v830 = vpack.c.b16 %v786, %v785
        %v831 = vpack.c.b16 %v788, %v787
        %v832 = vpack.c.b16 %v790, %v789
        %v833 = vpack.c.b16 %v792, %v791
        %v834 = vpack.c.b16 %v794, %v793
        %v835 = vpack.c.b16 %v796, %v795
        %v836 = vpack.c.b16 %v798, %v797
        %v837 = vpack.c.b16 %v800, %v799
        %v838 = vpack.c.b16 %v802, %v801
        %v839 = vpack.c.b16 %v804, %v803
        %v840 = vpack.c.b16 %v806, %v805
        %v841 = vpack.c.b16 %v808, %v807
        %v842 = vpack.c.b16 %v810, %v809
        %v843 = vpack.c.b16 %v812, %v811
        %v844 = vpack.c.b16 %v814, %v813
        %v845 = vpack.c.b16 %v816, %v815
        %v846 = vpack.c.b16 %v818, %v817
        %v847 = vpack.c.b16 %v820, %v819
        %v848 = vpack.c.b16 %v822, %v821
        %v849 = vpack.c.b16 %v824, %v823
        %v850 = vpack.c.b16 %v826, %v825
        %875 = vmatprep.subr.bf16.mxu0 0
        %876 = vmatpush1.bf16.msra.mxu0 %v827
        %877 = vmatprep.subr.bf16.mxu0 0
        %878 = vmatpush1.bf16.msra.mxu0 %v828
        %879 = vmatprep.subr.bf16.mxu0 0
        %880 = vmatpush1.bf16.msra.mxu0 %v829
        %881 = vmatprep.subr.bf16.mxu0 0
        %882 = vmatpush1.bf16.msra.mxu0 %v830
        %883 = vmatprep.subr.bf16.mxu0 0
        %884 = vmatpush1.bf16.msra.mxu0 %v831
        %885 = vmatprep.subr.bf16.mxu0 0
        %886 = vmatpush1.bf16.msra.mxu0 %v832
        %887 = vmatprep.subr.bf16.mxu0 0
        %888 = vmatpush1.bf16.msra.mxu0 %v833
        %889 = vmatprep.subr.bf16.mxu0 0
        %890 = vmatpush1.bf16.msra.mxu0 %v834
        %891 = vmatprep.subr.bf16.mxu0 0
        %892 = vmatpush1.bf16.msra.mxu0 %v835
        %893 = vmatprep.subr.bf16.mxu0 0
        %894 = vmatpush1.bf16.msra.mxu0 %v836
        %895 = vmatprep.subr.bf16.mxu0 0
        %896 = vmatpush1.bf16.msra.mxu0 %v837
        %897 = vmatprep.subr.bf16.mxu0 0
        %898 = vmatpush1.bf16.msra.mxu0 %v838
        %899 = vmatprep.subr.bf16.mxu0 0
        %900 = vmatpush1.bf16.msra.mxu0 %v839
        %901 = vmatprep.subr.bf16.mxu0 0
        %902 = vmatpush1.bf16.msra.mxu0 %v840
        %903 = vmatprep.subr.bf16.mxu0 0
        %904 = vmatpush1.bf16.msra.mxu0 %v841
        %905 = vmatprep.subr.bf16.mxu0 0
        %906 = vmatpush1.bf16.msra.mxu0 %v842
        %907 = vmatprep.mubr.bf16.mxu0 %v636
        %908 = vmatmul.mubr.bf16.gmra.mrb[0].mxu0 %v635
        %v909 = vpop.f32.mrb[0].mxu0
        %v910 = vadd.f32 0.0, %v909
        %v911 = vpop.f32.mrb[0].mxu0
        %v912 = vpop.f32.mrb[0].mxu0
        %v913 = vadd.f32 0.0, %v912
        %v914 = vpop.f32.mrb[0].mxu0
        %915 = vmatprep.mubr.bf16.mxu0 %v639
        %916 = vmatmul.mubr.bf16.gmra.mrb[0].mxu0 %v638
        %v917 = vpop.f32.mrb[0].mxu0
        %v918 = vadd.f32 0.0, %v917
        %v919 = vpop.f32.mrb[0].mxu0
        %v920 = vpop.f32.mrb[0].mxu0
        %v921 = vadd.f32 0.0, %v920
        %v922 = vpop.f32.mrb[0].mxu0
        %923 = vmatprep.mubr.bf16.mxu0 %v642
        %924 = vmatmul.mubr.bf16.gmra.mrb[0].mxu0 %v641
        %v925 = vpop.f32.mrb[0].mxu0
        %v926 = vadd.f32 0.0, %v925
        %v927 = vpop.f32.mrb[0].mxu0
        %v928 = vpop.f32.mrb[0].mxu0
        %v929 = vadd.f32 0.0, %v928
        %v930 = vpop.f32.mrb[0].mxu0
        %931 = vmatprep.mubr.bf16.mxu0 %v645
        %932 = vmatmul.mubr.bf16.gmra.mrb[0].mxu0 %v644
        %v933 = vpop.f32.mrb[0].mxu0
        %v934 = vadd.f32 0.0, %v933
        %v935 = vpop.f32.mrb[0].mxu0
        %v936 = vpop.f32.mrb[0].mxu0
        %v937 = vadd.f32 0.0, %v936
        %v938 = vpop.f32.mrb[0].mxu0
        %939 = vmatprep.mubr.bf16.mxu0 %v648
        %940 = vmatmul.mubr.bf16.gmra.mrb[0].mxu0 %v647
        %v941 = vpop.f32.mrb[0].mxu0
        %v942 = vadd.f32 0.0, %v941
        %v943 = vpop.f32.mrb[0].mxu0
        %v944 = vpop.f32.mrb[0].mxu0
        %v945 = vadd.f32 0.0, %v944
        %v946 = vpop.f32.mrb[0].mxu0
        %947 = vmatprep.mubr.bf16.mxu0 %v651
        %948 = vmatmul.mubr.bf16.gmra.mrb[0].mxu0 %v650
        %v949 = vpop.f32.mrb[0].mxu0
        %v950 = vadd.f32 0.0, %v949
        %v951 = vpop.f32.mrb[0].mxu0
        %v952 = vpop.f32.mrb[0].mxu0
        %v953 = vadd.f32 0.0, %v952
        %v954 = vpop.f32.mrb[0].mxu0
        %955 = vmatprep.mubr.bf16.mxu0 %v654
        %956 = vmatmul.mubr.bf16.gmra.mrb[0].mxu0 %v653
        %v957 = vpop.f32.mrb[0].mxu0
        %v958 = vadd.f32 0.0, %v957
        %v959 = vpop.f32.mrb[0].mxu0
        %v960 = vpop.f32.mrb[0].mxu0
        %v961 = vadd.f32 0.0, %v960
        %v962 = vpop.f32.mrb[0].mxu0
        %963 = vmatprep.mubr.bf16.mxu0 %v657
        %964 = vmatmul.mubr.bf16.gmra.mrb[0].mxu0 %v656
        %v965 = vpop.f32.mrb[0].mxu0
        %v966 = vadd.f32 0.0, %v965
        %v967 = vpop.f32.mrb[0].mxu0
        %v968 = vpop.f32.mrb[0].mxu0
        %v969 = vadd.f32 0.0, %v968
        %v970 = vpop.f32.mrb[0].mxu0
        %971 = vmatprep.mubr.bf16.mxu0 %v660
        %972 = vmatmul.mubr.bf16.gmra.mrb[0].mxu0 %v659
        %v973 = vpop.f32.mrb[0].mxu0
        %v974 = vadd.f32 0.0, %v973
        %v975 = vpop.f32.mrb[0].mxu0
        %v976 = vpop.f32.mrb[0].mxu0
        %v977 = vadd.f32 0.0, %v976
        %v978 = vpop.f32.mrb[0].mxu0
        %979 = vmatprep.mubr.bf16.mxu0 %v663
        %980 = vmatmul.mubr.bf16.gmra.mrb[0].mxu0 %v662
        %v981 = vpop.f32.mrb[0].mxu0
        %v982 = vadd.f32 0.0, %v981
        %v983 = vpop.f32.mrb[0].mxu0
        %v984 = vpop.f32.mrb[0].mxu0
        %v985 = vadd.f32 0.0, %v984
        %v986 = vpop.f32.mrb[0].mxu0
        %987 = vmatprep.mubr.bf16.mxu0 %v666
        %988 = vmatmul.mubr.bf16.gmra.mrb[0].mxu0 %v665
        %v989 = vpop.f32.mrb[0].mxu0
        %v990 = vadd.f32 0.0, %v989
        %v991 = vpop.f32.mrb[0].mxu0
        %v992 = vpop.f32.mrb[0].mxu0
        %v993 = vadd.f32 0.0, %v992
        %v994 = vpop.f32.mrb[0].mxu0
        %995 = vmatprep.mubr.bf16.mxu0 %v669
        %996 = vmatmul.mubr.bf16.gmra.mrb[0].mxu0 %v668
        %v997 = vpop.f32.mrb[0].mxu0
        %v998 = vadd.f32 0.0, %v997
        %v999 = vpop.f32.mrb[0].mxu0
        %v1000 = vpop.f32.mrb[0].mxu0
        %v1001 = vadd.f32 0.0, %v1000
        %v1002 = vpop.f32.mrb[0].mxu0
        %1003 = vmatprep.mubr.bf16.mxu0 %v672
        %1004 = vmatmul.mubr.bf16.gmra.mrb[0].mxu0 %v671
        %v1005 = vpop.f32.mrb[0].mxu0
        %v1006 = vadd.f32 0.0, %v1005
        %v1007 = vpop.f32.mrb[0].mxu0
        %v1008 = vpop.f32.mrb[0].mxu0
        %v1009 = vadd.f32 0.0, %v1008
        %v1010 = vpop.f32.mrb[0].mxu0
        %1011 = vmatprep.mubr.bf16.mxu0 %v675
        %1012 = vmatmul.mubr.bf16.gmra.mrb[0].mxu0 %v674
        %v1013 = vpop.f32.mrb[0].mxu0
        %v1014 = vadd.f32 0.0, %v1013
        %v1015 = vpop.f32.mrb[0].mxu0
        %v1016 = vpop.f32.mrb[0].mxu0
        %v1017 = vadd.f32 0.0, %v1016
        %v1018 = vpop.f32.mrb[0].mxu0
        %1019 = vmatprep.mubr.bf16.mxu0 %v678
        %1020 = vmatmul.mubr.bf16.gmra.mrb[0].mxu0 %v677
        %v1021 = vpop.f32.mrb[0].mxu0
        %v1022 = vadd.f32 0.0, %v1021
        %v1023 = vpop.f32.mrb[0].mxu0
        %v1024 = vpop.f32.mrb[0].mxu0
        %v1025 = vadd.f32 0.0, %v1024
        %v1026 = vpop.f32.mrb[0].mxu0
        %1027 = vmatprep.mubr.bf16.mxu0 %v681
        %1028 = vmatmul.mubr.bf16.gmra.mrb[0].mxu0 %v680
        %v1029 = vpop.f32.mrb[0].mxu0
        %v1030 = vadd.f32 0.0, %v1029
        %v1031 = vpop.f32.mrb[0].mxu0
        %v1032 = vpop.f32.mrb[0].mxu0
        %v1033 = vadd.f32 0.0, %v1032
        %v1034 = vpop.f32.mrb[0].mxu0
        %1035 = vdwg.mxu0
        %1036 = vmatprep.subr.bf16.mxu0 0
        %1037 = vmatpush1.bf16.msra.mxu0 %v843
        %1038 = vmatprep.subr.bf16.mxu0 0
        %1039 = vmatpush1.bf16.msra.mxu0 %v844
        %1040 = vmatprep.subr.bf16.mxu0 0
        %1041 = vmatpush1.bf16.msra.mxu0 %v845
        %1042 = vmatprep.subr.bf16.mxu0 0
        %1043 = vmatpush1.bf16.msra.mxu0 %v846
        %1044 = vmatprep.subr.bf16.mxu0 0
        %1045 = vmatpush1.bf16.msra.mxu0 %v847
        %1046 = vmatprep.subr.bf16.mxu0 0
        %1047 = vmatpush1.bf16.msra.mxu0 %v848
        %1048 = vmatprep.subr.bf16.mxu0 0
        %1049 = vmatpush1.bf16.msra.mxu0 %v849
        %1050 = vmatprep.subr.bf16.mxu0 0
        %1051 = vmatpush1.bf16.msra.mxu0 %v850
        %1052 = vmatprep.subr.bf16.mxu0 0
        %1053 = vmatpush1.bf16.msra.mxu0 0
        %1054 = vmatprep.subr.bf16.mxu0 0
        %1055 = vmatpush1.bf16.msra.mxu0 0
        %1056 = vmatprep.subr.bf16.mxu0 0
        %1057 = vmatpush1.bf16.msra.mxu0 0
        %1058 = vmatprep.subr.bf16.mxu0 0
        %1059 = vmatpush1.bf16.msra.mxu0 0
        %1060 = vmatprep.subr.bf16.mxu0 0
        %1061 = vmatpush1.bf16.msra.mxu0 0
        %1062 = vmatprep.subr.bf16.mxu0 0
        %1063 = vmatpush1.bf16.msra.mxu0 0
        %1064 = vmatprep.subr.bf16.mxu0 0
        %1065 = vmatpush1.bf16.msra.mxu0 0
        %1066 = vmatprep.subr.bf16.mxu0 0
        %1067 = vmatpush1.bf16.msra.mxu0 0
        %1068 = vmatprep.mubr.bf16.mxu0 0
        %1069 = vmatmul.mubr.bf16.gmra.mrb[0].mxu0 %v637
        %v1070 = vpop.f32.mrb[0].mxu0
        %v1071 = vadd.f32 %v910, %v1070
        %v1072 = vpop.f32.mrb[0].mxu0
        %v1073 = vpop.f32.mrb[0].mxu0
        %v1074 = vadd.f32 %v913, %v1073
        %v1075 = vpop.f32.mrb[0].mxu0
        %1076 = vmatprep.mubr.bf16.mxu0 0
        %1077 = vmatmul.mubr.bf16.gmra.mrb[0].mxu0 %v640
        %v1078 = vpop.f32.mrb[0].mxu0
        %v1079 = vadd.f32 %v918, %v1078
        %v1080 = vpop.f32.mrb[0].mxu0
        %v1081 = vpop.f32.mrb[0].mxu0
        %v1082 = vadd.f32 %v921, %v1081
        %v1083 = vpop.f32.mrb[0].mxu0
        %1084 = vmatprep.mubr.bf16.mxu0 0
        %1085 = vmatmul.mubr.bf16.gmra.mrb[0].mxu0 %v643
        %v1086 = vpop.f32.mrb[0].mxu0
        %v1087 = vadd.f32 %v926, %v1086
        %v1088 = vpop.f32.mrb[0].mxu0
        %v1089 = vpop.f32.mrb[0].mxu0
        %v1090 = vadd.f32 %v929, %v1089
        %v1091 = vpop.f32.mrb[0].mxu0
        %1092 = vmatprep.mubr.bf16.mxu0 0
        %1093 = vmatmul.mubr.bf16.gmra.mrb[0].mxu0 %v646
        %v1094 = vpop.f32.mrb[0].mxu0
        %v1095 = vadd.f32 %v934, %v1094
        %v1096 = vpop.f32.mrb[0].mxu0
        %v1097 = vpop.f32.mrb[0].mxu0
        %v1098 = vadd.f32 %v937, %v1097
        %v1099 = vpop.f32.mrb[0].mxu0
        %1100 = vmatprep.mubr.bf16.mxu0 0
        %1101 = vmatmul.mubr.bf16.gmra.mrb[0].mxu0 %v649
        %v1102 = vpop.f32.mrb[0].mxu0
        %v1103 = vadd.f32 %v942, %v1102
        %v1104 = vpop.f32.mrb[0].mxu0
        %v1105 = vpop.f32.mrb[0].mxu0
        %v1106 = vadd.f32 %v945, %v1105
        %v1107 = vpop.f32.mrb[0].mxu0
        %1108 = vmatprep.mubr.bf16.mxu0 0
        %1109 = vmatmul.mubr.bf16.gmra.mrb[0].mxu0 %v652
        %v1110 = vpop.f32.mrb[0].mxu0
        %v1111 = vadd.f32 %v950, %v1110
        %v1112 = vpop.f32.mrb[0].mxu0
        %v1113 = vpop.f32.mrb[0].mxu0
        %v1114 = vadd.f32 %v953, %v1113
        %v1115 = vpop.f32.mrb[0].mxu0
        %1116 = vmatprep.mubr.bf16.mxu0 0
        %1117 = vmatmul.mubr.bf16.gmra.mrb[0].mxu0 %v655
        %v1118 = vpop.f32.mrb[0].mxu0
        %v1119 = vadd.f32 %v958, %v1118
        %v1120 = vpop.f32.mrb[0].mxu0
        %v1121 = vpop.f32.mrb[0].mxu0
        %v1122 = vadd.f32 %v961, %v1121
        %v1123 = vpop.f32.mrb[0].mxu0
        %1124 = vmatprep.mubr.bf16.mxu0 0
        %1125 = vmatmul.mubr.bf16.gmra.mrb[0].mxu0 %v658
        %v1126 = vpop.f32.mrb[0].mxu0
        %v1127 = vadd.f32 %v966, %v1126
        %v1128 = vpop.f32.mrb[0].mxu0
        %v1129 = vpop.f32.mrb[0].mxu0
        %v1130 = vadd.f32 %v969, %v1129
        %v1131 = vpop.f32.mrb[0].mxu0
        %1132 = vmatprep.mubr.bf16.mxu0 0
        %1133 = vmatmul.mubr.bf16.gmra.mrb[0].mxu0 %v661
        %v1134 = vpop.f32.mrb[0].mxu0
        %v1135 = vadd.f32 %v974, %v1134
        %v1136 = vpop.f32.mrb[0].mxu0
        %v1137 = vpop.f32.mrb[0].mxu0
        %v1138 = vadd.f32 %v977, %v1137
        %v1139 = vpop.f32.mrb[0].mxu0
        %1140 = vmatprep.mubr.bf16.mxu0 0
        %1141 = vmatmul.mubr.bf16.gmra.mrb[0].mxu0 %v664
        %v1142 = vpop.f32.mrb[0].mxu0
        %v1143 = vadd.f32 %v982, %v1142
        %v1144 = vpop.f32.mrb[0].mxu0
        %v1145 = vpop.f32.mrb[0].mxu0
        %v1146 = vadd.f32 %v985, %v1145
        %v1147 = vpop.f32.mrb[0].mxu0
        %1148 = vmatprep.mubr.bf16.mxu0 0
        %1149 = vmatmul.mubr.bf16.gmra.mrb[0].mxu0 %v667
        %v1150 = vpop.f32.mrb[0].mxu0
        %v1151 = vadd.f32 %v990, %v1150
        %v1152 = vpop.f32.mrb[0].mxu0
        %v1153 = vpop.f32.mrb[0].mxu0
        %v1154 = vadd.f32 %v993, %v1153
        %v1155 = vpop.f32.mrb[0].mxu0
        %1156 = vmatprep.mubr.bf16.mxu0 0
        %1157 = vmatmul.mubr.bf16.gmra.mrb[0].mxu0 %v670
        %v1158 = vpop.f32.mrb[0].mxu0
        %v1159 = vadd.f32 %v998, %v1158
        %v1160 = vpop.f32.mrb[0].mxu0
        %v1161 = vpop.f32.mrb[0].mxu0
        %v1162 = vadd.f32 %v1001, %v1161
        %v1163 = vpop.f32.mrb[0].mxu0
        %1164 = vmatprep.mubr.bf16.mxu0 0
        %1165 = vmatmul.mubr.bf16.gmra.mrb[0].mxu0 %v673
        %v1166 = vpop.f32.mrb[0].mxu0
        %v1167 = vadd.f32 %v1006, %v1166
        %v1168 = vpop.f32.mrb[0].mxu0
        %v1169 = vpop.f32.mrb[0].mxu0
        %v1170 = vadd.f32 %v1009, %v1169
        %v1171 = vpop.f32.mrb[0].mxu0
        %1172 = vmatprep.mubr.bf16.mxu0 0
        %1173 = vmatmul.mubr.bf16.gmra.mrb[0].mxu0 %v676
        %v1174 = vpop.f32.mrb[0].mxu0
        %v1175 = vadd.f32 %v1014, %v1174
        %v1176 = vpop.f32.mrb[0].mxu0
        %v1177 = vpop.f32.mrb[0].mxu0
        %v1178 = vadd.f32 %v1017, %v1177
        %v1179 = vpop.f32.mrb[0].mxu0
        %1180 = vmatprep.mubr.bf16.mxu0 0
        %1181 = vmatmul.mubr.bf16.gmra.mrb[0].mxu0 %v679
        %v1182 = vpop.f32.mrb[0].mxu0
        %v1183 = vadd.f32 %v1022, %v1182
        %v1184 = vpop.f32.mrb[0].mxu0
        %v1185 = vpop.f32.mrb[0].mxu0
        %v1186 = vadd.f32 %v1025, %v1185
        %v1187 = vpop.f32.mrb[0].mxu0
        %1188 = vmatprep.mubr.bf16.mxu0 0
        %1189 = vmatmul.mubr.bf16.gmra.mrb[0].mxu0 %v682
        %v1190 = vpop.f32.mrb[0].mxu0
        %v1191 = vadd.f32 %v1030, %v1190
        %v1192 = vpop.f32.mrb[0].mxu0
        %v1193 = vpop.f32.mrb[0].mxu0
        %v1194 = vadd.f32 %v1033, %v1193
        %v1195 = vpop.f32.mrb[0].mxu0
        %1196 = vdwg.mxu0
        %1197 = vst [vmem:[#allocation4] sm:$0xff] %v1071
        %1198 = vst [vmem:[#allocation4 + $0x8] sm:$0xff] %v1074
        %1199 = vst [vmem:[#allocation4 + $0x10] sm:$0xff] %v1079
        %1200 = vst [vmem:[#allocation4 + $0x18] sm:$0xff] %v1082
        %1201 = vst [vmem:[#allocation4 + $0x20] sm:$0xff] %v1087
        %1202 = vst [vmem:[#allocation4 + $0x28] sm:$0xff] %v1090
        %1203 = vst [vmem:[#allocation4 + $0x30] sm:$0xff] %v1095
        %1204 = vst [vmem:[#allocation4 + $0x38] sm:$0xff] %v1098
        %1205 = vst [vmem:[#allocation4 + $0x40] sm:$0xff] %v1103
        %1206 = vst [vmem:[#allocation4 + $0x48] sm:$0xff] %v1106
        %1207 = vst [vmem:[#allocation4 + $0x50] sm:$0xff] %v1111
        %1208 = vst [vmem:[#allocation4 + $0x58] sm:$0xff] %v1114
        %1209 = vst [vmem:[#allocation4 + $0x60] sm:$0xff] %v1119
        %1210 = vst [vmem:[#allocation4 + $0x68] sm:$0xff] %v1122
        %1211 = vst [vmem:[#allocation4 + $0x70] sm:$0xff] %v1127
        %1212 = vst [vmem:[#allocation4 + $0x78] sm:$0xff] %v1130
        %1213 = vst [vmem:[#allocation4 + $0x80] sm:$0xff] %v1135
        %1214 = vst [vmem:[#allocation4 + $0x88] sm:$0xff] %v1138
        %1215 = vst [vmem:[#allocation4 + $0x90] sm:$0xff] %v1143
        %1216 = vst [vmem:[#allocation4 + $0x98] sm:$0xff] %v1146
        %1217 = vst [vmem:[#allocation4 + $0xa0] sm:$0xff] %v1151
        %1218 = vst [vmem:[#allocation4 + $0xa8] sm:$0xff] %v1154
        %1219 = vst [vmem:[#allocation4 + $0xb0] sm:$0xff] %v1159
        %1220 = vst [vmem:[#allocation4 + $0xb8] sm:$0xff] %v1162
        %1221 = vst [vmem:[#allocation4 + $0xc0] sm:$0xff] %v1167
        %1222 = vst [vmem:[#allocation4 + $0xc8] sm:$0xff] %v1170
        %1223 = vst [vmem:[#allocation4 + $0xd0] sm:$0xff] %v1175
        %1224 = vst [vmem:[#allocation4 + $0xd8] sm:$0xff] %v1178
        %1225 = vst [vmem:[#allocation4 + $0xe0] sm:$0xff] %v1183
        %1226 = vst [vmem:[#allocation4 + $0xe8] sm:$0xff] %v1186
        %1227 = vst [vmem:[#allocation4 + $0xf0] sm:$0xff] %v1191
        %1228 = vst [vmem:[#allocation4 + $0xf8] sm:$0xff] %v1194
        %v1229 = vld [vmem:[%s586] sm:$0xff]
        %v1230 = vld [vmem:[%s586 + $0x8] sm:$0xff]
        %v1231 = vld [vmem:[%s586 + $0x10] sm:$0xff]
        %v1232 = vld [vmem:[%s586 + $0x18] sm:$0xff]
        %v1233 = vld [vmem:[%s586 + $0x20] sm:$0xff]
        %v1234 = vld [vmem:[%s586 + $0x28] sm:$0xff]
        %v1235 = vld [vmem:[%s586 + $0x30] sm:$0xff]
        %v1236 = vld [vmem:[%s586 + $0x38] sm:$0xff]
        %v1237 = vld [vmem:[%s586 + $0x40] sm:$0xff]
        %v1238 = vld [vmem:[%s586 + $0x48] sm:$0xff]
        %v1239 = vld [vmem:[%s586 + $0x50] sm:$0xff]
        %v1240 = vld [vmem:[%s586 + $0x58] sm:$0xff]
        %v1241 = vld [vmem:[%s586 + $0x60] sm:$0xff]
        %v1242 = vld [vmem:[%s586 + $0x68] sm:$0xff]
        %v1243 = vld [vmem:[%s586 + $0x70] sm:$0xff]
        %v1244 = vld [vmem:[%s586 + $0x78] sm:$0xff]
        %v1245 = vld [vmem:[%s586 + $0x80] sm:$0xff]
        %v1246 = vld [vmem:[%s586 + $0x88] sm:$0xff]
        %v1247 = vld [vmem:[%s586 + $0x90] sm:$0xff]
        %v1248 = vld [vmem:[%s586 + $0x98] sm:$0xff]
        %v1249 = vld [vmem:[%s586 + $0xa0] sm:$0xff]
        %v1250 = vld [vmem:[%s586 + $0xa8] sm:$0xff]
        %v1251 = vld [vmem:[%s586 + $0xb0] sm:$0xff]
        %v1252 = vld [vmem:[%s586 + $0xb8] sm:$0xff]
        %v1253 = vld [vmem:[%s586 + $0xc0] sm:$0xff]
        %v1254 = vld [vmem:[%s586 + $0xc8] sm:$0xff]
        %v1255 = vld [vmem:[%s586 + $0xd0] sm:$0xff]
        %v1256 = vld [vmem:[%s586 + $0xd8] sm:$0xff]
        %v1257 = vld [vmem:[%s586 + $0xe0] sm:$0xff]
        %v1258 = vld [vmem:[%s586 + $0xe8] sm:$0xff]
        %v1259 = vld [vmem:[%s586 + $0xf0] sm:$0xff]
        %v1260 = vld [vmem:[%s586 + $0xf8] sm:$0xff]
        %v1261 = vld [vmem:[%s586 + $0x100] sm:$0xff]
        %v1262 = vld [vmem:[%s586 + $0x108] sm:$0xff]
        %v1263 = vld [vmem:[%s586 + $0x110] sm:$0xff]
        %v1264 = vld [vmem:[%s586 + $0x118] sm:$0xff]
        %v1265 = vld [vmem:[%s586 + $0x120] sm:$0xff]
        %v1266 = vld [vmem:[%s586 + $0x128] sm:$0xff]
        %v1267 = vld [vmem:[%s586 + $0x130] sm:$0xff]
        %v1268 = vld [vmem:[%s586 + $0x138] sm:$0xff]
        %v1269 = vld [vmem:[%s586 + $0x140] sm:$0xff]
        %v1270 = vld [vmem:[%s586 + $0x148] sm:$0xff]
        %v1271 = vld [vmem:[%s586 + $0x150] sm:$0xff]
        %v1272 = vld [vmem:[%s586 + $0x158] sm:$0xff]
        %v1273 = vld [vmem:[%s586 + $0x160] sm:$0xff]
        %v1274 = vld [vmem:[%s586 + $0x168] sm:$0xff]
        %v1275 = vld [vmem:[%s586 + $0x170] sm:$0xff]
        %v1276 = vld [vmem:[%s586 + $0x178] sm:$0xff]
        %s1277 = scalar_lea.vmem [#allocation8], 192
        %v1278 = vld [vmem:[%s1277] sm:$0xf]
        %v1279 = vld [vmem:[%s1277 + $0x4] sm:$0xf]
        %v1280 = vld [vmem:[%s1277 + $0x8] sm:$0xf]
        %v1281 = vld [vmem:[%s1277 + $0xc] sm:$0xf]
        %v1282 = vld [vmem:[%s1277 + $0x10] sm:$0xf]
        %v1283 = vld [vmem:[%s1277 + $0x14] sm:$0xf]
        %v1284 = vld [vmem:[%s1277 + $0x18] sm:$0xf]
        %v1285 = vld [vmem:[%s1277 + $0x1c] sm:$0xf]
        %v1286 = vld [vmem:[%s1277 + $0x20] sm:$0xf]
        %v1287 = vld [vmem:[%s1277 + $0x24] sm:$0xf]
        %v1288 = vld [vmem:[%s1277 + $0x28] sm:$0xf]
        %v1289 = vld [vmem:[%s1277 + $0x2c] sm:$0xf]
        %v1290 = vld [vmem:[%s1277 + $0x30] sm:$0xf]
        %v1291 = vld [vmem:[%s1277 + $0x34] sm:$0xf]
        %v1292 = vld [vmem:[%s1277 + $0x38] sm:$0xf]
        %v1293 = vld [vmem:[%s1277 + $0x3c] sm:$0xf]
        %v1294 = vld [vmem:[%s1277 + $0x40] sm:$0xf]
        %v1295 = vld [vmem:[%s1277 + $0x44] sm:$0xf]
        %v1296 = vld [vmem:[%s1277 + $0x48] sm:$0xf]
        %v1297 = vld [vmem:[%s1277 + $0x4c] sm:$0xf]
        %v1298 = vld [vmem:[%s1277 + $0x50] sm:$0xf]
        %v1299 = vld [vmem:[%s1277 + $0x54] sm:$0xf]
        %v1300 = vld [vmem:[%s1277 + $0x58] sm:$0xf]
        %v1301 = vld [vmem:[%s1277 + $0x5c] sm:$0xf]
        %v1302 = vld [vmem:[%s1277 + $0x60] sm:$0xf]
        %v1303 = vld [vmem:[%s1277 + $0x64] sm:$0xf]
        %v1304 = vld [vmem:[%s1277 + $0x68] sm:$0xf]
        %v1305 = vld [vmem:[%s1277 + $0x6c] sm:$0xf]
        %v1306 = vld [vmem:[%s1277 + $0x70] sm:$0xf]
        %v1307 = vld [vmem:[%s1277 + $0x74] sm:$0xf]
        %v1308 = vld [vmem:[%s1277 + $0x78] sm:$0xf]
        %v1309 = vld [vmem:[%s1277 + $0x7c] sm:$0xf]
        %v1310 = vld [vmem:[%s1277 + $0x80] sm:$0xf]
        %v1311 = vld [vmem:[%s1277 + $0x84] sm:$0xf]
        %v1312 = vld [vmem:[%s1277 + $0x88] sm:$0xf]
        %v1313 = vld [vmem:[%s1277 + $0x8c] sm:$0xf]
        %v1314 = vld [vmem:[%s1277 + $0x90] sm:$0xf]
        %v1315 = vld [vmem:[%s1277 + $0x94] sm:$0xf]
        %v1316 = vld [vmem:[%s1277 + $0x98] sm:$0xf]
        %v1317 = vld [vmem:[%s1277 + $0x9c] sm:$0xf]
        %v1318 = vld [vmem:[%s1277 + $0xa0] sm:$0xf]
        %v1319 = vld [vmem:[%s1277 + $0xa4] sm:$0xf]
        %v1320 = vld [vmem:[%s1277 + $0xa8] sm:$0xf]
        %v1321 = vld [vmem:[%s1277 + $0xac] sm:$0xf]
        %v1322 = vld [vmem:[%s1277 + $0xb0] sm:$0xf]
        %v1323 = vld [vmem:[%s1277 + $0xb4] sm:$0xf]
        %v1324 = vld [vmem:[%s1277 + $0xb8] sm:$0xf]
        %v1325 = vld [vmem:[%s1277 + $0xbc] sm:$0xf]
        %v1374 = vunpack.c.l.b16 %v1278
        %v1375 = vunpack.c.l.b16 %v1279
        %v1376 = vunpack.c.l.b16 %v1280
        %v1377 = vunpack.c.l.b16 %v1281
        %v1378 = vunpack.c.l.b16 %v1282
        %v1379 = vunpack.c.l.b16 %v1283
        %v1380 = vunpack.c.l.b16 %v1284
        %v1381 = vunpack.c.l.b16 %v1285
        %v1382 = vunpack.c.l.b16 %v1286
        %v1383 = vunpack.c.l.b16 %v1287
        %v1384 = vunpack.c.l.b16 %v1288
        %v1385 = vunpack.c.l.b16 %v1289
        %v1386 = vunpack.c.l.b16 %v1290
        %v1387 = vunpack.c.l.b16 %v1291
        %v1388 = vunpack.c.l.b16 %v1292
        %v1389 = vunpack.c.l.b16 %v1293
        %v1390 = vunpack.c.l.b16 %v1294
        %v1391 = vunpack.c.l.b16 %v1295
        %v1392 = vunpack.c.l.b16 %v1296
        %v1393 = vunpack.c.l.b16 %v1297
        %v1394 = vunpack.c.l.b16 %v1298
        %v1395 = vunpack.c.l.b16 %v1299
        %v1396 = vunpack.c.l.b16 %v1300
        %v1397 = vunpack.c.l.b16 %v1301
        %v1398 = vunpack.c.l.b16 %v1302
        %v1399 = vunpack.c.l.b16 %v1303
        %v1400 = vunpack.c.l.b16 %v1304
        %v1401 = vunpack.c.l.b16 %v1305
        %v1402 = vunpack.c.l.b16 %v1306
        %v1403 = vunpack.c.l.b16 %v1307
        %v1404 = vunpack.c.l.b16 %v1308
        %v1405 = vunpack.c.l.b16 %v1309
        %v1406 = vunpack.c.l.b16 %v1310
        %v1407 = vunpack.c.l.b16 %v1311
        %v1408 = vunpack.c.l.b16 %v1312
        %v1409 = vunpack.c.l.b16 %v1313
        %v1410 = vunpack.c.l.b16 %v1314
        %v1411 = vunpack.c.l.b16 %v1315
        %v1412 = vunpack.c.l.b16 %v1316
        %v1413 = vunpack.c.l.b16 %v1317
        %v1414 = vunpack.c.l.b16 %v1318
        %v1415 = vunpack.c.l.b16 %v1319
        %v1416 = vunpack.c.l.b16 %v1320
        %v1417 = vunpack.c.l.b16 %v1321
        %v1418 = vunpack.c.l.b16 %v1322
        %v1419 = vunpack.c.l.b16 %v1323
        %v1420 = vunpack.c.l.b16 %v1324
        %v1421 = vunpack.c.l.b16 %v1325
        %v1422 = vpack.c.b16 %v1375, %v1374
        %v1423 = vpack.c.b16 %v1377, %v1376
        %v1424 = vpack.c.b16 %v1379, %v1378
        %v1425 = vpack.c.b16 %v1381, %v1380
        %v1426 = vpack.c.b16 %v1383, %v1382
        %v1427 = vpack.c.b16 %v1385, %v1384
        %v1428 = vpack.c.b16 %v1387, %v1386
        %v1429 = vpack.c.b16 %v1389, %v1388
        %v1430 = vpack.c.b16 %v1391, %v1390
        %v1431 = vpack.c.b16 %v1393, %v1392
        %v1432 = vpack.c.b16 %v1395, %v1394
        %v1433 = vpack.c.b16 %v1397, %v1396
        %v1434 = vpack.c.b16 %v1399, %v1398
        %v1435 = vpack.c.b16 %v1401, %v1400
        %v1436 = vpack.c.b16 %v1403, %v1402
        %v1437 = vpack.c.b16 %v1405, %v1404
        %v1438 = vpack.c.b16 %v1407, %v1406
        %v1439 = vpack.c.b16 %v1409, %v1408
        %v1440 = vpack.c.b16 %v1411, %v1410
        %v1441 = vpack.c.b16 %v1413, %v1412
        %v1442 = vpack.c.b16 %v1415, %v1414
        %v1443 = vpack.c.b16 %v1417, %v1416
        %v1444 = vpack.c.b16 %v1419, %v1418
        %v1445 = vpack.c.b16 %v1421, %v1420
        %1470 = vmatprep.subr.bf16.mxu0 0
        %1471 = vmatpush1.bf16.msra.mxu0 %v1422
        %1472 = vmatprep.subr.bf16.mxu0 0
        %1473 = vmatpush1.bf16.msra.mxu0 %v1423
        %1474 = vmatprep.subr.bf16.mxu0 0
        %1475 = vmatpush1.bf16.msra.mxu0 %v1424
        %1476 = vmatprep.subr.bf16.mxu0 0
        %1477 = vmatpush1.bf16.msra.mxu0 %v1425
        %1478 = vmatprep.subr.bf16.mxu0 0
        %1479 = vmatpush1.bf16.msra.mxu0 %v1426
        %1480 = vmatprep.subr.bf16.mxu0 0
        %1481 = vmatpush1.bf16.msra.mxu0 %v1427
        %1482 = vmatprep.subr.bf16.mxu0 0
        %1483 = vmatpush1.bf16.msra.mxu0 %v1428
        %1484 = vmatprep.subr.bf16.mxu0 0
        %1485 = vmatpush1.bf16.msra.mxu0 %v1429
        %1486 = vmatprep.subr.bf16.mxu0 0
        %1487 = vmatpush1.bf16.msra.mxu0 %v1430
        %1488 = vmatprep.subr.bf16.mxu0 0
        %1489 = vmatpush1.bf16.msra.mxu0 %v1431
        %1490 = vmatprep.subr.bf16.mxu0 0
        %1491 = vmatpush1.bf16.msra.mxu0 %v1432
        %1492 = vmatprep.subr.bf16.mxu0 0
        %1493 = vmatpush1.bf16.msra.mxu0 %v1433
        %1494 = vmatprep.subr.bf16.mxu0 0
        %1495 = vmatpush1.bf16.msra.mxu0 %v1434
        %1496 = vmatprep.subr.bf16.mxu0 0
        %1497 = vmatpush1.bf16.msra.mxu0 %v1435
        %1498 = vmatprep.subr.bf16.mxu0 0
        %1499 = vmatpush1.bf16.msra.mxu0 %v1436
        %1500 = vmatprep.subr.bf16.mxu0 0
        %1501 = vmatpush1.bf16.msra.mxu0 %v1437
        %1502 = vmatprep.mubr.bf16.mxu0 %v1230
        %1503 = vmatmul.mubr.bf16.gmra.mrb[0].mxu0 %v1229
        %v1504 = vpop.f32.mrb[0].mxu0
        %v1505 = vadd.f32 0.0, %v1504
        %v1506 = vpop.f32.mrb[0].mxu0
        %v1507 = vpop.f32.mrb[0].mxu0
        %v1508 = vadd.f32 0.0, %v1507
        %v1509 = vpop.f32.mrb[0].mxu0
        %1510 = vmatprep.mubr.bf16.mxu0 %v1233
        %1511 = vmatmul.mubr.bf16.gmra.mrb[0].mxu0 %v1232
        %v1512 = vpop.f32.mrb[0].mxu0
        %v1513 = vadd.f32 0.0, %v1512
        %v1514 = vpop.f32.mrb[0].mxu0
        %v1515 = vpop.f32.mrb[0].mxu0
        %v1516 = vadd.f32 0.0, %v1515
        %v1517 = vpop.f32.mrb[0].mxu0
        %1518 = vmatprep.mubr.bf16.mxu0 %v1236
        %1519 = vmatmul.mubr.bf16.gmra.mrb[0].mxu0 %v1235
        %v1520 = vpop.f32.mrb[0].mxu0
        %v1521 = vadd.f32 0.0, %v1520
        %v1522 = vpop.f32.mrb[0].mxu0
        %v1523 = vpop.f32.mrb[0].mxu0
        %v1524 = vadd.f32 0.0, %v1523
        %v1525 = vpop.f32.mrb[0].mxu0
        %1526 = vmatprep.mubr.bf16.mxu0 %v1239
        %1527 = vmatmul.mubr.bf16.gmra.mrb[0].mxu0 %v1238
        %v1528 = vpop.f32.mrb[0].mxu0
        %v1529 = vadd.f32 0.0, %v1528
        %v1530 = vpop.f32.mrb[0].mxu0
        %v1531 = vpop.f32.mrb[0].mxu0
        %v1532 = vadd.f32 0.0, %v1531
        %v1533 = vpop.f32.mrb[0].mxu0
        %1534 = vmatprep.mubr.bf16.mxu0 %v1242
        %1535 = vmatmul.mubr.bf16.gmra.mrb[0].mxu0 %v1241
        %v1536 = vpop.f32.mrb[0].mxu0
        %v1537 = vadd.f32 0.0, %v1536
        %v1538 = vpop.f32.mrb[0].mxu0
        %v1539 = vpop.f32.mrb[0].mxu0
        %v1540 = vadd.f32 0.0, %v1539
        %v1541 = vpop.f32.mrb[0].mxu0
        %1542 = vmatprep.mubr.bf16.mxu0 %v1245
        %1543 = vmatmul.mubr.bf16.gmra.mrb[0].mxu0 %v1244
        %v1544 = vpop.f32.mrb[0].mxu0
        %v1545 = vadd.f32 0.0, %v1544
        %v1546 = vpop.f32.mrb[0].mxu0
        %v1547 = vpop.f32.mrb[0].mxu0
        %v1548 = vadd.f32 0.0, %v1547
        %v1549 = vpop.f32.mrb[0].mxu0
        %1550 = vmatprep.mubr.bf16.mxu0 %v1248
        %1551 = vmatmul.mubr.bf16.gmra.mrb[0].mxu0 %v1247
        %v1552 = vpop.f32.mrb[0].mxu0
        %v1553 = vadd.f32 0.0, %v1552
        %v1554 = vpop.f32.mrb[0].mxu0
        %v1555 = vpop.f32.mrb[0].mxu0
        %v1556 = vadd.f32 0.0, %v1555
        %v1557 = vpop.f32.mrb[0].mxu0
        %1558 = vmatprep.mubr.bf16.mxu0 %v1251
        %1559 = vmatmul.mubr.bf16.gmra.mrb[0].mxu0 %v1250
        %v1560 = vpop.f32.mrb[0].mxu0
        %v1561 = vadd.f32 0.0, %v1560
        %v1562 = vpop.f32.mrb[0].mxu0
        %v1563 = vpop.f32.mrb[0].mxu0
        %v1564 = vadd.f32 0.0, %v1563
        %v1565 = vpop.f32.mrb[0].mxu0
        %1566 = vmatprep.mubr.bf16.mxu0 %v1254
        %1567 = vmatmul.mubr.bf16.gmra.mrb[0].mxu0 %v1253
        %v1568 = vpop.f32.mrb[0].mxu0
        %v1569 = vadd.f32 0.0, %v1568
        %v1570 = vpop.f32.mrb[0].mxu0
        %v1571 = vpop.f32.mrb[0].mxu0
        %v1572 = vadd.f32 0.0, %v1571
        %v1573 = vpop.f32.mrb[0].mxu0
        %1574 = vmatprep.mubr.bf16.mxu0 %v1257
        %1575 = vmatmul.mubr.bf16.gmra.mrb[0].mxu0 %v1256
        %v1576 = vpop.f32.mrb[0].mxu0
        %v1577 = vadd.f32 0.0, %v1576
        %v1578 = vpop.f32.mrb[0].mxu0
        %v1579 = vpop.f32.mrb[0].mxu0
        %v1580 = vadd.f32 0.0, %v1579
        %v1581 = vpop.f32.mrb[0].mxu0
        %1582 = vmatprep.mubr.bf16.mxu0 %v1260
        %1583 = vmatmul.mubr.bf16.gmra.mrb[0].mxu0 %v1259
        %v1584 = vpop.f32.mrb[0].mxu0
        %v1585 = vadd.f32 0.0, %v1584
        %v1586 = vpop.f32.mrb[0].mxu0
        %v1587 = vpop.f32.mrb[0].mxu0
        %v1588 = vadd.f32 0.0, %v1587
        %v1589 = vpop.f32.mrb[0].mxu0
        %1590 = vmatprep.mubr.bf16.mxu0 %v1263
        %1591 = vmatmul.mubr.bf16.gmra.mrb[0].mxu0 %v1262
        %v1592 = vpop.f32.mrb[0].mxu0
        %v1593 = vadd.f32 0.0, %v1592
        %v1594 = vpop.f32.mrb[0].mxu0
        %v1595 = vpop.f32.mrb[0].mxu0
        %v1596 = vadd.f32 0.0, %v1595
        %v1597 = vpop.f32.mrb[0].mxu0
        %1598 = vmatprep.mubr.bf16.mxu0 %v1266
        %1599 = vmatmul.mubr.bf16.gmra.mrb[0].mxu0 %v1265
        %v1600 = vpop.f32.mrb[0].mxu0
        %v1601 = vadd.f32 0.0, %v1600
        %v1602 = vpop.f32.mrb[0].mxu0
        %v1603 = vpop.f32.mrb[0].mxu0
        %v1604 = vadd.f32 0.0, %v1603
        %v1605 = vpop.f32.mrb[0].mxu0
        %1606 = vmatprep.mubr.bf16.mxu0 %v1269
        %1607 = vmatmul.mubr.bf16.gmra.mrb[0].mxu0 %v1268
        %v1608 = vpop.f32.mrb[0].mxu0
        %v1609 = vadd.f32 0.0, %v1608
        %v1610 = vpop.f32.mrb[0].mxu0
        %v1611 = vpop.f32.mrb[0].mxu0
        %v1612 = vadd.f32 0.0, %v1611
        %v1613 = vpop.f32.mrb[0].mxu0
        %1614 = vmatprep.mubr.bf16.mxu0 %v1272
        %1615 = vmatmul.mubr.bf16.gmra.mrb[0].mxu0 %v1271
        %v1616 = vpop.f32.mrb[0].mxu0
        %v1617 = vadd.f32 0.0, %v1616
        %v1618 = vpop.f32.mrb[0].mxu0
        %v1619 = vpop.f32.mrb[0].mxu0
        %v1620 = vadd.f32 0.0, %v1619
        %v1621 = vpop.f32.mrb[0].mxu0
        %1622 = vmatprep.mubr.bf16.mxu0 %v1275
        %1623 = vmatmul.mubr.bf16.gmra.mrb[0].mxu0 %v1274
        %v1624 = vpop.f32.mrb[0].mxu0
        %v1625 = vadd.f32 0.0, %v1624
        %v1626 = vpop.f32.mrb[0].mxu0
        %v1627 = vpop.f32.mrb[0].mxu0
        %v1628 = vadd.f32 0.0, %v1627
        %v1629 = vpop.f32.mrb[0].mxu0
        %1630 = vdwg.mxu0
        %1631 = vmatprep.subr.bf16.mxu0 0
        %1632 = vmatpush1.bf16.msra.mxu0 %v1438
        %1633 = vmatprep.subr.bf16.mxu0 0
        %1634 = vmatpush1.bf16.msra.mxu0 %v1439
        %1635 = vmatprep.subr.bf16.mxu0 0
        %1636 = vmatpush1.bf16.msra.mxu0 %v1440
        %1637 = vmatprep.subr.bf16.mxu0 0
        %1638 = vmatpush1.bf16.msra.mxu0 %v1441
        %1639 = vmatprep.subr.bf16.mxu0 0
        %1640 = vmatpush1.bf16.msra.mxu0 %v1442
        %1641 = vmatprep.subr.bf16.mxu0 0
        %1642 = vmatpush1.bf16.msra.mxu0 %v1443
        %1643 = vmatprep.subr.bf16.mxu0 0
        %1644 = vmatpush1.bf16.msra.mxu0 %v1444
        %1645 = vmatprep.subr.bf16.mxu0 0
        %1646 = vmatpush1.bf16.msra.mxu0 %v1445
        %1647 = vmatprep.subr.bf16.mxu0 0
        %1648 = vmatpush1.bf16.msra.mxu0 0
        %1649 = vmatprep.subr.bf16.mxu0 0
        %1650 = vmatpush1.bf16.msra.mxu0 0
        %1651 = vmatprep.subr.bf16.mxu0 0
        %1652 = vmatpush1.bf16.msra.mxu0 0
        %1653 = vmatprep.subr.bf16.mxu0 0
        %1654 = vmatpush1.bf16.msra.mxu0 0
        %1655 = vmatprep.subr.bf16.mxu0 0
        %1656 = vmatpush1.bf16.msra.mxu0 0
        %1657 = vmatprep.subr.bf16.mxu0 0
        %1658 = vmatpush1.bf16.msra.mxu0 0
        %1659 = vmatprep.subr.bf16.mxu0 0
        %1660 = vmatpush1.bf16.msra.mxu0 0
        %1661 = vmatprep.subr.bf16.mxu0 0
        %1662 = vmatpush1.bf16.msra.mxu0 0
        %1663 = vmatprep.mubr.bf16.mxu0 0
        %1664 = vmatmul.mubr.bf16.gmra.mrb[0].mxu0 %v1231
        %v1665 = vpop.f32.mrb[0].mxu0
        %v1666 = vadd.f32 %v1505, %v1665
        %v1667 = vpop.f32.mrb[0].mxu0
        %v1668 = vpop.f32.mrb[0].mxu0
        %v1669 = vadd.f32 %v1508, %v1668
        %v1670 = vpop.f32.mrb[0].mxu0
        %1671 = vmatprep.mubr.bf16.mxu0 0
        %1672 = vmatmul.mubr.bf16.gmra.mrb[0].mxu0 %v1234
        %v1673 = vpop.f32.mrb[0].mxu0
        %v1674 = vadd.f32 %v1513, %v1673
        %v1675 = vpop.f32.mrb[0].mxu0
        %v1676 = vpop.f32.mrb[0].mxu0
        %v1677 = vadd.f32 %v1516, %v1676
        %v1678 = vpop.f32.mrb[0].mxu0
        %1679 = vmatprep.mubr.bf16.mxu0 0
        %1680 = vmatmul.mubr.bf16.gmra.mrb[0].mxu0 %v1237
        %v1681 = vpop.f32.mrb[0].mxu0
        %v1682 = vadd.f32 %v1521, %v1681
        %v1683 = vpop.f32.mrb[0].mxu0
        %v1684 = vpop.f32.mrb[0].mxu0
        %v1685 = vadd.f32 %v1524, %v1684
        %v1686 = vpop.f32.mrb[0].mxu0
        %1687 = vmatprep.mubr.bf16.mxu0 0
        %1688 = vmatmul.mubr.bf16.gmra.mrb[0].mxu0 %v1240
        %v1689 = vpop.f32.mrb[0].mxu0
        %v1690 = vadd.f32 %v1529, %v1689
        %v1691 = vpop.f32.mrb[0].mxu0
        %v1692 = vpop.f32.mrb[0].mxu0
        %v1693 = vadd.f32 %v1532, %v1692
        %v1694 = vpop.f32.mrb[0].mxu0
        %1695 = vmatprep.mubr.bf16.mxu0 0
        %1696 = vmatmul.mubr.bf16.gmra.mrb[0].mxu0 %v1243
        %v1697 = vpop.f32.mrb[0].mxu0
        %v1698 = vadd.f32 %v1537, %v1697
        %v1699 = vpop.f32.mrb[0].mxu0
        %v1700 = vpop.f32.mrb[0].mxu0
        %v1701 = vadd.f32 %v1540, %v1700
        %v1702 = vpop.f32.mrb[0].mxu0
        %1703 = vmatprep.mubr.bf16.mxu0 0
        %1704 = vmatmul.mubr.bf16.gmra.mrb[0].mxu0 %v1246
        %v1705 = vpop.f32.mrb[0].mxu0
        %v1706 = vadd.f32 %v1545, %v1705
        %v1707 = vpop.f32.mrb[0].mxu0
        %v1708 = vpop.f32.mrb[0].mxu0
        %v1709 = vadd.f32 %v1548, %v1708
        %v1710 = vpop.f32.mrb[0].mxu0
        %1711 = vmatprep.mubr.bf16.mxu0 0
        %1712 = vmatmul.mubr.bf16.gmra.mrb[0].mxu0 %v1249
        %v1713 = vpop.f32.mrb[0].mxu0
        %v1714 = vadd.f32 %v1553, %v1713
        %v1715 = vpop.f32.mrb[0].mxu0
        %v1716 = vpop.f32.mrb[0].mxu0
        %v1717 = vadd.f32 %v1556, %v1716
        %v1718 = vpop.f32.mrb[0].mxu0
        %1719 = vmatprep.mubr.bf16.mxu0 0
        %1720 = vmatmul.mubr.bf16.gmra.mrb[0].mxu0 %v1252
        %v1721 = vpop.f32.mrb[0].mxu0
        %v1722 = vadd.f32 %v1561, %v1721
        %v1723 = vpop.f32.mrb[0].mxu0
        %v1724 = vpop.f32.mrb[0].mxu0
        %v1725 = vadd.f32 %v1564, %v1724
        %v1726 = vpop.f32.mrb[0].mxu0
        %1727 = vmatprep.mubr.bf16.mxu0 0
        %1728 = vmatmul.mubr.bf16.gmra.mrb[0].mxu0 %v1255
        %v1729 = vpop.f32.mrb[0].mxu0
        %v1730 = vadd.f32 %v1569, %v1729
        %v1731 = vpop.f32.mrb[0].mxu0
        %v1732 = vpop.f32.mrb[0].mxu0
        %v1733 = vadd.f32 %v1572, %v1732
        %v1734 = vpop.f32.mrb[0].mxu0
        %1735 = vmatprep.mubr.bf16.mxu0 0
        %1736 = vmatmul.mubr.bf16.gmra.mrb[0].mxu0 %v1258
        %v1737 = vpop.f32.mrb[0].mxu0
        %v1738 = vadd.f32 %v1577, %v1737
        %v1739 = vpop.f32.mrb[0].mxu0
        %v1740 = vpop.f32.mrb[0].mxu0
        %v1741 = vadd.f32 %v1580, %v1740
        %v1742 = vpop.f32.mrb[0].mxu0
        %1743 = vmatprep.mubr.bf16.mxu0 0
        %1744 = vmatmul.mubr.bf16.gmra.mrb[0].mxu0 %v1261
        %v1745 = vpop.f32.mrb[0].mxu0
        %v1746 = vadd.f32 %v1585, %v1745
        %v1747 = vpop.f32.mrb[0].mxu0
        %v1748 = vpop.f32.mrb[0].mxu0
        %v1749 = vadd.f32 %v1588, %v1748
        %v1750 = vpop.f32.mrb[0].mxu0
        %1751 = vmatprep.mubr.bf16.mxu0 0
        %1752 = vmatmul.mubr.bf16.gmra.mrb[0].mxu0 %v1264
        %v1753 = vpop.f32.mrb[0].mxu0
        %v1754 = vadd.f32 %v1593, %v1753
        %v1755 = vpop.f32.mrb[0].mxu0
        %v1756 = vpop.f32.mrb[0].mxu0
        %v1757 = vadd.f32 %v1596, %v1756
        %v1758 = vpop.f32.mrb[0].mxu0
        %1759 = vmatprep.mubr.bf16.mxu0 0
        %1760 = vmatmul.mubr.bf16.gmra.mrb[0].mxu0 %v1267
        %v1761 = vpop.f32.mrb[0].mxu0
        %v1762 = vadd.f32 %v1601, %v1761
        %v1763 = vpop.f32.mrb[0].mxu0
        %v1764 = vpop.f32.mrb[0].mxu0
        %v1765 = vadd.f32 %v1604, %v1764
        %v1766 = vpop.f32.mrb[0].mxu0
        %1767 = vmatprep.mubr.bf16.mxu0 0
        %1768 = vmatmul.mubr.bf16.gmra.mrb[0].mxu0 %v1270
        %v1769 = vpop.f32.mrb[0].mxu0
        %v1770 = vadd.f32 %v1609, %v1769
        %v1771 = vpop.f32.mrb[0].mxu0
        %v1772 = vpop.f32.mrb[0].mxu0
        %v1773 = vadd.f32 %v1612, %v1772
        %v1774 = vpop.f32.mrb[0].mxu0
        %1775 = vmatprep.mubr.bf16.mxu0 0
        %1776 = vmatmul.mubr.bf16.gmra.mrb[0].mxu0 %v1273
        %v1777 = vpop.f32.mrb[0].mxu0
        %v1778 = vadd.f32 %v1617, %v1777
        %v1779 = vpop.f32.mrb[0].mxu0
        %v1780 = vpop.f32.mrb[0].mxu0
        %v1781 = vadd.f32 %v1620, %v1780
        %v1782 = vpop.f32.mrb[0].mxu0
        %1783 = vmatprep.mubr.bf16.mxu0 0
        %1784 = vmatmul.mubr.bf16.gmra.mrb[0].mxu0 %v1276
        %v1785 = vpop.f32.mrb[0].mxu0
        %v1786 = vadd.f32 %v1625, %v1785
        %v1787 = vpop.f32.mrb[0].mxu0
        %v1788 = vpop.f32.mrb[0].mxu0
        %v1789 = vadd.f32 %v1628, %v1788
        %v1790 = vpop.f32.mrb[0].mxu0
        %1791 = vdwg.mxu0
        %v1792 = vld [vmem:[#allocation4] sm:$0xff]
        %v1793 = vld [vmem:[#allocation4 + $0x8] sm:$0xff]
        %v1794 = vld [vmem:[#allocation4 + $0x10] sm:$0xff]
        %v1795 = vld [vmem:[#allocation4 + $0x18] sm:$0xff]
        %v1796 = vld [vmem:[#allocation4 + $0x20] sm:$0xff]
        %v1797 = vld [vmem:[#allocation4 + $0x28] sm:$0xff]
        %v1798 = vld [vmem:[#allocation4 + $0x30] sm:$0xff]
        %v1799 = vld [vmem:[#allocation4 + $0x38] sm:$0xff]
        %v1800 = vld [vmem:[#allocation4 + $0x40] sm:$0xff]
        %v1801 = vld [vmem:[#allocation4 + $0x48] sm:$0xff]
        %v1802 = vld [vmem:[#allocation4 + $0x50] sm:$0xff]
        %v1803 = vld [vmem:[#allocation4 + $0x58] sm:$0xff]
        %v1804 = vld [vmem:[#allocation4 + $0x60] sm:$0xff]
        %v1805 = vld [vmem:[#allocation4 + $0x68] sm:$0xff]
        %v1806 = vld [vmem:[#allocation4 + $0x70] sm:$0xff]
        %v1807 = vld [vmem:[#allocation4 + $0x78] sm:$0xff]
        %v1808 = vld [vmem:[#allocation4 + $0x80] sm:$0xff]
        %v1809 = vld [vmem:[#allocation4 + $0x88] sm:$0xff]
        %v1810 = vld [vmem:[#allocation4 + $0x90] sm:$0xff]
        %v1811 = vld [vmem:[#allocation4 + $0x98] sm:$0xff]
        %v1812 = vld [vmem:[#allocation4 + $0xa0] sm:$0xff]
        %v1813 = vld [vmem:[#allocation4 + $0xa8] sm:$0xff]
        %v1814 = vld [vmem:[#allocation4 + $0xb0] sm:$0xff]
        %v1815 = vld [vmem:[#allocation4 + $0xb8] sm:$0xff]
        %v1816 = vld [vmem:[#allocation4 + $0xc0] sm:$0xff]
        %v1817 = vld [vmem:[#allocation4 + $0xc8] sm:$0xff]
        %v1818 = vld [vmem:[#allocation4 + $0xd0] sm:$0xff]
        %v1819 = vld [vmem:[#allocation4 + $0xd8] sm:$0xff]
        %v1820 = vld [vmem:[#allocation4 + $0xe0] sm:$0xff]
        %v1821 = vld [vmem:[#allocation4 + $0xe8] sm:$0xff]
        %v1822 = vld [vmem:[#allocation4 + $0xf0] sm:$0xff]
        %v1823 = vld [vmem:[#allocation4 + $0xf8] sm:$0xff]
        %v1824 = vadd.f32 %v1792, %v1666
        %v1825 = vadd.f32 %v1793, %v1669
        %v1826 = vadd.f32 %v1794, %v1674
        %v1827 = vadd.f32 %v1795, %v1677
        %v1828 = vadd.f32 %v1796, %v1682
        %v1829 = vadd.f32 %v1797, %v1685
        %v1830 = vadd.f32 %v1798, %v1690
        %v1831 = vadd.f32 %v1799, %v1693
        %v1832 = vadd.f32 %v1800, %v1698
        %v1833 = vadd.f32 %v1801, %v1701
        %v1834 = vadd.f32 %v1802, %v1706
        %v1835 = vadd.f32 %v1803, %v1709
        %v1836 = vadd.f32 %v1804, %v1714
        %v1837 = vadd.f32 %v1805, %v1717
        %v1838 = vadd.f32 %v1806, %v1722
        %v1839 = vadd.f32 %v1807, %v1725
        %v1840 = vadd.f32 %v1808, %v1730
        %v1841 = vadd.f32 %v1809, %v1733
        %v1842 = vadd.f32 %v1810, %v1738
        %v1843 = vadd.f32 %v1811, %v1741
        %v1844 = vadd.f32 %v1812, %v1746
        %v1845 = vadd.f32 %v1813, %v1749
        %v1846 = vadd.f32 %v1814, %v1754
        %v1847 = vadd.f32 %v1815, %v1757
        %v1848 = vadd.f32 %v1816, %v1762
        %v1849 = vadd.f32 %v1817, %v1765
        %v1850 = vadd.f32 %v1818, %v1770
        %v1851 = vadd.f32 %v1819, %v1773
        %v1852 = vadd.f32 %v1820, %v1778
        %v1853 = vadd.f32 %v1821, %v1781
        %v1854 = vadd.f32 %v1822, %v1786
        %v1855 = vadd.f32 %v1823, %v1789
        %1856 = vst [vmem:[#allocation4] sm:$0xff] %v1824
        %1857 = vst [vmem:[#allocation4 + $0x8] sm:$0xff] %v1825
        %1858 = vst [vmem:[#allocation4 + $0x10] sm:$0xff] %v1826
        %1859 = vst [vmem:[#allocation4 + $0x18] sm:$0xff] %v1827
        %1860 = vst [vmem:[#allocation4 + $0x20] sm:$0xff] %v1828
        %1861 = vst [vmem:[#allocation4 + $0x28] sm:$0xff] %v1829
        %1862 = vst [vmem:[#allocation4 + $0x30] sm:$0xff] %v1830
        %1863 = vst [vmem:[#allocation4 + $0x38] sm:$0xff] %v1831
        %1864 = vst [vmem:[#allocation4 + $0x40] sm:$0xff] %v1832
        %1865 = vst [vmem:[#allocation4 + $0x48] sm:$0xff] %v1833
        %1866 = vst [vmem:[#allocation4 + $0x50] sm:$0xff] %v1834
        %1867 = vst [vmem:[#allocation4 + $0x58] sm:$0xff] %v1835
        %1868 = vst [vmem:[#allocation4 + $0x60] sm:$0xff] %v1836
        %1869 = vst [vmem:[#allocation4 + $0x68] sm:$0xff] %v1837
        %1870 = vst [vmem:[#allocation4 + $0x70] sm:$0xff] %v1838
        %1871 = vst [vmem:[#allocation4 + $0x78] sm:$0xff] %v1839
        %1872 = vst [vmem:[#allocation4 + $0x80] sm:$0xff] %v1840
        %1873 = vst [vmem:[#allocation4 + $0x88] sm:$0xff] %v1841
        %1874 = vst [vmem:[#allocation4 + $0x90] sm:$0xff] %v1842
        %1875 = vst [vmem:[#allocation4 + $0x98] sm:$0xff] %v1843
        %1876 = vst [vmem:[#allocation4 + $0xa0] sm:$0xff] %v1844
        %1877 = vst [vmem:[#allocation4 + $0xa8] sm:$0xff] %v1845
        %1878 = vst [vmem:[#allocation4 + $0xb0] sm:$0xff] %v1846
        %1879 = vst [vmem:[#allocation4 + $0xb8] sm:$0xff] %v1847
        %1880 = vst [vmem:[#allocation4 + $0xc0] sm:$0xff] %v1848
        %1881 = vst [vmem:[#allocation4 + $0xc8] sm:$0xff] %v1849
        %1882 = vst [vmem:[#allocation4 + $0xd0] sm:$0xff] %v1850
        %1883 = vst [vmem:[#allocation4 + $0xd8] sm:$0xff] %v1851
        %1884 = vst [vmem:[#allocation4 + $0xe0] sm:$0xff] %v1852
        %1885 = vst [vmem:[#allocation4 + $0xe8] sm:$0xff] %v1853
        %1886 = vst [vmem:[#allocation4 + $0xf0] sm:$0xff] %v1854
        %1887 = vst [vmem:[#allocation4 + $0xf8] sm:$0xff] %v1855
        %s1888 = scalar_lea.vmem [#allocation2], 48
        %v1889 = vld [vmem:[%s1888] sm:$0xff]
        %v1890 = vld [vmem:[%s1888 + $0x8] sm:$0xff]
        %v1891 = vld [vmem:[%s1888 + $0x10] sm:$0xff]
        %v1892 = vld [vmem:[%s1888 + $0x18] sm:$0xff]
        %v1893 = vld [vmem:[%s1888 + $0x20] sm:$0xff]
        %v1894 = vld [vmem:[%s1888 + $0x28] sm:$0xff]
        %v1895 = vld [vmem:[%s1888 + $0x30] sm:$0xff]
        %v1896 = vld [vmem:[%s1888 + $0x38] sm:$0xff]
        %v1897 = vld [vmem:[%s1888 + $0x40] sm:$0xff]
        %v1898 = vld [vmem:[%s1888 + $0x48] sm:$0xff]
        %v1899 = vld [vmem:[%s1888 + $0x50] sm:$0xff]
        %v1900 = vld [vmem:[%s1888 + $0x58] sm:$0xff]
        %v1901 = vld [vmem:[%s1888 + $0x60] sm:$0xff]
        %v1902 = vld [vmem:[%s1888 + $0x68] sm:$0xff]
        %v1903 = vld [vmem:[%s1888 + $0x70] sm:$0xff]
        %v1904 = vld [vmem:[%s1888 + $0x78] sm:$0xff]
        %v1905 = vld [vmem:[%s1888 + $0x80] sm:$0xff]
        %v1906 = vld [vmem:[%s1888 + $0x88] sm:$0xff]
        %v1907 = vld [vmem:[%s1888 + $0x90] sm:$0xff]
        %v1908 = vld [vmem:[%s1888 + $0x98] sm:$0xff]
        %v1909 = vld [vmem:[%s1888 + $0xa0] sm:$0xff]
        %v1910 = vld [vmem:[%s1888 + $0xa8] sm:$0xff]
        %v1911 = vld [vmem:[%s1888 + $0xb0] sm:$0xff]
        %v1912 = vld [vmem:[%s1888 + $0xb8] sm:$0xff]
        %v1913 = vld [vmem:[%s1888 + $0xc0] sm:$0xff]
        %v1914 = vld [vmem:[%s1888 + $0xc8] sm:$0xff]
        %v1915 = vld [vmem:[%s1888 + $0xd0] sm:$0xff]
        %v1916 = vld [vmem:[%s1888 + $0xd8] sm:$0xff]
        %v1917 = vld [vmem:[%s1888 + $0xe0] sm:$0xff]
        %v1918 = vld [vmem:[%s1888 + $0xe8] sm:$0xff]
        %v1919 = vld [vmem:[%s1888 + $0xf0] sm:$0xff]
        %v1920 = vld [vmem:[%s1888 + $0xf8] sm:$0xff]
        %v1921 = vld [vmem:[%s1888 + $0x100] sm:$0xff]
        %v1922 = vld [vmem:[%s1888 + $0x108] sm:$0xff]
        %v1923 = vld [vmem:[%s1888 + $0x110] sm:$0xff]
        %v1924 = vld [vmem:[%s1888 + $0x118] sm:$0xff]
        %v1925 = vld [vmem:[%s1888 + $0x120] sm:$0xff]
        %v1926 = vld [vmem:[%s1888 + $0x128] sm:$0xff]
        %v1927 = vld [vmem:[%s1888 + $0x130] sm:$0xff]
        %v1928 = vld [vmem:[%s1888 + $0x138] sm:$0xff]
        %v1929 = vld [vmem:[%s1888 + $0x140] sm:$0xff]
        %v1930 = vld [vmem:[%s1888 + $0x148] sm:$0xff]
        %v1931 = vld [vmem:[%s1888 + $0x150] sm:$0xff]
        %v1932 = vld [vmem:[%s1888 + $0x158] sm:$0xff]
        %v1933 = vld [vmem:[%s1888 + $0x160] sm:$0xff]
        %v1934 = vld [vmem:[%s1888 + $0x168] sm:$0xff]
        %v1935 = vld [vmem:[%s1888 + $0x170] sm:$0xff]
        %v1936 = vld [vmem:[%s1888 + $0x178] sm:$0xff]
        %s1937 = scalar_lea.vmem [#allocation8], 384
        %v1938 = vld [vmem:[%s1937] sm:$0xf]
        %v1939 = vld [vmem:[%s1937 + $0x4] sm:$0xf]
        %v1940 = vld [vmem:[%s1937 + $0x8] sm:$0xf]
        %v1941 = vld [vmem:[%s1937 + $0xc] sm:$0xf]
        %v1942 = vld [vmem:[%s1937 + $0x10] sm:$0xf]
        %v1943 = vld [vmem:[%s1937 + $0x14] sm:$0xf]
        %v1944 = vld [vmem:[%s1937 + $0x18] sm:$0xf]
        %v1945 = vld [vmem:[%s1937 + $0x1c] sm:$0xf]
        %v1946 = vld [vmem:[%s1937 + $0x20] sm:$0xf]
        %v1947 = vld [vmem:[%s1937 + $0x24] sm:$0xf]
        %v1948 = vld [vmem:[%s1937 + $0x28] sm:$0xf]
        %v1949 = vld [vmem:[%s1937 + $0x2c] sm:$0xf]
        %v1950 = vld [vmem:[%s1937 + $0x30] sm:$0xf]
        %v1951 = vld [vmem:[%s1937 + $0x34] sm:$0xf]
        %v1952 = vld [vmem:[%s1937 + $0x38] sm:$0xf]
        %v1953 = vld [vmem:[%s1937 + $0x3c] sm:$0xf]
        %v1954 = vld [vmem:[%s1937 + $0x40] sm:$0xf]
        %v1955 = vld [vmem:[%s1937 + $0x44] sm:$0xf]
        %v1956 = vld [vmem:[%s1937 + $0x48] sm:$0xf]
        %v1957 = vld [vmem:[%s1937 + $0x4c] sm:$0xf]
        %v1958 = vld [vmem:[%s1937 + $0x50] sm:$0xf]
        %v1959 = vld [vmem:[%s1937 + $0x54] sm:$0xf]
        %v1960 = vld [vmem:[%s1937 + $0x58] sm:$0xf]
        %v1961 = vld [vmem:[%s1937 + $0x5c] sm:$0xf]
        %v1962 = vld [vmem:[%s1937 + $0x60] sm:$0xf]
        %v1963 = vld [vmem:[%s1937 + $0x64] sm:$0xf]
        %v1964 = vld [vmem:[%s1937 + $0x68] sm:$0xf]
        %v1965 = vld [vmem:[%s1937 + $0x6c] sm:$0xf]
        %v1966 = vld [vmem:[%s1937 + $0x70] sm:$0xf]
        %v1967 = vld [vmem:[%s1937 + $0x74] sm:$0xf]
        %v1968 = vld [vmem:[%s1937 + $0x78] sm:$0xf]
        %v1969 = vld [vmem:[%s1937 + $0x7c] sm:$0xf]
        %v1970 = vld [vmem:[%s1937 + $0x80] sm:$0xf]
        %v1971 = vld [vmem:[%s1937 + $0x84] sm:$0xf]
        %v1972 = vld [vmem:[%s1937 + $0x88] sm:$0xf]
        %v1973 = vld [vmem:[%s1937 + $0x8c] sm:$0xf]
        %v1974 = vld [vmem:[%s1937 + $0x90] sm:$0xf]
        %v1975 = vld [vmem:[%s1937 + $0x94] sm:$0xf]
        %v1976 = vld [vmem:[%s1937 + $0x98] sm:$0xf]
        %v1977 = vld [vmem:[%s1937 + $0x9c] sm:$0xf]
        %v1978 = vld [vmem:[%s1937 + $0xa0] sm:$0xf]
        %v1979 = vld [vmem:[%s1937 + $0xa4] sm:$0xf]
        %v1980 = vld [vmem:[%s1937 + $0xa8] sm:$0xf]
        %v1981 = vld [vmem:[%s1937 + $0xac] sm:$0xf]
        %v1982 = vld [vmem:[%s1937 + $0xb0] sm:$0xf]
        %v1983 = vld [vmem:[%s1937 + $0xb4] sm:$0xf]
        %v1984 = vld [vmem:[%s1937 + $0xb8] sm:$0xf]
        %v1985 = vld [vmem:[%s1937 + $0xbc] sm:$0xf]
        %v2034 = vunpack.c.l.b16 %v1938
        %v2035 = vunpack.c.l.b16 %v1939
        %v2036 = vunpack.c.l.b16 %v1940
        %v2037 = vunpack.c.l.b16 %v1941
        %v2038 = vunpack.c.l.b16 %v1942
        %v2039 = vunpack.c.l.b16 %v1943
        %v2040 = vunpack.c.l.b16 %v1944
        %v2041 = vunpack.c.l.b16 %v1945
        %v2042 = vunpack.c.l.b16 %v1946
        %v2043 = vunpack.c.l.b16 %v1947
        %v2044 = vunpack.c.l.b16 %v1948
        %v2045 = vunpack.c.l.b16 %v1949
        %v2046 = vunpack.c.l.b16 %v1950
        %v2047 = vunpack.c.l.b16 %v1951
        %v2048 = vunpack.c.l.b16 %v1952
        %v2049 = vunpack.c.l.b16 %v1953
        %v2050 = vunpack.c.l.b16 %v1954
        %v2051 = vunpack.c.l.b16 %v1955
        %v2052 = vunpack.c.l.b16 %v1956
        %v2053 = vunpack.c.l.b16 %v1957
        %v2054 = vunpack.c.l.b16 %v1958
        %v2055 = vunpack.c.l.b16 %v1959
        %v2056 = vunpack.c.l.b16 %v1960
        %v2057 = vunpack.c.l.b16 %v1961
        %v2058 = vunpack.c.l.b16 %v1962
        %v2059 = vunpack.c.l.b16 %v1963
        %v2060 = vunpack.c.l.b16 %v1964
        %v2061 = vunpack.c.l.b16 %v1965
        %v2062 = vunpack.c.l.b16 %v1966
        %v2063 = vunpack.c.l.b16 %v1967
        %v2064 = vunpack.c.l.b16 %v1968
        %v2065 = vunpack.c.l.b16 %v1969
        %v2066 = vunpack.c.l.b16 %v1970
        %v2067 = vunpack.c.l.b16 %v1971
        %v2068 = vunpack.c.l.b16 %v1972
        %v2069 = vunpack.c.l.b16 %v1973
        %v2070 = vunpack.c.l.b16 %v1974
        %v2071 = vunpack.c.l.b16 %v1975
        %v2072 = vunpack.c.l.b16 %v1976
        %v2073 = vunpack.c.l.b16 %v1977
        %v2074 = vunpack.c.l.b16 %v1978
        %v2075 = vunpack.c.l.b16 %v1979
        %v2076 = vunpack.c.l.b16 %v1980
        %v2077 = vunpack.c.l.b16 %v1981
        %v2078 = vunpack.c.l.b16 %v1982
        %v2079 = vunpack.c.l.b16 %v1983
        %v2080 = vunpack.c.l.b16 %v1984
        %v2081 = vunpack.c.l.b16 %v1985
        %v2082 = vpack.c.b16 %v2035, %v2034
        %v2083 = vpack.c.b16 %v2037, %v2036
        %v2084 = vpack.c.b16 %v2039, %v2038
        %v2085 = vpack.c.b16 %v2041, %v2040
        %v2086 = vpack.c.b16 %v2043, %v2042
        %v2087 = vpack.c.b16 %v2045, %v2044
        %v2088 = vpack.c.b16 %v2047, %v2046
        %v2089 = vpack.c.b16 %v2049, %v2048
        %v2090 = vpack.c.b16 %v2051, %v2050
        %v2091 = vpack.c.b16 %v2053, %v2052
        %v2092 = vpack.c.b16 %v2055, %v2054
        %v2093 = vpack.c.b16 %v2057, %v2056
        %v2094 = vpack.c.b16 %v2059, %v2058
        %v2095 = vpack.c.b16 %v2061, %v2060
        %v2096 = vpack.c.b16 %v2063, %v2062
        %v2097 = vpack.c.b16 %v2065, %v2064
        %v2098 = vpack.c.b16 %v2067, %v2066
        %v2099 = vpack.c.b16 %v2069, %v2068
        %v2100 = vpack.c.b16 %v2071, %v2070
        %v2101 = vpack.c.b16 %v2073, %v2072
        %v2102 = vpack.c.b16 %v2075, %v2074
        %v2103 = vpack.c.b16 %v2077, %v2076
        %v2104 = vpack.c.b16 %v2079, %v2078
        %v2105 = vpack.c.b16 %v2081, %v2080
        %2130 = vmatprep.subr.bf16.mxu0 0
        %2131 = vmatpush1.bf16.msra.mxu0 %v2082
        %2132 = vmatprep.subr.bf16.mxu0 0
        %2133 = vmatpush1.bf16.msra.mxu0 %v2083
        %2134 = vmatprep.subr.bf16.mxu0 0
        %2135 = vmatpush1.bf16.msra.mxu0 %v2084
        %2136 = vmatprep.subr.bf16.mxu0 0
        %2137 = vmatpush1.bf16.msra.mxu0 %v2085
        %2138 = vmatprep.subr.bf16.mxu0 0
        %2139 = vmatpush1.bf16.msra.mxu0 %v2086
        %2140 = vmatprep.subr.bf16.mxu0 0
        %2141 = vmatpush1.bf16.msra.mxu0 %v2087
        %2142 = vmatprep.subr.bf16.mxu0 0
        %2143 = vmatpush1.bf16.msra.mxu0 %v2088
        %2144 = vmatprep.subr.bf16.mxu0 0
        %2145 = vmatpush1.bf16.msra.mxu0 %v2089
        %2146 = vmatprep.subr.bf16.mxu0 0
        %2147 = vmatpush1.bf16.msra.mxu0 %v2090
        %2148 = vmatprep.subr.bf16.mxu0 0
        %2149 = vmatpush1.bf16.msra.mxu0 %v2091
        %2150 = vmatprep.subr.bf16.mxu0 0
        %2151 = vmatpush1.bf16.msra.mxu0 %v2092
        %2152 = vmatprep.subr.bf16.mxu0 0
        %2153 = vmatpush1.bf16.msra.mxu0 %v2093
        %2154 = vmatprep.subr.bf16.mxu0 0
        %2155 = vmatpush1.bf16.msra.mxu0 %v2094
        %2156 = vmatprep.subr.bf16.mxu0 0
        %2157 = vmatpush1.bf16.msra.mxu0 %v2095
        %2158 = vmatprep.subr.bf16.mxu0 0
        %2159 = vmatpush1.bf16.msra.mxu0 %v2096
        %2160 = vmatprep.subr.bf16.mxu0 0
        %2161 = vmatpush1.bf16.msra.mxu0 %v2097
        %2162 = vmatprep.mubr.bf16.mxu0 %v1890
        %2163 = vmatmul.mubr.bf16.gmra.mrb[0].mxu0 %v1889
        %v2164 = vpop.f32.mrb[0].mxu0
        %v2165 = vadd.f32 0.0, %v2164
        %v2166 = vpop.f32.mrb[0].mxu0
        %v2167 = vpop.f32.mrb[0].mxu0
        %v2168 = vadd.f32 0.0, %v2167
        %v2169 = vpop.f32.mrb[0].mxu0
        %2170 = vmatprep.mubr.bf16.mxu0 %v1893
        %2171 = vmatmul.mubr.bf16.gmra.mrb[0].mxu0 %v1892
        %v2172 = vpop.f32.mrb[0].mxu0
        %v2173 = vadd.f32 0.0, %v2172
        %v2174 = vpop.f32.mrb[0].mxu0
        %v2175 = vpop.f32.mrb[0].mxu0
        %v2176 = vadd.f32 0.0, %v2175
        %v2177 = vpop.f32.mrb[0].mxu0
        %2178 = vmatprep.mubr.bf16.mxu0 %v1896
        %2179 = vmatmul.mubr.bf16.gmra.mrb[0].mxu0 %v1895
        %v2180 = vpop.f32.mrb[0].mxu0
        %v2181 = vadd.f32 0.0, %v2180
        %v2182 = vpop.f32.mrb[0].mxu0
        %v2183 = vpop.f32.mrb[0].mxu0
        %v2184 = vadd.f32 0.0, %v2183
        %v2185 = vpop.f32.mrb[0].mxu0
        %2186 = vmatprep.mubr.bf16.mxu0 %v1899
        %2187 = vmatmul.mubr.bf16.gmra.mrb[0].mxu0 %v1898
        %v2188 = vpop.f32.mrb[0].mxu0
        %v2189 = vadd.f32 0.0, %v2188
        %v2190 = vpop.f32.mrb[0].mxu0
        %v2191 = vpop.f32.mrb[0].mxu0
        %v2192 = vadd.f32 0.0, %v2191
        %v2193 = vpop.f32.mrb[0].mxu0
        %2194 = vmatprep.mubr.bf16.mxu0 %v1902
        %2195 = vmatmul.mubr.bf16.gmra.mrb[0].mxu0 %v1901
        %v2196 = vpop.f32.mrb[0].mxu0
        %v2197 = vadd.f32 0.0, %v2196
        %v2198 = vpop.f32.mrb[0].mxu0
        %v2199 = vpop.f32.mrb[0].mxu0
        %v2200 = vadd.f32 0.0, %v2199
        %v2201 = vpop.f32.mrb[0].mxu0
        %2202 = vmatprep.mubr.bf16.mxu0 %v1905
        %2203 = vmatmul.mubr.bf16.gmra.mrb[0].mxu0 %v1904
        %v2204 = vpop.f32.mrb[0].mxu0
        %v2205 = vadd.f32 0.0, %v2204
        %v2206 = vpop.f32.mrb[0].mxu0
        %v2207 = vpop.f32.mrb[0].mxu0
        %v2208 = vadd.f32 0.0, %v2207
        %v2209 = vpop.f32.mrb[0].mxu0
        %2210 = vmatprep.mubr.bf16.mxu0 %v1908
        %2211 = vmatmul.mubr.bf16.gmra.mrb[0].mxu0 %v1907
        %v2212 = vpop.f32.mrb[0].mxu0
        %v2213 = vadd.f32 0.0, %v2212
        %v2214 = vpop.f32.mrb[0].mxu0
        %v2215 = vpop.f32.mrb[0].mxu0
        %v2216 = vadd.f32 0.0, %v2215
        %v2217 = vpop.f32.mrb[0].mxu0
        %2218 = vmatprep.mubr.bf16.mxu0 %v1911
        %2219 = vmatmul.mubr.bf16.gmra.mrb[0].mxu0 %v1910
        %v2220 = vpop.f32.mrb[0].mxu0
        %v2221 = vadd.f32 0.0, %v2220
        %v2222 = vpop.f32.mrb[0].mxu0
        %v2223 = vpop.f32.mrb[0].mxu0
        %v2224 = vadd.f32 0.0, %v2223
        %v2225 = vpop.f32.mrb[0].mxu0
        %2226 = vmatprep.mubr.bf16.mxu0 %v1914
        %2227 = vmatmul.mubr.bf16.gmra.mrb[0].mxu0 %v1913
        %v2228 = vpop.f32.mrb[0].mxu0
        %v2229 = vadd.f32 0.0, %v2228
        %v2230 = vpop.f32.mrb[0].mxu0
        %v2231 = vpop.f32.mrb[0].mxu0
        %v2232 = vadd.f32 0.0, %v2231
        %v2233 = vpop.f32.mrb[0].mxu0
        %2234 = vmatprep.mubr.bf16.mxu0 %v1917
        %2235 = vmatmul.mubr.bf16.gmra.mrb[0].mxu0 %v1916
        %v2236 = vpop.f32.mrb[0].mxu0
        %v2237 = vadd.f32 0.0, %v2236
        %v2238 = vpop.f32.mrb[0].mxu0
        %v2239 = vpop.f32.mrb[0].mxu0
        %v2240 = vadd.f32 0.0, %v2239
        %v2241 = vpop.f32.mrb[0].mxu0
        %2242 = vmatprep.mubr.bf16.mxu0 %v1920
        %2243 = vmatmul.mubr.bf16.gmra.mrb[0].mxu0 %v1919
        %v2244 = vpop.f32.mrb[0].mxu0
        %v2245 = vadd.f32 0.0, %v2244
        %v2246 = vpop.f32.mrb[0].mxu0
        %v2247 = vpop.f32.mrb[0].mxu0
        %v2248 = vadd.f32 0.0, %v2247
        %v2249 = vpop.f32.mrb[0].mxu0
        %2250 = vmatprep.mubr.bf16.mxu0 %v1923
        %2251 = vmatmul.mubr.bf16.gmra.mrb[0].mxu0 %v1922
        %v2252 = vpop.f32.mrb[0].mxu0
        %v2253 = vadd.f32 0.0, %v2252
        %v2254 = vpop.f32.mrb[0].mxu0
        %v2255 = vpop.f32.mrb[0].mxu0
        %v2256 = vadd.f32 0.0, %v2255
        %v2257 = vpop.f32.mrb[0].mxu0
        %2258 = vmatprep.mubr.bf16.mxu0 %v1926
        %2259 = vmatmul.mubr.bf16.gmra.mrb[0].mxu0 %v1925
        %v2260 = vpop.f32.mrb[0].mxu0
        %v2261 = vadd.f32 0.0, %v2260
        %v2262 = vpop.f32.mrb[0].mxu0
        %v2263 = vpop.f32.mrb[0].mxu0
        %v2264 = vadd.f32 0.0, %v2263
        %v2265 = vpop.f32.mrb[0].mxu0
        %2266 = vmatprep.mubr.bf16.mxu0 %v1929
        %2267 = vmatmul.mubr.bf16.gmra.mrb[0].mxu0 %v1928
        %v2268 = vpop.f32.mrb[0].mxu0
        %v2269 = vadd.f32 0.0, %v2268
        %v2270 = vpop.f32.mrb[0].mxu0
        %v2271 = vpop.f32.mrb[0].mxu0
        %v2272 = vadd.f32 0.0, %v2271
        %v2273 = vpop.f32.mrb[0].mxu0
        %2274 = vmatprep.mubr.bf16.mxu0 %v1932
        %2275 = vmatmul.mubr.bf16.gmra.mrb[0].mxu0 %v1931
        %v2276 = vpop.f32.mrb[0].mxu0
        %v2277 = vadd.f32 0.0, %v2276
        %v2278 = vpop.f32.mrb[0].mxu0
        %v2279 = vpop.f32.mrb[0].mxu0
        %v2280 = vadd.f32 0.0, %v2279
        %v2281 = vpop.f32.mrb[0].mxu0
        %2282 = vmatprep.mubr.bf16.mxu0 %v1935
        %2283 = vmatmul.mubr.bf16.gmra.mrb[0].mxu0 %v1934
        %v2284 = vpop.f32.mrb[0].mxu0
        %v2285 = vadd.f32 0.0, %v2284
        %v2286 = vpop.f32.mrb[0].mxu0
        %v2287 = vpop.f32.mrb[0].mxu0
        %v2288 = vadd.f32 0.0, %v2287
        %v2289 = vpop.f32.mrb[0].mxu0
        %2290 = vdwg.mxu0
        %2291 = vmatprep.subr.bf16.mxu0 0
        %2292 = vmatpush1.bf16.msra.mxu0 %v2098
        %2293 = vmatprep.subr.bf16.mxu0 0
        %2294 = vmatpush1.bf16.msra.mxu0 %v2099
        %2295 = vmatprep.subr.bf16.mxu0 0
        %2296 = vmatpush1.bf16.msra.mxu0 %v2100
        %2297 = vmatprep.subr.bf16.mxu0 0
        %2298 = vmatpush1.bf16.msra.mxu0 %v2101
        %2299 = vmatprep.subr.bf16.mxu0 0
        %2300 = vmatpush1.bf16.msra.mxu0 %v2102
        %2301 = vmatprep.subr.bf16.mxu0 0
        %2302 = vmatpush1.bf16.msra.mxu0 %v2103
        %2303 = vmatprep.subr.bf16.mxu0 0
        %2304 = vmatpush1.bf16.msra.mxu0 %v2104
        %2305 = vmatprep.subr.bf16.mxu0 0
        %2306 = vmatpush1.bf16.msra.mxu0 %v2105
        %2307 = vmatprep.subr.bf16.mxu0 0
        %2308 = vmatpush1.bf16.msra.mxu0 0
        %2309 = vmatprep.subr.bf16.mxu0 0
        %2310 = vmatpush1.bf16.msra.mxu0 0
        %2311 = vmatprep.subr.bf16.mxu0 0
        %2312 = vmatpush1.bf16.msra.mxu0 0
        %2313 = vmatprep.subr.bf16.mxu0 0
        %2314 = vmatpush1.bf16.msra.mxu0 0
        %2315 = vmatprep.subr.bf16.mxu0 0
        %2316 = vmatpush1.bf16.msra.mxu0 0
        %2317 = vmatprep.subr.bf16.mxu0 0
        %2318 = vmatpush1.bf16.msra.mxu0 0
        %2319 = vmatprep.subr.bf16.mxu0 0
        %2320 = vmatpush1.bf16.msra.mxu0 0
        %2321 = vmatprep.subr.bf16.mxu0 0
        %2322 = vmatpush1.bf16.msra.mxu0 0
        %2323 = vmatprep.mubr.bf16.mxu0 0
        %2324 = vmatmul.mubr.bf16.gmra.mrb[0].mxu0 %v1891
        %v2325 = vpop.f32.mrb[0].mxu0
        %v2326 = vadd.f32 %v2165, %v2325
        %v2327 = vpop.f32.mrb[0].mxu0
        %v2328 = vpop.f32.mrb[0].mxu0
        %v2329 = vadd.f32 %v2168, %v2328
        %v2330 = vpop.f32.mrb[0].mxu0
        %2331 = vmatprep.mubr.bf16.mxu0 0
        %2332 = vmatmul.mubr.bf16.gmra.mrb[0].mxu0 %v1894
        %v2333 = vpop.f32.mrb[0].mxu0
        %v2334 = vadd.f32 %v2173, %v2333
        %v2335 = vpop.f32.mrb[0].mxu0
        %v2336 = vpop.f32.mrb[0].mxu0
        %v2337 = vadd.f32 %v2176, %v2336
        %v2338 = vpop.f32.mrb[0].mxu0
        %2339 = vmatprep.mubr.bf16.mxu0 0
        %2340 = vmatmul.mubr.bf16.gmra.mrb[0].mxu0 %v1897
        %v2341 = vpop.f32.mrb[0].mxu0
        %v2342 = vadd.f32 %v2181, %v2341
        %v2343 = vpop.f32.mrb[0].mxu0
        %v2344 = vpop.f32.mrb[0].mxu0
        %v2345 = vadd.f32 %v2184, %v2344
        %v2346 = vpop.f32.mrb[0].mxu0
        %2347 = vmatprep.mubr.bf16.mxu0 0
        %2348 = vmatmul.mubr.bf16.gmra.mrb[0].mxu0 %v1900
        %v2349 = vpop.f32.mrb[0].mxu0
        %v2350 = vadd.f32 %v2189, %v2349
        %v2351 = vpop.f32.mrb[0].mxu0
        %v2352 = vpop.f32.mrb[0].mxu0
        %v2353 = vadd.f32 %v2192, %v2352
        %v2354 = vpop.f32.mrb[0].mxu0
        %2355 = vmatprep.mubr.bf16.mxu0 0
        %2356 = vmatmul.mubr.bf16.gmra.mrb[0].mxu0 %v1903
        %v2357 = vpop.f32.mrb[0].mxu0
        %v2358 = vadd.f32 %v2197, %v2357
        %v2359 = vpop.f32.mrb[0].mxu0
        %v2360 = vpop.f32.mrb[0].mxu0
        %v2361 = vadd.f32 %v2200, %v2360
        %v2362 = vpop.f32.mrb[0].mxu0
        %2363 = vmatprep.mubr.bf16.mxu0 0
        %2364 = vmatmul.mubr.bf16.gmra.mrb[0].mxu0 %v1906
        %v2365 = vpop.f32.mrb[0].mxu0
        %v2366 = vadd.f32 %v2205, %v2365
        %v2367 = vpop.f32.mrb[0].mxu0
        %v2368 = vpop.f32.mrb[0].mxu0
        %v2369 = vadd.f32 %v2208, %v2368
        %v2370 = vpop.f32.mrb[0].mxu0
        %2371 = vmatprep.mubr.bf16.mxu0 0
        %2372 = vmatmul.mubr.bf16.gmra.mrb[0].mxu0 %v1909
        %v2373 = vpop.f32.mrb[0].mxu0
        %v2374 = vadd.f32 %v2213, %v2373
        %v2375 = vpop.f32.mrb[0].mxu0
        %v2376 = vpop.f32.mrb[0].mxu0
        %v2377 = vadd.f32 %v2216, %v2376
        %v2378 = vpop.f32.mrb[0].mxu0
        %2379 = vmatprep.mubr.bf16.mxu0 0
        %2380 = vmatmul.mubr.bf16.gmra.mrb[0].mxu0 %v1912
        %v2381 = vpop.f32.mrb[0].mxu0
        %v2382 = vadd.f32 %v2221, %v2381
        %v2383 = vpop.f32.mrb[0].mxu0
        %v2384 = vpop.f32.mrb[0].mxu0
        %v2385 = vadd.f32 %v2224, %v2384
        %v2386 = vpop.f32.mrb[0].mxu0
        %2387 = vmatprep.mubr.bf16.mxu0 0
        %2388 = vmatmul.mubr.bf16.gmra.mrb[0].mxu0 %v1915
        %v2389 = vpop.f32.mrb[0].mxu0
        %v2390 = vadd.f32 %v2229, %v2389
        %v2391 = vpop.f32.mrb[0].mxu0
        %v2392 = vpop.f32.mrb[0].mxu0
        %v2393 = vadd.f32 %v2232, %v2392
        %v2394 = vpop.f32.mrb[0].mxu0
        %2395 = vmatprep.mubr.bf16.mxu0 0
        %2396 = vmatmul.mubr.bf16.gmra.mrb[0].mxu0 %v1918
        %v2397 = vpop.f32.mrb[0].mxu0
        %v2398 = vadd.f32 %v2237, %v2397
        %v2399 = vpop.f32.mrb[0].mxu0
        %v2400 = vpop.f32.mrb[0].mxu0
        %v2401 = vadd.f32 %v2240, %v2400
        %v2402 = vpop.f32.mrb[0].mxu0
        %2403 = vmatprep.mubr.bf16.mxu0 0
        %2404 = vmatmul.mubr.bf16.gmra.mrb[0].mxu0 %v1921
        %v2405 = vpop.f32.mrb[0].mxu0
        %v2406 = vadd.f32 %v2245, %v2405
        %v2407 = vpop.f32.mrb[0].mxu0
        %v2408 = vpop.f32.mrb[0].mxu0
        %v2409 = vadd.f32 %v2248, %v2408
        %v2410 = vpop.f32.mrb[0].mxu0
        %2411 = vmatprep.mubr.bf16.mxu0 0
        %2412 = vmatmul.mubr.bf16.gmra.mrb[0].mxu0 %v1924
        %v2413 = vpop.f32.mrb[0].mxu0
        %v2414 = vadd.f32 %v2253, %v2413
        %v2415 = vpop.f32.mrb[0].mxu0
        %v2416 = vpop.f32.mrb[0].mxu0
        %v2417 = vadd.f32 %v2256, %v2416
        %v2418 = vpop.f32.mrb[0].mxu0
        %2419 = vmatprep.mubr.bf16.mxu0 0
        %2420 = vmatmul.mubr.bf16.gmra.mrb[0].mxu0 %v1927
        %v2421 = vpop.f32.mrb[0].mxu0
        %v2422 = vadd.f32 %v2261, %v2421
        %v2423 = vpop.f32.mrb[0].mxu0
        %v2424 = vpop.f32.mrb[0].mxu0
        %v2425 = vadd.f32 %v2264, %v2424
        %v2426 = vpop.f32.mrb[0].mxu0
        %2427 = vmatprep.mubr.bf16.mxu0 0
        %2428 = vmatmul.mubr.bf16.gmra.mrb[0].mxu0 %v1930
        %v2429 = vpop.f32.mrb[0].mxu0
        %v2430 = vadd.f32 %v2269, %v2429
        %v2431 = vpop.f32.mrb[0].mxu0
        %v2432 = vpop.f32.mrb[0].mxu0
        %v2433 = vadd.f32 %v2272, %v2432
        %v2434 = vpop.f32.mrb[0].mxu0
        %2435 = vmatprep.mubr.bf16.mxu0 0
        %2436 = vmatmul.mubr.bf16.gmra.mrb[0].mxu0 %v1933
        %v2437 = vpop.f32.mrb[0].mxu0
        %v2438 = vadd.f32 %v2277, %v2437
        %v2439 = vpop.f32.mrb[0].mxu0
        %v2440 = vpop.f32.mrb[0].mxu0
        %v2441 = vadd.f32 %v2280, %v2440
        %v2442 = vpop.f32.mrb[0].mxu0
        %2443 = vmatprep.mubr.bf16.mxu0 0
        %2444 = vmatmul.mubr.bf16.gmra.mrb[0].mxu0 %v1936
        %v2445 = vpop.f32.mrb[0].mxu0
        %v2446 = vadd.f32 %v2285, %v2445
        %v2447 = vpop.f32.mrb[0].mxu0
        %v2448 = vpop.f32.mrb[0].mxu0
        %v2449 = vadd.f32 %v2288, %v2448
        %v2450 = vpop.f32.mrb[0].mxu0
        %2451 = vdwg.mxu0
        %v2452 = vld [vmem:[#allocation4] sm:$0xff]
        %v2453 = vld [vmem:[#allocation4 + $0x8] sm:$0xff]
        %v2454 = vld [vmem:[#allocation4 + $0x10] sm:$0xff]
        %v2455 = vld [vmem:[#allocation4 + $0x18] sm:$0xff]
        %v2456 = vld [vmem:[#allocation4 + $0x20] sm:$0xff]
        %v2457 = vld [vmem:[#allocation4 + $0x28] sm:$0xff]
        %v2458 = vld [vmem:[#allocation4 + $0x30] sm:$0xff]
        %v2459 = vld [vmem:[#allocation4 + $0x38] sm:$0xff]
        %v2460 = vld [vmem:[#allocation4 + $0x40] sm:$0xff]
        %v2461 = vld [vmem:[#allocation4 + $0x48] sm:$0xff]
        %v2462 = vld [vmem:[#allocation4 + $0x50] sm:$0xff]
        %v2463 = vld [vmem:[#allocation4 + $0x58] sm:$0xff]
        %v2464 = vld [vmem:[#allocation4 + $0x60] sm:$0xff]
        %v2465 = vld [vmem:[#allocation4 + $0x68] sm:$0xff]
        %v2466 = vld [vmem:[#allocation4 + $0x70] sm:$0xff]
        %v2467 = vld [vmem:[#allocation4 + $0x78] sm:$0xff]
        %v2468 = vld [vmem:[#allocation4 + $0x80] sm:$0xff]
        %v2469 = vld [vmem:[#allocation4 + $0x88] sm:$0xff]
        %v2470 = vld [vmem:[#allocation4 + $0x90] sm:$0xff]
        %v2471 = vld [vmem:[#allocation4 + $0x98] sm:$0xff]
        %v2472 = vld [vmem:[#allocation4 + $0xa0] sm:$0xff]
        %v2473 = vld [vmem:[#allocation4 + $0xa8] sm:$0xff]
        %v2474 = vld [vmem:[#allocation4 + $0xb0] sm:$0xff]
        %v2475 = vld [vmem:[#allocation4 + $0xb8] sm:$0xff]
        %v2476 = vld [vmem:[#allocation4 + $0xc0] sm:$0xff]
        %v2477 = vld [vmem:[#allocation4 + $0xc8] sm:$0xff]
        %v2478 = vld [vmem:[#allocation4 + $0xd0] sm:$0xff]
        %v2479 = vld [vmem:[#allocation4 + $0xd8] sm:$0xff]
        %v2480 = vld [vmem:[#allocation4 + $0xe0] sm:$0xff]
        %v2481 = vld [vmem:[#allocation4 + $0xe8] sm:$0xff]
        %v2482 = vld [vmem:[#allocation4 + $0xf0] sm:$0xff]
        %v2483 = vld [vmem:[#allocation4 + $0xf8] sm:$0xff]
        %v2484 = vadd.f32 %v2452, %v2326
        %v2485 = vadd.f32 %v2453, %v2329
        %v2486 = vadd.f32 %v2454, %v2334
        %v2487 = vadd.f32 %v2455, %v2337
        %v2488 = vadd.f32 %v2456, %v2342
        %v2489 = vadd.f32 %v2457, %v2345
        %v2490 = vadd.f32 %v2458, %v2350
        %v2491 = vadd.f32 %v2459, %v2353
        %v2492 = vadd.f32 %v2460, %v2358
        %v2493 = vadd.f32 %v2461, %v2361
        %v2494 = vadd.f32 %v2462, %v2366
        %v2495 = vadd.f32 %v2463, %v2369
        %v2496 = vadd.f32 %v2464, %v2374
        %v2497 = vadd.f32 %v2465, %v2377
        %v2498 = vadd.f32 %v2466, %v2382
        %v2499 = vadd.f32 %v2467, %v2385
        %v2500 = vadd.f32 %v2468, %v2390
        %v2501 = vadd.f32 %v2469, %v2393
        %v2502 = vadd.f32 %v2470, %v2398
        %v2503 = vadd.f32 %v2471, %v2401
        %v2504 = vadd.f32 %v2472, %v2406
        %v2505 = vadd.f32 %v2473, %v2409
        %v2506 = vadd.f32 %v2474, %v2414
        %v2507 = vadd.f32 %v2475, %v2417
        %v2508 = vadd.f32 %v2476, %v2422
        %v2509 = vadd.f32 %v2477, %v2425
        %v2510 = vadd.f32 %v2478, %v2430
        %v2511 = vadd.f32 %v2479, %v2433
        %v2512 = vadd.f32 %v2480, %v2438
        %v2513 = vadd.f32 %v2481, %v2441
        %v2514 = vadd.f32 %v2482, %v2446
        %v2515 = vadd.f32 %v2483, %v2449
        %2516 = vst [vmem:[#allocation4] sm:$0xff] %v2484
        %2517 = vst [vmem:[#allocation4 + $0x8] sm:$0xff] %v2485
        %2518 = vst [vmem:[#allocation4 + $0x10] sm:$0xff] %v2486
        %2519 = vst [vmem:[#allocation4 + $0x18] sm:$0xff] %v2487
        %2520 = vst [vmem:[#allocation4 + $0x20] sm:$0xff] %v2488
        %2521 = vst [vmem:[#allocation4 + $0x28] sm:$0xff] %v2489
        %2522 = vst [vmem:[#allocation4 + $0x30] sm:$0xff] %v2490
        %2523 = vst [vmem:[#allocation4 + $0x38] sm:$0xff] %v2491
        %2524 = vst [vmem:[#allocation4 + $0x40] sm:$0xff] %v2492
        %2525 = vst [vmem:[#allocation4 + $0x48] sm:$0xff] %v2493
        %2526 = vst [vmem:[#allocation4 + $0x50] sm:$0xff] %v2494
        %2527 = vst [vmem:[#allocation4 + $0x58] sm:$0xff] %v2495
        %2528 = vst [vmem:[#allocation4 + $0x60] sm:$0xff] %v2496
        %2529 = vst [vmem:[#allocation4 + $0x68] sm:$0xff] %v2497
        %2530 = vst [vmem:[#allocation4 + $0x70] sm:$0xff] %v2498
        %2531 = vst [vmem:[#allocation4 + $0x78] sm:$0xff] %v2499
        %2532 = vst [vmem:[#allocation4 + $0x80] sm:$0xff] %v2500
        %2533 = vst [vmem:[#allocation4 + $0x88] sm:$0xff] %v2501
        %2534 = vst [vmem:[#allocation4 + $0x90] sm:$0xff] %v2502
        %2535 = vst [vmem:[#allocation4 + $0x98] sm:$0xff] %v2503
        %2536 = vst [vmem:[#allocation4 + $0xa0] sm:$0xff] %v2504
        %2537 = vst [vmem:[#allocation4 + $0xa8] sm:$0xff] %v2505
        %2538 = vst [vmem:[#allocation4 + $0xb0] sm:$0xff] %v2506
        %2539 = vst [vmem:[#allocation4 + $0xb8] sm:$0xff] %v2507
        %2540 = vst [vmem:[#allocation4 + $0xc0] sm:$0xff] %v2508
        %2541 = vst [vmem:[#allocation4 + $0xc8] sm:$0xff] %v2509
        %2542 = vst [vmem:[#allocation4 + $0xd0] sm:$0xff] %v2510
        %2543 = vst [vmem:[#allocation4 + $0xd8] sm:$0xff] %v2511
        %2544 = vst [vmem:[#allocation4 + $0xe0] sm:$0xff] %v2512
        %2545 = vst [vmem:[#allocation4 + $0xe8] sm:$0xff] %v2513
        %2546 = vst [vmem:[#allocation4 + $0xf0] sm:$0xff] %v2514
        %2547 = vst [vmem:[#allocation4 + $0xf8] sm:$0xff] %v2515
        %v2548 = vld [vmem:[#allocation4] sm:$0xff]
        %v2549 = vld [vmem:[#allocation4 + $0x8] sm:$0xff]
        %v2550 = vld [vmem:[#allocation4 + $0x10] sm:$0xff]
        %v2551 = vld [vmem:[#allocation4 + $0x18] sm:$0xff]
        %v2552 = vld [vmem:[#allocation4 + $0x20] sm:$0xff]
        %v2553 = vld [vmem:[#allocation4 + $0x28] sm:$0xff]
        %v2554 = vld [vmem:[#allocation4 + $0x30] sm:$0xff]
        %v2555 = vld [vmem:[#allocation4 + $0x38] sm:$0xff]
        %v2556 = vld [vmem:[#allocation4 + $0x40] sm:$0xff]
        %v2557 = vld [vmem:[#allocation4 + $0x48] sm:$0xff]
        %v2558 = vld [vmem:[#allocation4 + $0x50] sm:$0xff]
        %v2559 = vld [vmem:[#allocation4 + $0x58] sm:$0xff]
        %v2560 = vld [vmem:[#allocation4 + $0x60] sm:$0xff]
        %v2561 = vld [vmem:[#allocation4 + $0x68] sm:$0xff]
        %v2562 = vld [vmem:[#allocation4 + $0x70] sm:$0xff]
        %v2563 = vld [vmem:[#allocation4 + $0x78] sm:$0xff]
        %v2564 = vld [vmem:[#allocation4 + $0x80] sm:$0xff]
        %v2565 = vld [vmem:[#allocation4 + $0x88] sm:$0xff]
        %v2566 = vld [vmem:[#allocation4 + $0x90] sm:$0xff]
        %v2567 = vld [vmem:[#allocation4 + $0x98] sm:$0xff]
        %v2568 = vld [vmem:[#allocation4 + $0xa0] sm:$0xff]
        %v2569 = vld [vmem:[#allocation4 + $0xa8] sm:$0xff]
        %v2570 = vld [vmem:[#allocation4 + $0xb0] sm:$0xff]
        %v2571 = vld [vmem:[#allocation4 + $0xb8] sm:$0xff]
        %v2572 = vld [vmem:[#allocation4 + $0xc0] sm:$0xff]
        %v2573 = vld [vmem:[#allocation4 + $0xc8] sm:$0xff]
        %v2574 = vld [vmem:[#allocation4 + $0xd0] sm:$0xff]
        %v2575 = vld [vmem:[#allocation4 + $0xd8] sm:$0xff]
        %v2576 = vld [vmem:[#allocation4 + $0xe0] sm:$0xff]
        %v2577 = vld [vmem:[#allocation4 + $0xe8] sm:$0xff]
        %v2578 = vld [vmem:[#allocation4 + $0xf0] sm:$0xff]
        %v2579 = vld [vmem:[#allocation4 + $0xf8] sm:$0xff]
        %v2580 = vld [vmem:[%s2] sm:$0x1]
        %v2582 = vlaneseq
        %v2583 = vshrl.u32 %v2582, 7
        %v2584 = vsub.s32 0, %v2583
        %v2585 = vrot.slane %v2580, %v2584
        %v2587 = vadd.f32 %v2548, %v2585
        %v2588 = vadd.f32 %v2549, %v2585
        %v2589 = vadd.f32 %v2550, %v2585
        %v2590 = vadd.f32 %v2551, %v2585
        %v2591 = vadd.f32 %v2552, %v2585
        %v2592 = vadd.f32 %v2553, %v2585
        %v2593 = vadd.f32 %v2554, %v2585
        %v2594 = vadd.f32 %v2555, %v2585
        %v2595 = vadd.f32 %v2556, %v2585
        %v2596 = vadd.f32 %v2557, %v2585
        %v2597 = vadd.f32 %v2558, %v2585
        %v2598 = vadd.f32 %v2559, %v2585
        %v2599 = vadd.f32 %v2560, %v2585
        %v2600 = vadd.f32 %v2561, %v2585
        %v2601 = vadd.f32 %v2562, %v2585
        %v2602 = vadd.f32 %v2563, %v2585
        %v2603 = vadd.f32 %v2564, %v2585
        %v2604 = vadd.f32 %v2565, %v2585
        %v2605 = vadd.f32 %v2566, %v2585
        %v2606 = vadd.f32 %v2567, %v2585
        %v2607 = vadd.f32 %v2568, %v2585
        %v2608 = vadd.f32 %v2569, %v2585
        %v2609 = vadd.f32 %v2570, %v2585
        %v2610 = vadd.f32 %v2571, %v2585
        %v2611 = vadd.f32 %v2572, %v2585
        %v2612 = vadd.f32 %v2573, %v2585
        %v2613 = vadd.f32 %v2574, %v2585
        %v2614 = vadd.f32 %v2575, %v2585
        %v2615 = vadd.f32 %v2576, %v2585
        %v2616 = vadd.f32 %v2577, %v2585
        %v2617 = vadd.f32 %v2578, %v2585
        %v2618 = vadd.f32 %v2579, %v2585
        %v2619 = vmax.f32 %v2587, 0.0
        %v2620 = vmax.f32 %v2588, 0.0
        %v2621 = vmax.f32 %v2589, 0.0
        %v2622 = vmax.f32 %v2590, 0.0
        %v2623 = vmax.f32 %v2591, 0.0
        %v2624 = vmax.f32 %v2592, 0.0
        %v2625 = vmax.f32 %v2593, 0.0
        %v2626 = vmax.f32 %v2594, 0.0
        %v2627 = vmax.f32 %v2595, 0.0
        %v2628 = vmax.f32 %v2596, 0.0
        %v2629 = vmax.f32 %v2597, 0.0
        %v2630 = vmax.f32 %v2598, 0.0
        %v2631 = vmax.f32 %v2599, 0.0
        %v2632 = vmax.f32 %v2600, 0.0
        %v2633 = vmax.f32 %v2601, 0.0
        %v2634 = vmax.f32 %v2602, 0.0
        %v2635 = vmax.f32 %v2603, 0.0
        %v2636 = vmax.f32 %v2604, 0.0
        %v2637 = vmax.f32 %v2605, 0.0
        %v2638 = vmax.f32 %v2606, 0.0
        %v2639 = vmax.f32 %v2607, 0.0
        %v2640 = vmax.f32 %v2608, 0.0
        %v2641 = vmax.f32 %v2609, 0.0
        %v2642 = vmax.f32 %v2610, 0.0
        %v2643 = vmax.f32 %v2611, 0.0
        %v2644 = vmax.f32 %v2612, 0.0
        %v2645 = vmax.f32 %v2613, 0.0
        %v2646 = vmax.f32 %v2614, 0.0
        %v2647 = vmax.f32 %v2615, 0.0
        %v2648 = vmax.f32 %v2616, 0.0
        %v2649 = vmax.f32 %v2617, 0.0
        %v2650 = vmax.f32 %v2618, 0.0
        %2651 = vst [vmem:[#allocation3] sm:$0xff] 0
        %2652 = vst [vmem:[#allocation3 + $0x8] sm:$0xff] 0
        %2653 = vst [vmem:[#allocation3 + $0x10] sm:$0xff] 0
        %s2654 = scalar_lea.vmem [#allocation3], 408
        %2655 = vst [vmem:[%s2654] sm:$0xff] 0
        %2656 = vst [vmem:[%s2654 + $0x8] sm:$0xff] 0
        %2657 = vst [vmem:[%s2654 + $0x10] sm:$0xff] 0
        %v2690 = vrot.slane %v2619, 7
        %v2691 = vrot.slane %v2620, 7
        %v2692 = vsel %vm344, %v2690, %v2691
        %v2693 = vrot.slane %v2621, 7
        %v2694 = vrot.slane %v2622, 7
        %v2695 = vsel %vm344, %v2693, %v2694
        %v2696 = vrot.slane %v2623, 7
        %v2697 = vrot.slane %v2624, 7
        %v2698 = vsel %vm344, %v2696, %v2697
        %v2699 = vrot.slane %v2625, 7
        %v2700 = vrot.slane %v2626, 7
        %v2701 = vsel %vm344, %v2699, %v2700
        %v2702 = vrot.slane %v2627, 7
        %v2703 = vrot.slane %v2628, 7
        %v2704 = vsel %vm344, %v2702, %v2703
        %v2705 = vrot.slane %v2629, 7
        %v2706 = vrot.slane %v2630, 7
        %v2707 = vsel %vm344, %v2705, %v2706
        %v2708 = vrot.slane %v2631, 7
        %v2709 = vrot.slane %v2632, 7
        %v2710 = vsel %vm344, %v2708, %v2709
        %v2711 = vrot.slane %v2633, 7
        %v2712 = vrot.slane %v2634, 7
        %v2713 = vsel %vm344, %v2711, %v2712
        %v2714 = vrot.slane %v2635, 7
        %v2715 = vrot.slane %v2636, 7
        %v2716 = vsel %vm344, %v2714, %v2715
        %v2717 = vrot.slane %v2637, 7
        %v2718 = vrot.slane %v2638, 7
        %v2719 = vsel %vm344, %v2717, %v2718
        %v2720 = vrot.slane %v2639, 7
        %v2721 = vrot.slane %v2640, 7
        %v2722 = vsel %vm344, %v2720, %v2721
        %v2723 = vrot.slane %v2641, 7
        %v2724 = vrot.slane %v2642, 7
        %v2725 = vsel %vm344, %v2723, %v2724
        %v2726 = vrot.slane %v2643, 7
        %v2727 = vrot.slane %v2644, 7
        %v2728 = vsel %vm344, %v2726, %v2727
        %v2729 = vrot.slane %v2645, 7
        %v2730 = vrot.slane %v2646, 7
        %v2731 = vsel %vm344, %v2729, %v2730
        %v2732 = vrot.slane %v2647, 7
        %v2733 = vrot.slane %v2648, 7
        %v2734 = vsel %vm344, %v2732, %v2733
        %v2735 = vrot.slane %v2649, 7
        %v2736 = vrot.slane %v2650, 7
        %v2737 = vsel %vm344, %v2735, %v2736
        %v2770 = vsel %vm344, 0.0, %v2690
        %v2771 = vsel %vm344, 0.0, %v2693
        %v2772 = vsel %vm344, 0.0, %v2696
        %v2773 = vsel %vm344, 0.0, %v2699
        %v2774 = vsel %vm344, 0.0, %v2702
        %v2775 = vsel %vm344, 0.0, %v2705
        %v2776 = vsel %vm344, 0.0, %v2708
        %v2777 = vsel %vm344, 0.0, %v2711
        %v2778 = vsel %vm344, 0.0, %v2714
        %v2779 = vsel %vm344, 0.0, %v2717
        %v2780 = vsel %vm344, 0.0, %v2720
        %v2781 = vsel %vm344, 0.0, %v2723
        %v2782 = vsel %vm344, 0.0, %v2726
        %v2783 = vsel %vm344, 0.0, %v2729
        %v2784 = vsel %vm344, 0.0, %v2732
        %v2785 = vsel %vm344, 0.0, %v2735
        %v2786 = vrot.slane %v2619, 1
        %v2787 = vrot.slane %v2620, 1
        %v2788 = vsel %vm441, %v2786, %v2787
        %v2789 = vrot.slane %v2621, 1
        %v2790 = vrot.slane %v2622, 1
        %v2791 = vsel %vm441, %v2789, %v2790
        %v2792 = vrot.slane %v2623, 1
        %v2793 = vrot.slane %v2624, 1
        %v2794 = vsel %vm441, %v2792, %v2793
        %v2795 = vrot.slane %v2625, 1
        %v2796 = vrot.slane %v2626, 1
        %v2797 = vsel %vm441, %v2795, %v2796
        %v2798 = vrot.slane %v2627, 1
        %v2799 = vrot.slane %v2628, 1
        %v2800 = vsel %vm441, %v2798, %v2799
        %v2801 = vrot.slane %v2629, 1
        %v2802 = vrot.slane %v2630, 1
        %v2803 = vsel %vm441, %v2801, %v2802
        %v2804 = vrot.slane %v2631, 1
        %v2805 = vrot.slane %v2632, 1
        %v2806 = vsel %vm441, %v2804, %v2805
        %v2807 = vrot.slane %v2633, 1
        %v2808 = vrot.slane %v2634, 1
        %v2809 = vsel %vm441, %v2807, %v2808
        %v2810 = vrot.slane %v2635, 1
        %v2811 = vrot.slane %v2636, 1
        %v2812 = vsel %vm441, %v2810, %v2811
        %v2813 = vrot.slane %v2637, 1
        %v2814 = vrot.slane %v2638, 1
        %v2815 = vsel %vm441, %v2813, %v2814
        %v2816 = vrot.slane %v2639, 1
        %v2817 = vrot.slane %v2640, 1
        %v2818 = vsel %vm441, %v2816, %v2817
        %v2819 = vrot.slane %v2641, 1
        %v2820 = vrot.slane %v2642, 1
        %v2821 = vsel %vm441, %v2819, %v2820
        %v2822 = vrot.slane %v2643, 1
        %v2823 = vrot.slane %v2644, 1
        %v2824 = vsel %vm441, %v2822, %v2823
        %v2825 = vrot.slane %v2645, 1
        %v2826 = vrot.slane %v2646, 1
        %v2827 = vsel %vm441, %v2825, %v2826
        %v2828 = vrot.slane %v2647, 1
        %v2829 = vrot.slane %v2648, 1
        %v2830 = vsel %vm441, %v2828, %v2829
        %v2831 = vrot.slane %v2649, 1
        %v2832 = vrot.slane %v2650, 1
        %v2833 = vsel %vm441, %v2831, %v2832
        %v2866 = vsel %vm441, %v2787, 0.0
        %v2867 = vsel %vm441, %v2790, 0.0
        %v2868 = vsel %vm441, %v2793, 0.0
        %v2869 = vsel %vm441, %v2796, 0.0
        %v2870 = vsel %vm441, %v2799, 0.0
        %v2871 = vsel %vm441, %v2802, 0.0
        %v2872 = vsel %vm441, %v2805, 0.0
        %v2873 = vsel %vm441, %v2808, 0.0
        %v2874 = vsel %vm441, %v2811, 0.0
        %v2875 = vsel %vm441, %v2814, 0.0
        %v2876 = vsel %vm441, %v2817, 0.0
        %v2877 = vsel %vm441, %v2820, 0.0
        %v2878 = vsel %vm441, %v2823, 0.0
        %v2879 = vsel %vm441, %v2826, 0.0
        %v2880 = vsel %vm441, %v2829, 0.0
        %v2881 = vsel %vm441, %v2832, 0.0
        %v2882 = vpack.c.bf16 %v2692, %v2770
        %v2883 = vpack.c.bf16 %v2620, %v2619
        %v2884 = vpack.c.bf16 %v2866, %v2788
        %v2885 = vpack.c.bf16 %v2695, %v2771
        %v2886 = vpack.c.bf16 %v2622, %v2621
        %v2887 = vpack.c.bf16 %v2867, %v2791
        %v2888 = vpack.c.bf16 %v2698, %v2772
        %v2889 = vpack.c.bf16 %v2624, %v2623
        %v2890 = vpack.c.bf16 %v2868, %v2794
        %v2891 = vpack.c.bf16 %v2701, %v2773
        %v2892 = vpack.c.bf16 %v2626, %v2625
        %v2893 = vpack.c.bf16 %v2869, %v2797
        %v2894 = vpack.c.bf16 %v2704, %v2774
        %v2895 = vpack.c.bf16 %v2628, %v2627
        %v2896 = vpack.c.bf16 %v2870, %v2800
        %v2897 = vpack.c.bf16 %v2707, %v2775
        %v2898 = vpack.c.bf16 %v2630, %v2629
        %v2899 = vpack.c.bf16 %v2871, %v2803
        %v2900 = vpack.c.bf16 %v2710, %v2776
        %v2901 = vpack.c.bf16 %v2632, %v2631
        %v2902 = vpack.c.bf16 %v2872, %v2806
        %v2903 = vpack.c.bf16 %v2713, %v2777
        %v2904 = vpack.c.bf16 %v2634, %v2633
        %v2905 = vpack.c.bf16 %v2873, %v2809
        %v2906 = vpack.c.bf16 %v2716, %v2778
        %v2907 = vpack.c.bf16 %v2636, %v2635
        %v2908 = vpack.c.bf16 %v2874, %v2812
        %v2909 = vpack.c.bf16 %v2719, %v2779
        %v2910 = vpack.c.bf16 %v2638, %v2637
        %v2911 = vpack.c.bf16 %v2875, %v2815
        %v2912 = vpack.c.bf16 %v2722, %v2780
        %v2913 = vpack.c.bf16 %v2640, %v2639
        %v2914 = vpack.c.bf16 %v2876, %v2818
        %v2915 = vpack.c.bf16 %v2725, %v2781
        %v2916 = vpack.c.bf16 %v2642, %v2641
        %v2917 = vpack.c.bf16 %v2877, %v2821
        %v2918 = vpack.c.bf16 %v2728, %v2782
        %v2919 = vpack.c.bf16 %v2644, %v2643
        %v2920 = vpack.c.bf16 %v2878, %v2824
        %v2921 = vpack.c.bf16 %v2731, %v2783
        %v2922 = vpack.c.bf16 %v2646, %v2645
        %v2923 = vpack.c.bf16 %v2879, %v2827
        %v2924 = vpack.c.bf16 %v2734, %v2784
        %v2925 = vpack.c.bf16 %v2648, %v2647
        %v2926 = vpack.c.bf16 %v2880, %v2830
        %v2927 = vpack.c.bf16 %v2737, %v2785
        %v2928 = vpack.c.bf16 %v2650, %v2649
        %v2929 = vpack.c.bf16 %v2881, %v2833
        %s2930 = scalar_lea.vmem [#allocation3], 24
        %2931 = vst [vmem:[%s2930] sm:$0xff] %v2882
        %2932 = vst [vmem:[%s2930 + $0x8] sm:$0xff] %v2883
        %2933 = vst [vmem:[%s2930 + $0x10] sm:$0xff] %v2884
        %2934 = vst [vmem:[%s2930 + $0x18] sm:$0xff] %v2885
        %2935 = vst [vmem:[%s2930 + $0x20] sm:$0xff] %v2886
        %2936 = vst [vmem:[%s2930 + $0x28] sm:$0xff] %v2887
        %2937 = vst [vmem:[%s2930 + $0x30] sm:$0xff] %v2888
        %2938 = vst [vmem:[%s2930 + $0x38] sm:$0xff] %v2889
        %2939 = vst [vmem:[%s2930 + $0x40] sm:$0xff] %v2890
        %2940 = vst [vmem:[%s2930 + $0x48] sm:$0xff] %v2891
        %2941 = vst [vmem:[%s2930 + $0x50] sm:$0xff] %v2892
        %2942 = vst [vmem:[%s2930 + $0x58] sm:$0xff] %v2893
        %2943 = vst [vmem:[%s2930 + $0x60] sm:$0xff] %v2894
        %2944 = vst [vmem:[%s2930 + $0x68] sm:$0xff] %v2895
        %2945 = vst [vmem:[%s2930 + $0x70] sm:$0xff] %v2896
        %2946 = vst [vmem:[%s2930 + $0x78] sm:$0xff] %v2897
        %2947 = vst [vmem:[%s2930 + $0x80] sm:$0xff] %v2898
        %2948 = vst [vmem:[%s2930 + $0x88] sm:$0xff] %v2899
        %2949 = vst [vmem:[%s2930 + $0x90] sm:$0xff] %v2900
        %2950 = vst [vmem:[%s2930 + $0x98] sm:$0xff] %v2901
        %2951 = vst [vmem:[%s2930 + $0xa0] sm:$0xff] %v2902
        %2952 = vst [vmem:[%s2930 + $0xa8] sm:$0xff] %v2903
        %2953 = vst [vmem:[%s2930 + $0xb0] sm:$0xff] %v2904
        %2954 = vst [vmem:[%s2930 + $0xb8] sm:$0xff] %v2905
        %2955 = vst [vmem:[%s2930 + $0xc0] sm:$0xff] %v2906
        %2956 = vst [vmem:[%s2930 + $0xc8] sm:$0xff] %v2907
        %2957 = vst [vmem:[%s2930 + $0xd0] sm:$0xff] %v2908
        %2958 = vst [vmem:[%s2930 + $0xd8] sm:$0xff] %v2909
        %2959 = vst [vmem:[%s2930 + $0xe0] sm:$0xff] %v2910
        %2960 = vst [vmem:[%s2930 + $0xe8] sm:$0xff] %v2911
        %2961 = vst [vmem:[%s2930 + $0xf0] sm:$0xff] %v2912
        %2962 = vst [vmem:[%s2930 + $0xf8] sm:$0xff] %v2913
        %2963 = vst [vmem:[%s2930 + $0x100] sm:$0xff] %v2914
        %2964 = vst [vmem:[%s2930 + $0x108] sm:$0xff] %v2915
        %2965 = vst [vmem:[%s2930 + $0x110] sm:$0xff] %v2916
        %2966 = vst [vmem:[%s2930 + $0x118] sm:$0xff] %v2917
        %2967 = vst [vmem:[%s2930 + $0x120] sm:$0xff] %v2918
        %2968 = vst [vmem:[%s2930 + $0x128] sm:$0xff] %v2919
        %2969 = vst [vmem:[%s2930 + $0x130] sm:$0xff] %v2920
        %2970 = vst [vmem:[%s2930 + $0x138] sm:$0xff] %v2921
        %2971 = vst [vmem:[%s2930 + $0x140] sm:$0xff] %v2922
        %2972 = vst [vmem:[%s2930 + $0x148] sm:$0xff] %v2923
        %2973 = vst [vmem:[%s2930 + $0x150] sm:$0xff] %v2924
        %2974 = vst [vmem:[%s2930 + $0x158] sm:$0xff] %v2925
        %2975 = vst [vmem:[%s2930 + $0x160] sm:$0xff] %v2926
        %2976 = vst [vmem:[%s2930 + $0x168] sm:$0xff] %v2927
        %2977 = vst [vmem:[%s2930 + $0x170] sm:$0xff] %v2928
        %2978 = vst [vmem:[%s2930 + $0x178] sm:$0xff] %v2929
        %v2979 = vld [vmem:[#allocation3] sm:$0xff]
        %v2980 = vld [vmem:[#allocation3 + $0x8] sm:$0xff]
        %v2981 = vld [vmem:[#allocation3 + $0x10] sm:$0xff]
        %v2982 = vld [vmem:[#allocation3 + $0x18] sm:$0xff]
        %v2983 = vld [vmem:[#allocation3 + $0x20] sm:$0xff]
        %v2984 = vld [vmem:[#allocation3 + $0x28] sm:$0xff]
        %v2985 = vld [vmem:[#allocation3 + $0x30] sm:$0xff]
        %v2986 = vld [vmem:[#allocation3 + $0x38] sm:$0xff]
        %v2987 = vld [vmem:[#allocation3 + $0x40] sm:$0xff]
        %v2988 = vld [vmem:[#allocation3 + $0x48] sm:$0xff]
        %v2989 = vld [vmem:[#allocation3 + $0x50] sm:$0xff]
        %v2990 = vld [vmem:[#allocation3 + $0x58] sm:$0xff]
        %v2991 = vld [vmem:[#allocation3 + $0x60] sm:$0xff]
        %v2992 = vld [vmem:[#allocation3 + $0x68] sm:$0xff]
        %v2993 = vld [vmem:[#allocation3 + $0x70] sm:$0xff]
        %v2994 = vld [vmem:[#allocation3 + $0x78] sm:$0xff]
        %v2995 = vld [vmem:[#allocation3 + $0x80] sm:$0xff]
        %v2996 = vld [vmem:[#allocation3 + $0x88] sm:$0xff]
        %v2997 = vld [vmem:[#allocation3 + $0x90] sm:$0xff]
        %v2998 = vld [vmem:[#allocation3 + $0x98] sm:$0xff]
        %v2999 = vld [vmem:[#allocation3 + $0xa0] sm:$0xff]
        %v3000 = vld [vmem:[#allocation3 + $0xa8] sm:$0xff]
        %v3001 = vld [vmem:[#allocation3 + $0xb0] sm:$0xff]
        %v3002 = vld [vmem:[#allocation3 + $0xb8] sm:$0xff]
        %v3003 = vld [vmem:[#allocation3 + $0xc0] sm:$0xff]
        %v3004 = vld [vmem:[#allocation3 + $0xc8] sm:$0xff]
        %v3005 = vld [vmem:[#allocation3 + $0xd0] sm:$0xff]
        %v3006 = vld [vmem:[#allocation3 + $0xd8] sm:$0xff]
        %v3007 = vld [vmem:[#allocation3 + $0xe0] sm:$0xff]
        %v3008 = vld [vmem:[#allocation3 + $0xe8] sm:$0xff]
        %v3009 = vld [vmem:[#allocation3 + $0xf0] sm:$0xff]
        %v3010 = vld [vmem:[#allocation3 + $0xf8] sm:$0xff]
        %v3011 = vld [vmem:[#allocation3 + $0x100] sm:$0xff]
        %v3012 = vld [vmem:[#allocation3 + $0x108] sm:$0xff]
        %v3013 = vld [vmem:[#allocation3 + $0x110] sm:$0xff]
        %v3014 = vld [vmem:[#allocation3 + $0x118] sm:$0xff]
        %v3015 = vld [vmem:[#allocation3 + $0x120] sm:$0xff]
        %v3016 = vld [vmem:[#allocation3 + $0x128] sm:$0xff]
        %v3017 = vld [vmem:[#allocation3 + $0x130] sm:$0xff]
        %v3018 = vld [vmem:[#allocation3 + $0x138] sm:$0xff]
        %v3019 = vld [vmem:[#allocation3 + $0x140] sm:$0xff]
        %v3020 = vld [vmem:[#allocation3 + $0x148] sm:$0xff]
        %v3021 = vld [vmem:[#allocation3 + $0x150] sm:$0xff]
        %v3022 = vld [vmem:[#allocation3 + $0x158] sm:$0xff]
        %v3023 = vld [vmem:[#allocation3 + $0x160] sm:$0xff]
        %v3024 = vld [vmem:[#allocation3 + $0x168] sm:$0xff]
        %v3025 = vld [vmem:[#allocation3 + $0x170] sm:$0xff]
        %v3026 = vld [vmem:[#allocation3 + $0x178] sm:$0xff]
        %v3027 = vld [vmem:[#allocation10] sm:$0xf]
        %v3028 = vld [vmem:[#allocation10 + $0x4] sm:$0xf]
        %v3029 = vld [vmem:[#allocation10 + $0x8] sm:$0xf]
        %v3030 = vld [vmem:[#allocation10 + $0xc] sm:$0xf]
        %v3031 = vld [vmem:[#allocation10 + $0x10] sm:$0xf]
        %v3032 = vld [vmem:[#allocation10 + $0x14] sm:$0xf]
        %v3033 = vld [vmem:[#allocation10 + $0x18] sm:$0xf]
        %v3034 = vld [vmem:[#allocation10 + $0x1c] sm:$0xf]
        %v3035 = vld [vmem:[#allocation10 + $0x20] sm:$0xf]
        %v3036 = vld [vmem:[#allocation10 + $0x24] sm:$0xf]
        %v3037 = vld [vmem:[#allocation10 + $0x28] sm:$0xf]
        %v3038 = vld [vmem:[#allocation10 + $0x2c] sm:$0xf]
        %v3039 = vld [vmem:[#allocation10 + $0x30] sm:$0xf]
        %v3040 = vld [vmem:[#allocation10 + $0x34] sm:$0xf]
        %v3041 = vld [vmem:[#allocation10 + $0x38] sm:$0xf]
        %v3042 = vld [vmem:[#allocation10 + $0x3c] sm:$0xf]
        %v3043 = vld [vmem:[#allocation10 + $0x40] sm:$0xf]
        %v3044 = vld [vmem:[#allocation10 + $0x44] sm:$0xf]
        %v3045 = vld [vmem:[#allocation10 + $0x48] sm:$0xf]
        %v3046 = vld [vmem:[#allocation10 + $0x4c] sm:$0xf]
        %v3047 = vld [vmem:[#allocation10 + $0x50] sm:$0xf]
        %v3048 = vld [vmem:[#allocation10 + $0x54] sm:$0xf]
        %v3049 = vld [vmem:[#allocation10 + $0x58] sm:$0xf]
        %v3050 = vld [vmem:[#allocation10 + $0x5c] sm:$0xf]
        %v3051 = vld [vmem:[#allocation10 + $0x60] sm:$0xf]
        %v3052 = vld [vmem:[#allocation10 + $0x64] sm:$0xf]
        %v3053 = vld [vmem:[#allocation10 + $0x68] sm:$0xf]
        %v3054 = vld [vmem:[#allocation10 + $0x6c] sm:$0xf]
        %v3055 = vld [vmem:[#allocation10 + $0x70] sm:$0xf]
        %v3056 = vld [vmem:[#allocation10 + $0x74] sm:$0xf]
        %v3057 = vld [vmem:[#allocation10 + $0x78] sm:$0xf]
        %v3058 = vld [vmem:[#allocation10 + $0x7c] sm:$0xf]
        %v3059 = vld [vmem:[#allocation10 + $0x80] sm:$0xf]
        %v3060 = vld [vmem:[#allocation10 + $0x84] sm:$0xf]
        %v3061 = vld [vmem:[#allocation10 + $0x88] sm:$0xf]
        %v3062 = vld [vmem:[#allocation10 + $0x8c] sm:$0xf]
        %v3063 = vld [vmem:[#allocation10 + $0x90] sm:$0xf]
        %v3064 = vld [vmem:[#allocation10 + $0x94] sm:$0xf]
        %v3065 = vld [vmem:[#allocation10 + $0x98] sm:$0xf]
        %v3066 = vld [vmem:[#allocation10 + $0x9c] sm:$0xf]
        %v3067 = vld [vmem:[#allocation10 + $0xa0] sm:$0xf]
        %v3068 = vld [vmem:[#allocation10 + $0xa4] sm:$0xf]
        %v3069 = vld [vmem:[#allocation10 + $0xa8] sm:$0xf]
        %v3070 = vld [vmem:[#allocation10 + $0xac] sm:$0xf]
        %v3071 = vld [vmem:[#allocation10 + $0xb0] sm:$0xf]
        %v3072 = vld [vmem:[#allocation10 + $0xb4] sm:$0xf]
        %v3073 = vld [vmem:[#allocation10 + $0xb8] sm:$0xf]
        %v3074 = vld [vmem:[#allocation10 + $0xbc] sm:$0xf]
        %v3123 = vunpack.c.l.b16 %v3027
        %v3124 = vunpack.c.l.b16 %v3028
        %v3125 = vunpack.c.l.b16 %v3029
        %v3126 = vunpack.c.l.b16 %v3030
        %v3127 = vunpack.c.l.b16 %v3031
        %v3128 = vunpack.c.l.b16 %v3032
        %v3129 = vunpack.c.l.b16 %v3033
        %v3130 = vunpack.c.l.b16 %v3034
        %v3131 = vunpack.c.l.b16 %v3035
        %v3132 = vunpack.c.l.b16 %v3036
        %v3133 = vunpack.c.l.b16 %v3037
        %v3134 = vunpack.c.l.b16 %v3038
        %v3135 = vunpack.c.l.b16 %v3039
        %v3136 = vunpack.c.l.b16 %v3040
        %v3137 = vunpack.c.l.b16 %v3041
        %v3138 = vunpack.c.l.b16 %v3042
        %v3139 = vunpack.c.l.b16 %v3043
        %v3140 = vunpack.c.l.b16 %v3044
        %v3141 = vunpack.c.l.b16 %v3045
        %v3142 = vunpack.c.l.b16 %v3046
        %v3143 = vunpack.c.l.b16 %v3047
        %v3144 = vunpack.c.l.b16 %v3048
        %v3145 = vunpack.c.l.b16 %v3049
        %v3146 = vunpack.c.l.b16 %v3050
        %v3147 = vunpack.c.l.b16 %v3051
        %v3148 = vunpack.c.l.b16 %v3052
        %v3149 = vunpack.c.l.b16 %v3053
        %v3150 = vunpack.c.l.b16 %v3054
        %v3151 = vunpack.c.l.b16 %v3055
        %v3152 = vunpack.c.l.b16 %v3056
        %v3153 = vunpack.c.l.b16 %v3057
        %v3154 = vunpack.c.l.b16 %v3058
        %v3155 = vunpack.c.l.b16 %v3059
        %v3156 = vunpack.c.l.b16 %v3060
        %v3157 = vunpack.c.l.b16 %v3061
        %v3158 = vunpack.c.l.b16 %v3062
        %v3159 = vunpack.c.l.b16 %v3063
        %v3160 = vunpack.c.l.b16 %v3064
        %v3161 = vunpack.c.l.b16 %v3065
        %v3162 = vunpack.c.l.b16 %v3066
        %v3163 = vunpack.c.l.b16 %v3067
        %v3164 = vunpack.c.l.b16 %v3068
        %v3165 = vunpack.c.l.b16 %v3069
        %v3166 = vunpack.c.l.b16 %v3070
        %v3167 = vunpack.c.l.b16 %v3071
        %v3168 = vunpack.c.l.b16 %v3072
        %v3169 = vunpack.c.l.b16 %v3073
        %v3170 = vunpack.c.l.b16 %v3074
        %v3171 = vpack.c.b16 %v3124, %v3123
        %v3172 = vpack.c.b16 %v3126, %v3125
        %v3173 = vpack.c.b16 %v3128, %v3127
        %v3174 = vpack.c.b16 %v3130, %v3129
        %v3175 = vpack.c.b16 %v3132, %v3131
        %v3176 = vpack.c.b16 %v3134, %v3133
        %v3177 = vpack.c.b16 %v3136, %v3135
        %v3178 = vpack.c.b16 %v3138, %v3137
        %v3179 = vpack.c.b16 %v3140, %v3139
        %v3180 = vpack.c.b16 %v3142, %v3141
        %v3181 = vpack.c.b16 %v3144, %v3143
        %v3182 = vpack.c.b16 %v3146, %v3145
        %v3183 = vpack.c.b16 %v3148, %v3147
        %v3184 = vpack.c.b16 %v3150, %v3149
        %v3185 = vpack.c.b16 %v3152, %v3151
        %v3186 = vpack.c.b16 %v3154, %v3153
        %v3187 = vpack.c.b16 %v3156, %v3155
        %v3188 = vpack.c.b16 %v3158, %v3157
        %v3189 = vpack.c.b16 %v3160, %v3159
        %v3190 = vpack.c.b16 %v3162, %v3161
        %v3191 = vpack.c.b16 %v3164, %v3163
        %v3192 = vpack.c.b16 %v3166, %v3165
        %v3193 = vpack.c.b16 %v3168, %v3167
        %v3194 = vpack.c.b16 %v3170, %v3169
        %3219 = vmatprep.subr.bf16.mxu0 0
        %3220 = vmatpush1.bf16.msra.mxu0 %v3171
        %3221 = vmatprep.subr.bf16.mxu0 0
        %3222 = vmatpush1.bf16.msra.mxu0 %v3172
        %3223 = vmatprep.subr.bf16.mxu0 0
        %3224 = vmatpush1.bf16.msra.mxu0 %v3173
        %3225 = vmatprep.subr.bf16.mxu0 0
        %3226 = vmatpush1.bf16.msra.mxu0 %v3174
        %3227 = vmatprep.subr.bf16.mxu0 0
        %3228 = vmatpush1.bf16.msra.mxu0 %v3175
        %3229 = vmatprep.subr.bf16.mxu0 0
        %3230 = vmatpush1.bf16.msra.mxu0 %v3176
        %3231 = vmatprep.subr.bf16.mxu0 0
        %3232 = vmatpush1.bf16.msra.mxu0 %v3177
        %3233 = vmatprep.subr.bf16.mxu0 0
        %3234 = vmatpush1.bf16.msra.mxu0 %v3178
        %3235 = vmatprep.subr.bf16.mxu0 0
        %3236 = vmatpush1.bf16.msra.mxu0 %v3179
        %3237 = vmatprep.subr.bf16.mxu0 0
        %3238 = vmatpush1.bf16.msra.mxu0 %v3180
        %3239 = vmatprep.subr.bf16.mxu0 0
        %3240 = vmatpush1.bf16.msra.mxu0 %v3181
        %3241 = vmatprep.subr.bf16.mxu0 0
        %3242 = vmatpush1.bf16.msra.mxu0 %v3182
        %3243 = vmatprep.subr.bf16.mxu0 0
        %3244 = vmatpush1.bf16.msra.mxu0 %v3183
        %3245 = vmatprep.subr.bf16.mxu0 0
        %3246 = vmatpush1.bf16.msra.mxu0 %v3184
        %3247 = vmatprep.subr.bf16.mxu0 0
        %3248 = vmatpush1.bf16.msra.mxu0 %v3185
        %3249 = vmatprep.subr.bf16.mxu0 0
        %3250 = vmatpush1.bf16.msra.mxu0 %v3186
        %3251 = vmatprep.mubr.bf16.mxu0 %v2980
        %3252 = vmatmul.mubr.bf16.gmra.mrb[0].mxu0 %v2979
        %v3253 = vpop.f32.mrb[0].mxu0
        %v3254 = vadd.f32 0.0, %v3253
        %v3255 = vpop.f32.mrb[0].mxu0
        %v3256 = vpop.f32.mrb[0].mxu0
        %v3257 = vadd.f32 0.0, %v3256
        %v3258 = vpop.f32.mrb[0].mxu0
        %3259 = vmatprep.mubr.bf16.mxu0 %v2983
        %3260 = vmatmul.mubr.bf16.gmra.mrb[0].mxu0 %v2982
        %v3261 = vpop.f32.mrb[0].mxu0
        %v3262 = vadd.f32 0.0, %v3261
        %v3263 = vpop.f32.mrb[0].mxu0
        %v3264 = vpop.f32.mrb[0].mxu0
        %v3265 = vadd.f32 0.0, %v3264
        %v3266 = vpop.f32.mrb[0].mxu0
        %3267 = vmatprep.mubr.bf16.mxu0 %v2986
        %3268 = vmatmul.mubr.bf16.gmra.mrb[0].mxu0 %v2985
        %v3269 = vpop.f32.mrb[0].mxu0
        %v3270 = vadd.f32 0.0, %v3269
        %v3271 = vpop.f32.mrb[0].mxu0
        %v3272 = vpop.f32.mrb[0].mxu0
        %v3273 = vadd.f32 0.0, %v3272
        %v3274 = vpop.f32.mrb[0].mxu0
        %3275 = vmatprep.mubr.bf16.mxu0 %v2989
        %3276 = vmatmul.mubr.bf16.gmra.mrb[0].mxu0 %v2988
        %v3277 = vpop.f32.mrb[0].mxu0
        %v3278 = vadd.f32 0.0, %v3277
        %v3279 = vpop.f32.mrb[0].mxu0
        %v3280 = vpop.f32.mrb[0].mxu0
        %v3281 = vadd.f32 0.0, %v3280
        %v3282 = vpop.f32.mrb[0].mxu0
        %3283 = vmatprep.mubr.bf16.mxu0 %v2992
        %3284 = vmatmul.mubr.bf16.gmra.mrb[0].mxu0 %v2991
        %v3285 = vpop.f32.mrb[0].mxu0
        %v3286 = vadd.f32 0.0, %v3285
        %v3287 = vpop.f32.mrb[0].mxu0
        %v3288 = vpop.f32.mrb[0].mxu0
        %v3289 = vadd.f32 0.0, %v3288
        %v3290 = vpop.f32.mrb[0].mxu0
        %3291 = vmatprep.mubr.bf16.mxu0 %v2995
        %3292 = vmatmul.mubr.bf16.gmra.mrb[0].mxu0 %v2994
        %v3293 = vpop.f32.mrb[0].mxu0
        %v3294 = vadd.f32 0.0, %v3293
        %v3295 = vpop.f32.mrb[0].mxu0
        %v3296 = vpop.f32.mrb[0].mxu0
        %v3297 = vadd.f32 0.0, %v3296
        %v3298 = vpop.f32.mrb[0].mxu0
        %3299 = vmatprep.mubr.bf16.mxu0 %v2998
        %3300 = vmatmul.mubr.bf16.gmra.mrb[0].mxu0 %v2997
        %v3301 = vpop.f32.mrb[0].mxu0
        %v3302 = vadd.f32 0.0, %v3301
        %v3303 = vpop.f32.mrb[0].mxu0
        %v3304 = vpop.f32.mrb[0].mxu0
        %v3305 = vadd.f32 0.0, %v3304
        %v3306 = vpop.f32.mrb[0].mxu0
        %3307 = vmatprep.mubr.bf16.mxu0 %v3001
        %3308 = vmatmul.mubr.bf16.gmra.mrb[0].mxu0 %v3000
        %v3309 = vpop.f32.mrb[0].mxu0
        %v3310 = vadd.f32 0.0, %v3309
        %v3311 = vpop.f32.mrb[0].mxu0
        %v3312 = vpop.f32.mrb[0].mxu0
        %v3313 = vadd.f32 0.0, %v3312
        %v3314 = vpop.f32.mrb[0].mxu0
        %3315 = vmatprep.mubr.bf16.mxu0 %v3004
        %3316 = vmatmul.mubr.bf16.gmra.mrb[0].mxu0 %v3003
        %v3317 = vpop.f32.mrb[0].mxu0
        %v3318 = vadd.f32 0.0, %v3317
        %v3319 = vpop.f32.mrb[0].mxu0
        %v3320 = vpop.f32.mrb[0].mxu0
        %v3321 = vadd.f32 0.0, %v3320
        %v3322 = vpop.f32.mrb[0].mxu0
        %3323 = vmatprep.mubr.bf16.mxu0 %v3007
        %3324 = vmatmul.mubr.bf16.gmra.mrb[0].mxu0 %v3006
        %v3325 = vpop.f32.mrb[0].mxu0
        %v3326 = vadd.f32 0.0, %v3325
        %v3327 = vpop.f32.mrb[0].mxu0
        %v3328 = vpop.f32.mrb[0].mxu0
        %v3329 = vadd.f32 0.0, %v3328
        %v3330 = vpop.f32.mrb[0].mxu0
        %3331 = vmatprep.mubr.bf16.mxu0 %v3010
        %3332 = vmatmul.mubr.bf16.gmra.mrb[0].mxu0 %v3009
        %v3333 = vpop.f32.mrb[0].mxu0
        %v3334 = vadd.f32 0.0, %v3333
        %v3335 = vpop.f32.mrb[0].mxu0
        %v3336 = vpop.f32.mrb[0].mxu0
        %v3337 = vadd.f32 0.0, %v3336
        %v3338 = vpop.f32.mrb[0].mxu0
        %3339 = vmatprep.mubr.bf16.mxu0 %v3013
        %3340 = vmatmul.mubr.bf16.gmra.mrb[0].mxu0 %v3012
        %v3341 = vpop.f32.mrb[0].mxu0
        %v3342 = vadd.f32 0.0, %v3341
        %v3343 = vpop.f32.mrb[0].mxu0
        %v3344 = vpop.f32.mrb[0].mxu0
        %v3345 = vadd.f32 0.0, %v3344
        %v3346 = vpop.f32.mrb[0].mxu0
        %3347 = vmatprep.mubr.bf16.mxu0 %v3016
        %3348 = vmatmul.mubr.bf16.gmra.mrb[0].mxu0 %v3015
        %v3349 = vpop.f32.mrb[0].mxu0
        %v3350 = vadd.f32 0.0, %v3349
        %v3351 = vpop.f32.mrb[0].mxu0
        %v3352 = vpop.f32.mrb[0].mxu0
        %v3353 = vadd.f32 0.0, %v3352
        %v3354 = vpop.f32.mrb[0].mxu0
        %3355 = vmatprep.mubr.bf16.mxu0 %v3019
        %3356 = vmatmul.mubr.bf16.gmra.mrb[0].mxu0 %v3018
        %v3357 = vpop.f32.mrb[0].mxu0
        %v3358 = vadd.f32 0.0, %v3357
        %v3359 = vpop.f32.mrb[0].mxu0
        %v3360 = vpop.f32.mrb[0].mxu0
        %v3361 = vadd.f32 0.0, %v3360
        %v3362 = vpop.f32.mrb[0].mxu0
        %3363 = vmatprep.mubr.bf16.mxu0 %v3022
        %3364 = vmatmul.mubr.bf16.gmra.mrb[0].mxu0 %v3021
        %v3365 = vpop.f32.mrb[0].mxu0
        %v3366 = vadd.f32 0.0, %v3365
        %v3367 = vpop.f32.mrb[0].mxu0
        %v3368 = vpop.f32.mrb[0].mxu0
        %v3369 = vadd.f32 0.0, %v3368
        %v3370 = vpop.f32.mrb[0].mxu0
        %3371 = vmatprep.mubr.bf16.mxu0 %v3025
        %3372 = vmatmul.mubr.bf16.gmra.mrb[0].mxu0 %v3024
        %v3373 = vpop.f32.mrb[0].mxu0
        %v3374 = vadd.f32 0.0, %v3373
        %v3375 = vpop.f32.mrb[0].mxu0
        %v3376 = vpop.f32.mrb[0].mxu0
        %v3377 = vadd.f32 0.0, %v3376
        %v3378 = vpop.f32.mrb[0].mxu0
        %3379 = vdwg.mxu0
        %3380 = vmatprep.subr.bf16.mxu0 0
        %3381 = vmatpush1.bf16.msra.mxu0 %v3187
        %3382 = vmatprep.subr.bf16.mxu0 0
        %3383 = vmatpush1.bf16.msra.mxu0 %v3188
        %3384 = vmatprep.subr.bf16.mxu0 0
        %3385 = vmatpush1.bf16.msra.mxu0 %v3189
        %3386 = vmatprep.subr.bf16.mxu0 0
        %3387 = vmatpush1.bf16.msra.mxu0 %v3190
        %3388 = vmatprep.subr.bf16.mxu0 0
        %3389 = vmatpush1.bf16.msra.mxu0 %v3191
        %3390 = vmatprep.subr.bf16.mxu0 0
        %3391 = vmatpush1.bf16.msra.mxu0 %v3192
        %3392 = vmatprep.subr.bf16.mxu0 0
        %3393 = vmatpush1.bf16.msra.mxu0 %v3193
        %3394 = vmatprep.subr.bf16.mxu0 0
        %3395 = vmatpush1.bf16.msra.mxu0 %v3194
        %3396 = vmatprep.subr.bf16.mxu0 0
        %3397 = vmatpush1.bf16.msra.mxu0 0
        %3398 = vmatprep.subr.bf16.mxu0 0
        %3399 = vmatpush1.bf16.msra.mxu0 0
        %3400 = vmatprep.subr.bf16.mxu0 0
        %3401 = vmatpush1.bf16.msra.mxu0 0
        %3402 = vmatprep.subr.bf16.mxu0 0
        %3403 = vmatpush1.bf16.msra.mxu0 0
        %3404 = vmatprep.subr.bf16.mxu0 0
        %3405 = vmatpush1.bf16.msra.mxu0 0
        %3406 = vmatprep.subr.bf16.mxu0 0
        %3407 = vmatpush1.bf16.msra.mxu0 0
        %3408 = vmatprep.subr.bf16.mxu0 0
        %3409 = vmatpush1.bf16.msra.mxu0 0
        %3410 = vmatprep.subr.bf16.mxu0 0
        %3411 = vmatpush1.bf16.msra.mxu0 0
        %3412 = vmatprep.mubr.bf16.mxu0 0
        %3413 = vmatmul.mubr.bf16.gmra.mrb[0].mxu0 %v2981
        %v3414 = vpop.f32.mrb[0].mxu0
        %v3415 = vadd.f32 %v3254, %v3414
        %v3416 = vpop.f32.mrb[0].mxu0
        %v3417 = vpop.f32.mrb[0].mxu0
        %v3418 = vadd.f32 %v3257, %v3417
        %v3419 = vpop.f32.mrb[0].mxu0
        %3420 = vmatprep.mubr.bf16.mxu0 0
        %3421 = vmatmul.mubr.bf16.gmra.mrb[0].mxu0 %v2984
        %v3422 = vpop.f32.mrb[0].mxu0
        %v3423 = vadd.f32 %v3262, %v3422
        %v3424 = vpop.f32.mrb[0].mxu0
        %v3425 = vpop.f32.mrb[0].mxu0
        %v3426 = vadd.f32 %v3265, %v3425
        %v3427 = vpop.f32.mrb[0].mxu0
        %3428 = vmatprep.mubr.bf16.mxu0 0
        %3429 = vmatmul.mubr.bf16.gmra.mrb[0].mxu0 %v2987
        %v3430 = vpop.f32.mrb[0].mxu0
        %v3431 = vadd.f32 %v3270, %v3430
        %v3432 = vpop.f32.mrb[0].mxu0
        %v3433 = vpop.f32.mrb[0].mxu0
        %v3434 = vadd.f32 %v3273, %v3433
        %v3435 = vpop.f32.mrb[0].mxu0
        %3436 = vmatprep.mubr.bf16.mxu0 0
        %3437 = vmatmul.mubr.bf16.gmra.mrb[0].mxu0 %v2990
        %v3438 = vpop.f32.mrb[0].mxu0
        %v3439 = vadd.f32 %v3278, %v3438
        %v3440 = vpop.f32.mrb[0].mxu0
        %v3441 = vpop.f32.mrb[0].mxu0
        %v3442 = vadd.f32 %v3281, %v3441
        %v3443 = vpop.f32.mrb[0].mxu0
        %3444 = vmatprep.mubr.bf16.mxu0 0
        %3445 = vmatmul.mubr.bf16.gmra.mrb[0].mxu0 %v2993
        %v3446 = vpop.f32.mrb[0].mxu0
        %v3447 = vadd.f32 %v3286, %v3446
        %v3448 = vpop.f32.mrb[0].mxu0
        %v3449 = vpop.f32.mrb[0].mxu0
        %v3450 = vadd.f32 %v3289, %v3449
        %v3451 = vpop.f32.mrb[0].mxu0
        %3452 = vmatprep.mubr.bf16.mxu0 0
        %3453 = vmatmul.mubr.bf16.gmra.mrb[0].mxu0 %v2996
        %v3454 = vpop.f32.mrb[0].mxu0
        %v3455 = vadd.f32 %v3294, %v3454
        %v3456 = vpop.f32.mrb[0].mxu0
        %v3457 = vpop.f32.mrb[0].mxu0
        %v3458 = vadd.f32 %v3297, %v3457
        %v3459 = vpop.f32.mrb[0].mxu0
        %3460 = vmatprep.mubr.bf16.mxu0 0
        %3461 = vmatmul.mubr.bf16.gmra.mrb[0].mxu0 %v2999
        %v3462 = vpop.f32.mrb[0].mxu0
        %v3463 = vadd.f32 %v3302, %v3462
        %v3464 = vpop.f32.mrb[0].mxu0
        %v3465 = vpop.f32.mrb[0].mxu0
        %v3466 = vadd.f32 %v3305, %v3465
        %v3467 = vpop.f32.mrb[0].mxu0
        %3468 = vmatprep.mubr.bf16.mxu0 0
        %3469 = vmatmul.mubr.bf16.gmra.mrb[0].mxu0 %v3002
        %v3470 = vpop.f32.mrb[0].mxu0
        %v3471 = vadd.f32 %v3310, %v3470
        %v3472 = vpop.f32.mrb[0].mxu0
        %v3473 = vpop.f32.mrb[0].mxu0
        %v3474 = vadd.f32 %v3313, %v3473
        %v3475 = vpop.f32.mrb[0].mxu0
        %3476 = vmatprep.mubr.bf16.mxu0 0
        %3477 = vmatmul.mubr.bf16.gmra.mrb[0].mxu0 %v3005
        %v3478 = vpop.f32.mrb[0].mxu0
        %v3479 = vadd.f32 %v3318, %v3478
        %v3480 = vpop.f32.mrb[0].mxu0
        %v3481 = vpop.f32.mrb[0].mxu0
        %v3482 = vadd.f32 %v3321, %v3481
        %v3483 = vpop.f32.mrb[0].mxu0
        %3484 = vmatprep.mubr.bf16.mxu0 0
        %3485 = vmatmul.mubr.bf16.gmra.mrb[0].mxu0 %v3008
        %v3486 = vpop.f32.mrb[0].mxu0
        %v3487 = vadd.f32 %v3326, %v3486
        %v3488 = vpop.f32.mrb[0].mxu0
        %v3489 = vpop.f32.mrb[0].mxu0
        %v3490 = vadd.f32 %v3329, %v3489
        %v3491 = vpop.f32.mrb[0].mxu0
        %3492 = vmatprep.mubr.bf16.mxu0 0
        %3493 = vmatmul.mubr.bf16.gmra.mrb[0].mxu0 %v3011
        %v3494 = vpop.f32.mrb[0].mxu0
        %v3495 = vadd.f32 %v3334, %v3494
        %v3496 = vpop.f32.mrb[0].mxu0
        %v3497 = vpop.f32.mrb[0].mxu0
        %v3498 = vadd.f32 %v3337, %v3497
        %v3499 = vpop.f32.mrb[0].mxu0
        %3500 = vmatprep.mubr.bf16.mxu0 0
        %3501 = vmatmul.mubr.bf16.gmra.mrb[0].mxu0 %v3014
        %v3502 = vpop.f32.mrb[0].mxu0
        %v3503 = vadd.f32 %v3342, %v3502
        %v3504 = vpop.f32.mrb[0].mxu0
        %v3505 = vpop.f32.mrb[0].mxu0
        %v3506 = vadd.f32 %v3345, %v3505
        %v3507 = vpop.f32.mrb[0].mxu0
        %3508 = vmatprep.mubr.bf16.mxu0 0
        %3509 = vmatmul.mubr.bf16.gmra.mrb[0].mxu0 %v3017
        %v3510 = vpop.f32.mrb[0].mxu0
        %v3511 = vadd.f32 %v3350, %v3510
        %v3512 = vpop.f32.mrb[0].mxu0
        %v3513 = vpop.f32.mrb[0].mxu0
        %v3514 = vadd.f32 %v3353, %v3513
        %v3515 = vpop.f32.mrb[0].mxu0
        %3516 = vmatprep.mubr.bf16.mxu0 0
        %3517 = vmatmul.mubr.bf16.gmra.mrb[0].mxu0 %v3020
        %v3518 = vpop.f32.mrb[0].mxu0
        %v3519 = vadd.f32 %v3358, %v3518
        %v3520 = vpop.f32.mrb[0].mxu0
        %v3521 = vpop.f32.mrb[0].mxu0
        %v3522 = vadd.f32 %v3361, %v3521
        %v3523 = vpop.f32.mrb[0].mxu0
        %3524 = vmatprep.mubr.bf16.mxu0 0
        %3525 = vmatmul.mubr.bf16.gmra.mrb[0].mxu0 %v3023
        %v3526 = vpop.f32.mrb[0].mxu0
        %v3527 = vadd.f32 %v3366, %v3526
        %v3528 = vpop.f32.mrb[0].mxu0
        %v3529 = vpop.f32.mrb[0].mxu0
        %v3530 = vadd.f32 %v3369, %v3529
        %v3531 = vpop.f32.mrb[0].mxu0
        %3532 = vmatprep.mubr.bf16.mxu0 0
        %3533 = vmatmul.mubr.bf16.gmra.mrb[0].mxu0 %v3026
        %v3534 = vpop.f32.mrb[0].mxu0
        %v3535 = vadd.f32 %v3374, %v3534
        %v3536 = vpop.f32.mrb[0].mxu0
        %v3537 = vpop.f32.mrb[0].mxu0
        %v3538 = vadd.f32 %v3377, %v3537
        %v3539 = vpop.f32.mrb[0].mxu0
        %3540 = vdwg.mxu0
        %3541 = vst [vmem:[#allocation4] sm:$0xff] %v3415
        %3542 = vst [vmem:[#allocation4 + $0x8] sm:$0xff] %v3418
        %3543 = vst [vmem:[#allocation4 + $0x10] sm:$0xff] %v3423
        %3544 = vst [vmem:[#allocation4 + $0x18] sm:$0xff] %v3426
        %3545 = vst [vmem:[#allocation4 + $0x20] sm:$0xff] %v3431
        %3546 = vst [vmem:[#allocation4 + $0x28] sm:$0xff] %v3434
        %3547 = vst [vmem:[#allocation4 + $0x30] sm:$0xff] %v3439
        %3548 = vst [vmem:[#allocation4 + $0x38] sm:$0xff] %v3442
        %3549 = vst [vmem:[#allocation4 + $0x40] sm:$0xff] %v3447
        %3550 = vst [vmem:[#allocation4 + $0x48] sm:$0xff] %v3450
        %3551 = vst [vmem:[#allocation4 + $0x50] sm:$0xff] %v3455
        %3552 = vst [vmem:[#allocation4 + $0x58] sm:$0xff] %v3458
        %3553 = vst [vmem:[#allocation4 + $0x60] sm:$0xff] %v3463
        %3554 = vst [vmem:[#allocation4 + $0x68] sm:$0xff] %v3466
        %3555 = vst [vmem:[#allocation4 + $0x70] sm:$0xff] %v3471
        %3556 = vst [vmem:[#allocation4 + $0x78] sm:$0xff] %v3474
        %3557 = vst [vmem:[#allocation4 + $0x80] sm:$0xff] %v3479
        %3558 = vst [vmem:[#allocation4 + $0x88] sm:$0xff] %v3482
        %3559 = vst [vmem:[#allocation4 + $0x90] sm:$0xff] %v3487
        %3560 = vst [vmem:[#allocation4 + $0x98] sm:$0xff] %v3490
        %3561 = vst [vmem:[#allocation4 + $0xa0] sm:$0xff] %v3495
        %3562 = vst [vmem:[#allocation4 + $0xa8] sm:$0xff] %v3498
        %3563 = vst [vmem:[#allocation4 + $0xb0] sm:$0xff] %v3503
        %3564 = vst [vmem:[#allocation4 + $0xb8] sm:$0xff] %v3506
        %3565 = vst [vmem:[#allocation4 + $0xc0] sm:$0xff] %v3511
        %3566 = vst [vmem:[#allocation4 + $0xc8] sm:$0xff] %v3514
        %3567 = vst [vmem:[#allocation4 + $0xd0] sm:$0xff] %v3519
        %3568 = vst [vmem:[#allocation4 + $0xd8] sm:$0xff] %v3522
        %3569 = vst [vmem:[#allocation4 + $0xe0] sm:$0xff] %v3527
        %3570 = vst [vmem:[#allocation4 + $0xe8] sm:$0xff] %v3530
        %3571 = vst [vmem:[#allocation4 + $0xf0] sm:$0xff] %v3535
        %3572 = vst [vmem:[#allocation4 + $0xf8] sm:$0xff] %v3538
        %v3573 = vld [vmem:[%s2930] sm:$0xff]
        %v3574 = vld [vmem:[%s2930 + $0x8] sm:$0xff]
        %v3575 = vld [vmem:[%s2930 + $0x10] sm:$0xff]
        %v3576 = vld [vmem:[%s2930 + $0x18] sm:$0xff]
        %v3577 = vld [vmem:[%s2930 + $0x20] sm:$0xff]
        %v3578 = vld [vmem:[%s2930 + $0x28] sm:$0xff]
        %v3579 = vld [vmem:[%s2930 + $0x30] sm:$0xff]
        %v3580 = vld [vmem:[%s2930 + $0x38] sm:$0xff]
        %v3581 = vld [vmem:[%s2930 + $0x40] sm:$0xff]
        %v3582 = vld [vmem:[%s2930 + $0x48] sm:$0xff]
        %v3583 = vld [vmem:[%s2930 + $0x50] sm:$0xff]
        %v3584 = vld [vmem:[%s2930 + $0x58] sm:$0xff]
        %v3585 = vld [vmem:[%s2930 + $0x60] sm:$0xff]
        %v3586 = vld [vmem:[%s2930 + $0x68] sm:$0xff]
        %v3587 = vld [vmem:[%s2930 + $0x70] sm:$0xff]
        %v3588 = vld [vmem:[%s2930 + $0x78] sm:$0xff]
        %v3589 = vld [vmem:[%s2930 + $0x80] sm:$0xff]
        %v3590 = vld [vmem:[%s2930 + $0x88] sm:$0xff]
        %v3591 = vld [vmem:[%s2930 + $0x90] sm:$0xff]
        %v3592 = vld [vmem:[%s2930 + $0x98] sm:$0xff]
        %v3593 = vld [vmem:[%s2930 + $0xa0] sm:$0xff]
        %v3594 = vld [vmem:[%s2930 + $0xa8] sm:$0xff]
        %v3595 = vld [vmem:[%s2930 + $0xb0] sm:$0xff]
        %v3596 = vld [vmem:[%s2930 + $0xb8] sm:$0xff]
        %v3597 = vld [vmem:[%s2930 + $0xc0] sm:$0xff]
        %v3598 = vld [vmem:[%s2930 + $0xc8] sm:$0xff]
        %v3599 = vld [vmem:[%s2930 + $0xd0] sm:$0xff]
        %v3600 = vld [vmem:[%s2930 + $0xd8] sm:$0xff]
        %v3601 = vld [vmem:[%s2930 + $0xe0] sm:$0xff]
        %v3602 = vld [vmem:[%s2930 + $0xe8] sm:$0xff]
        %v3603 = vld [vmem:[%s2930 + $0xf0] sm:$0xff]
        %v3604 = vld [vmem:[%s2930 + $0xf8] sm:$0xff]
        %v3605 = vld [vmem:[%s2930 + $0x100] sm:$0xff]
        %v3606 = vld [vmem:[%s2930 + $0x108] sm:$0xff]
        %v3607 = vld [vmem:[%s2930 + $0x110] sm:$0xff]
        %v3608 = vld [vmem:[%s2930 + $0x118] sm:$0xff]
        %v3609 = vld [vmem:[%s2930 + $0x120] sm:$0xff]
        %v3610 = vld [vmem:[%s2930 + $0x128] sm:$0xff]
        %v3611 = vld [vmem:[%s2930 + $0x130] sm:$0xff]
        %v3612 = vld [vmem:[%s2930 + $0x138] sm:$0xff]
        %v3613 = vld [vmem:[%s2930 + $0x140] sm:$0xff]
        %v3614 = vld [vmem:[%s2930 + $0x148] sm:$0xff]
        %v3615 = vld [vmem:[%s2930 + $0x150] sm:$0xff]
        %v3616 = vld [vmem:[%s2930 + $0x158] sm:$0xff]
        %v3617 = vld [vmem:[%s2930 + $0x160] sm:$0xff]
        %v3618 = vld [vmem:[%s2930 + $0x168] sm:$0xff]
        %v3619 = vld [vmem:[%s2930 + $0x170] sm:$0xff]
        %v3620 = vld [vmem:[%s2930 + $0x178] sm:$0xff]
        %s3621 = scalar_lea.vmem [#allocation10], 192
        %v3622 = vld [vmem:[%s3621] sm:$0xf]
        %v3623 = vld [vmem:[%s3621 + $0x4] sm:$0xf]
        %v3624 = vld [vmem:[%s3621 + $0x8] sm:$0xf]
        %v3625 = vld [vmem:[%s3621 + $0xc] sm:$0xf]
        %v3626 = vld [vmem:[%s3621 + $0x10] sm:$0xf]
        %v3627 = vld [vmem:[%s3621 + $0x14] sm:$0xf]
        %v3628 = vld [vmem:[%s3621 + $0x18] sm:$0xf]
        %v3629 = vld [vmem:[%s3621 + $0x1c] sm:$0xf]
        %v3630 = vld [vmem:[%s3621 + $0x20] sm:$0xf]
        %v3631 = vld [vmem:[%s3621 + $0x24] sm:$0xf]
        %v3632 = vld [vmem:[%s3621 + $0x28] sm:$0xf]
        %v3633 = vld [vmem:[%s3621 + $0x2c] sm:$0xf]
        %v3634 = vld [vmem:[%s3621 + $0x30] sm:$0xf]
        %v3635 = vld [vmem:[%s3621 + $0x34] sm:$0xf]
        %v3636 = vld [vmem:[%s3621 + $0x38] sm:$0xf]
        %v3637 = vld [vmem:[%s3621 + $0x3c] sm:$0xf]
        %v3638 = vld [vmem:[%s3621 + $0x40] sm:$0xf]
        %v3639 = vld [vmem:[%s3621 + $0x44] sm:$0xf]
        %v3640 = vld [vmem:[%s3621 + $0x48] sm:$0xf]
        %v3641 = vld [vmem:[%s3621 + $0x4c] sm:$0xf]
        %v3642 = vld [vmem:[%s3621 + $0x50] sm:$0xf]
        %v3643 = vld [vmem:[%s3621 + $0x54] sm:$0xf]
        %v3644 = vld [vmem:[%s3621 + $0x58] sm:$0xf]
        %v3645 = vld [vmem:[%s3621 + $0x5c] sm:$0xf]
        %v3646 = vld [vmem:[%s3621 + $0x60] sm:$0xf]
        %v3647 = vld [vmem:[%s3621 + $0x64] sm:$0xf]
        %v3648 = vld [vmem:[%s3621 + $0x68] sm:$0xf]
        %v3649 = vld [vmem:[%s3621 + $0x6c] sm:$0xf]
        %v3650 = vld [vmem:[%s3621 + $0x70] sm:$0xf]
        %v3651 = vld [vmem:[%s3621 + $0x74] sm:$0xf]
        %v3652 = vld [vmem:[%s3621 + $0x78] sm:$0xf]
        %v3653 = vld [vmem:[%s3621 + $0x7c] sm:$0xf]
        %v3654 = vld [vmem:[%s3621 + $0x80] sm:$0xf]
        %v3655 = vld [vmem:[%s3621 + $0x84] sm:$0xf]
        %v3656 = vld [vmem:[%s3621 + $0x88] sm:$0xf]
        %v3657 = vld [vmem:[%s3621 + $0x8c] sm:$0xf]
        %v3658 = vld [vmem:[%s3621 + $0x90] sm:$0xf]
        %v3659 = vld [vmem:[%s3621 + $0x94] sm:$0xf]
        %v3660 = vld [vmem:[%s3621 + $0x98] sm:$0xf]
        %v3661 = vld [vmem:[%s3621 + $0x9c] sm:$0xf]
        %v3662 = vld [vmem:[%s3621 + $0xa0] sm:$0xf]
        %v3663 = vld [vmem:[%s3621 + $0xa4] sm:$0xf]
        %v3664 = vld [vmem:[%s3621 + $0xa8] sm:$0xf]
        %v3665 = vld [vmem:[%s3621 + $0xac] sm:$0xf]
        %v3666 = vld [vmem:[%s3621 + $0xb0] sm:$0xf]
        %v3667 = vld [vmem:[%s3621 + $0xb4] sm:$0xf]
        %v3668 = vld [vmem:[%s3621 + $0xb8] sm:$0xf]
        %v3669 = vld [vmem:[%s3621 + $0xbc] sm:$0xf]
        %v3718 = vunpack.c.l.b16 %v3622
        %v3719 = vunpack.c.l.b16 %v3623
        %v3720 = vunpack.c.l.b16 %v3624
        %v3721 = vunpack.c.l.b16 %v3625
        %v3722 = vunpack.c.l.b16 %v3626
        %v3723 = vunpack.c.l.b16 %v3627
        %v3724 = vunpack.c.l.b16 %v3628
        %v3725 = vunpack.c.l.b16 %v3629
        %v3726 = vunpack.c.l.b16 %v3630
        %v3727 = vunpack.c.l.b16 %v3631
        %v3728 = vunpack.c.l.b16 %v3632
        %v3729 = vunpack.c.l.b16 %v3633
        %v3730 = vunpack.c.l.b16 %v3634
        %v3731 = vunpack.c.l.b16 %v3635
        %v3732 = vunpack.c.l.b16 %v3636
        %v3733 = vunpack.c.l.b16 %v3637
        %v3734 = vunpack.c.l.b16 %v3638
        %v3735 = vunpack.c.l.b16 %v3639
        %v3736 = vunpack.c.l.b16 %v3640
        %v3737 = vunpack.c.l.b16 %v3641
        %v3738 = vunpack.c.l.b16 %v3642
        %v3739 = vunpack.c.l.b16 %v3643
        %v3740 = vunpack.c.l.b16 %v3644
        %v3741 = vunpack.c.l.b16 %v3645
        %v3742 = vunpack.c.l.b16 %v3646
        %v3743 = vunpack.c.l.b16 %v3647
        %v3744 = vunpack.c.l.b16 %v3648
        %v3745 = vunpack.c.l.b16 %v3649
        %v3746 = vunpack.c.l.b16 %v3650
        %v3747 = vunpack.c.l.b16 %v3651
        %v3748 = vunpack.c.l.b16 %v3652
        %v3749 = vunpack.c.l.b16 %v3653
        %v3750 = vunpack.c.l.b16 %v3654
        %v3751 = vunpack.c.l.b16 %v3655
        %v3752 = vunpack.c.l.b16 %v3656
        %v3753 = vunpack.c.l.b16 %v3657
        %v3754 = vunpack.c.l.b16 %v3658
        %v3755 = vunpack.c.l.b16 %v3659
        %v3756 = vunpack.c.l.b16 %v3660
        %v3757 = vunpack.c.l.b16 %v3661
        %v3758 = vunpack.c.l.b16 %v3662
        %v3759 = vunpack.c.l.b16 %v3663
        %v3760 = vunpack.c.l.b16 %v3664
        %v3761 = vunpack.c.l.b16 %v3665
        %v3762 = vunpack.c.l.b16 %v3666
        %v3763 = vunpack.c.l.b16 %v3667
        %v3764 = vunpack.c.l.b16 %v3668
        %v3765 = vunpack.c.l.b16 %v3669
        %v3766 = vpack.c.b16 %v3719, %v3718
        %v3767 = vpack.c.b16 %v3721, %v3720
        %v3768 = vpack.c.b16 %v3723, %v3722
        %v3769 = vpack.c.b16 %v3725, %v3724
        %v3770 = vpack.c.b16 %v3727, %v3726
        %v3771 = vpack.c.b16 %v3729, %v3728
        %v3772 = vpack.c.b16 %v3731, %v3730
        %v3773 = vpack.c.b16 %v3733, %v3732
        %v3774 = vpack.c.b16 %v3735, %v3734
        %v3775 = vpack.c.b16 %v3737, %v3736
        %v3776 = vpack.c.b16 %v3739, %v3738
        %v3777 = vpack.c.b16 %v3741, %v3740
        %v3778 = vpack.c.b16 %v3743, %v3742
        %v3779 = vpack.c.b16 %v3745, %v3744
        %v3780 = vpack.c.b16 %v3747, %v3746
        %v3781 = vpack.c.b16 %v3749, %v3748
        %v3782 = vpack.c.b16 %v3751, %v3750
        %v3783 = vpack.c.b16 %v3753, %v3752
        %v3784 = vpack.c.b16 %v3755, %v3754
        %v3785 = vpack.c.b16 %v3757, %v3756
        %v3786 = vpack.c.b16 %v3759, %v3758
        %v3787 = vpack.c.b16 %v3761, %v3760
        %v3788 = vpack.c.b16 %v3763, %v3762
        %v3789 = vpack.c.b16 %v3765, %v3764
        %3814 = vmatprep.subr.bf16.mxu0 0
        %3815 = vmatpush1.bf16.msra.mxu0 %v3766
        %3816 = vmatprep.subr.bf16.mxu0 0
        %3817 = vmatpush1.bf16.msra.mxu0 %v3767
        %3818 = vmatprep.subr.bf16.mxu0 0
        %3819 = vmatpush1.bf16.msra.mxu0 %v3768
        %3820 = vmatprep.subr.bf16.mxu0 0
        %3821 = vmatpush1.bf16.msra.mxu0 %v3769
        %3822 = vmatprep.subr.bf16.mxu0 0
        %3823 = vmatpush1.bf16.msra.mxu0 %v3770
        %3824 = vmatprep.subr.bf16.mxu0 0
        %3825 = vmatpush1.bf16.msra.mxu0 %v3771
        %3826 = vmatprep.subr.bf16.mxu0 0
        %3827 = vmatpush1.bf16.msra.mxu0 %v3772
        %3828 = vmatprep.subr.bf16.mxu0 0
        %3829 = vmatpush1.bf16.msra.mxu0 %v3773
        %3830 = vmatprep.subr.bf16.mxu0 0
        %3831 = vmatpush1.bf16.msra.mxu0 %v3774
        %3832 = vmatprep.subr.bf16.mxu0 0
        %3833 = vmatpush1.bf16.msra.mxu0 %v3775
        %3834 = vmatprep.subr.bf16.mxu0 0
        %3835 = vmatpush1.bf16.msra.mxu0 %v3776
        %3836 = vmatprep.subr.bf16.mxu0 0
        %3837 = vmatpush1.bf16.msra.mxu0 %v3777
        %3838 = vmatprep.subr.bf16.mxu0 0
        %3839 = vmatpush1.bf16.msra.mxu0 %v3778
        %3840 = vmatprep.subr.bf16.mxu0 0
        %3841 = vmatpush1.bf16.msra.mxu0 %v3779
        %3842 = vmatprep.subr.bf16.mxu0 0
        %3843 = vmatpush1.bf16.msra.mxu0 %v3780
        %3844 = vmatprep.subr.bf16.mxu0 0
        %3845 = vmatpush1.bf16.msra.mxu0 %v3781
        %3846 = vmatprep.mubr.bf16.mxu0 %v3574
        %3847 = vmatmul.mubr.bf16.gmra.mrb[0].mxu0 %v3573
        %v3848 = vpop.f32.mrb[0].mxu0
        %v3849 = vadd.f32 0.0, %v3848
        %v3850 = vpop.f32.mrb[0].mxu0
        %v3851 = vpop.f32.mrb[0].mxu0
        %v3852 = vadd.f32 0.0, %v3851
        %v3853 = vpop.f32.mrb[0].mxu0
        %3854 = vmatprep.mubr.bf16.mxu0 %v3577
        %3855 = vmatmul.mubr.bf16.gmra.mrb[0].mxu0 %v3576
        %v3856 = vpop.f32.mrb[0].mxu0
        %v3857 = vadd.f32 0.0, %v3856
        %v3858 = vpop.f32.mrb[0].mxu0
        %v3859 = vpop.f32.mrb[0].mxu0
        %v3860 = vadd.f32 0.0, %v3859
        %v3861 = vpop.f32.mrb[0].mxu0
        %3862 = vmatprep.mubr.bf16.mxu0 %v3580
        %3863 = vmatmul.mubr.bf16.gmra.mrb[0].mxu0 %v3579
        %v3864 = vpop.f32.mrb[0].mxu0
        %v3865 = vadd.f32 0.0, %v3864
        %v3866 = vpop.f32.mrb[0].mxu0
        %v3867 = vpop.f32.mrb[0].mxu0
        %v3868 = vadd.f32 0.0, %v3867
        %v3869 = vpop.f32.mrb[0].mxu0
        %3870 = vmatprep.mubr.bf16.mxu0 %v3583
        %3871 = vmatmul.mubr.bf16.gmra.mrb[0].mxu0 %v3582
        %v3872 = vpop.f32.mrb[0].mxu0
        %v3873 = vadd.f32 0.0, %v3872
        %v3874 = vpop.f32.mrb[0].mxu0
        %v3875 = vpop.f32.mrb[0].mxu0
        %v3876 = vadd.f32 0.0, %v3875
        %v3877 = vpop.f32.mrb[0].mxu0
        %3878 = vmatprep.mubr.bf16.mxu0 %v3586
        %3879 = vmatmul.mubr.bf16.gmra.mrb[0].mxu0 %v3585
        %v3880 = vpop.f32.mrb[0].mxu0
        %v3881 = vadd.f32 0.0, %v3880
        %v3882 = vpop.f32.mrb[0].mxu0
        %v3883 = vpop.f32.mrb[0].mxu0
        %v3884 = vadd.f32 0.0, %v3883
        %v3885 = vpop.f32.mrb[0].mxu0
        %3886 = vmatprep.mubr.bf16.mxu0 %v3589
        %3887 = vmatmul.mubr.bf16.gmra.mrb[0].mxu0 %v3588
        %v3888 = vpop.f32.mrb[0].mxu0
        %v3889 = vadd.f32 0.0, %v3888
        %v3890 = vpop.f32.mrb[0].mxu0
        %v3891 = vpop.f32.mrb[0].mxu0
        %v3892 = vadd.f32 0.0, %v3891
        %v3893 = vpop.f32.mrb[0].mxu0
        %3894 = vmatprep.mubr.bf16.mxu0 %v3592
        %3895 = vmatmul.mubr.bf16.gmra.mrb[0].mxu0 %v3591
        %v3896 = vpop.f32.mrb[0].mxu0
        %v3897 = vadd.f32 0.0, %v3896
        %v3898 = vpop.f32.mrb[0].mxu0
        %v3899 = vpop.f32.mrb[0].mxu0
        %v3900 = vadd.f32 0.0, %v3899
        %v3901 = vpop.f32.mrb[0].mxu0
        %3902 = vmatprep.mubr.bf16.mxu0 %v3595
        %3903 = vmatmul.mubr.bf16.gmra.mrb[0].mxu0 %v3594
        %v3904 = vpop.f32.mrb[0].mxu0
        %v3905 = vadd.f32 0.0, %v3904
        %v3906 = vpop.f32.mrb[0].mxu0
        %v3907 = vpop.f32.mrb[0].mxu0
        %v3908 = vadd.f32 0.0, %v3907
        %v3909 = vpop.f32.mrb[0].mxu0
        %3910 = vmatprep.mubr.bf16.mxu0 %v3598
        %3911 = vmatmul.mubr.bf16.gmra.mrb[0].mxu0 %v3597
        %v3912 = vpop.f32.mrb[0].mxu0
        %v3913 = vadd.f32 0.0, %v3912
        %v3914 = vpop.f32.mrb[0].mxu0
        %v3915 = vpop.f32.mrb[0].mxu0
        %v3916 = vadd.f32 0.0, %v3915
        %v3917 = vpop.f32.mrb[0].mxu0
        %3918 = vmatprep.mubr.bf16.mxu0 %v3601
        %3919 = vmatmul.mubr.bf16.gmra.mrb[0].mxu0 %v3600
        %v3920 = vpop.f32.mrb[0].mxu0
        %v3921 = vadd.f32 0.0, %v3920
        %v3922 = vpop.f32.mrb[0].mxu0
        %v3923 = vpop.f32.mrb[0].mxu0
        %v3924 = vadd.f32 0.0, %v3923
        %v3925 = vpop.f32.mrb[0].mxu0
        %3926 = vmatprep.mubr.bf16.mxu0 %v3604
        %3927 = vmatmul.mubr.bf16.gmra.mrb[0].mxu0 %v3603
        %v3928 = vpop.f32.mrb[0].mxu0
        %v3929 = vadd.f32 0.0, %v3928
        %v3930 = vpop.f32.mrb[0].mxu0
        %v3931 = vpop.f32.mrb[0].mxu0
        %v3932 = vadd.f32 0.0, %v3931
        %v3933 = vpop.f32.mrb[0].mxu0
        %3934 = vmatprep.mubr.bf16.mxu0 %v3607
        %3935 = vmatmul.mubr.bf16.gmra.mrb[0].mxu0 %v3606
        %v3936 = vpop.f32.mrb[0].mxu0
        %v3937 = vadd.f32 0.0, %v3936
        %v3938 = vpop.f32.mrb[0].mxu0
        %v3939 = vpop.f32.mrb[0].mxu0
        %v3940 = vadd.f32 0.0, %v3939
        %v3941 = vpop.f32.mrb[0].mxu0
        %3942 = vmatprep.mubr.bf16.mxu0 %v3610
        %3943 = vmatmul.mubr.bf16.gmra.mrb[0].mxu0 %v3609
        %v3944 = vpop.f32.mrb[0].mxu0
        %v3945 = vadd.f32 0.0, %v3944
        %v3946 = vpop.f32.mrb[0].mxu0
        %v3947 = vpop.f32.mrb[0].mxu0
        %v3948 = vadd.f32 0.0, %v3947
        %v3949 = vpop.f32.mrb[0].mxu0
        %3950 = vmatprep.mubr.bf16.mxu0 %v3613
        %3951 = vmatmul.mubr.bf16.gmra.mrb[0].mxu0 %v3612
        %v3952 = vpop.f32.mrb[0].mxu0
        %v3953 = vadd.f32 0.0, %v3952
        %v3954 = vpop.f32.mrb[0].mxu0
        %v3955 = vpop.f32.mrb[0].mxu0
        %v3956 = vadd.f32 0.0, %v3955
        %v3957 = vpop.f32.mrb[0].mxu0
        %3958 = vmatprep.mubr.bf16.mxu0 %v3616
        %3959 = vmatmul.mubr.bf16.gmra.mrb[0].mxu0 %v3615
        %v3960 = vpop.f32.mrb[0].mxu0
        %v3961 = vadd.f32 0.0, %v3960
        %v3962 = vpop.f32.mrb[0].mxu0
        %v3963 = vpop.f32.mrb[0].mxu0
        %v3964 = vadd.f32 0.0, %v3963
        %v3965 = vpop.f32.mrb[0].mxu0
        %3966 = vmatprep.mubr.bf16.mxu0 %v3619
        %3967 = vmatmul.mubr.bf16.gmra.mrb[0].mxu0 %v3618
        %v3968 = vpop.f32.mrb[0].mxu0
        %v3969 = vadd.f32 0.0, %v3968
        %v3970 = vpop.f32.mrb[0].mxu0
        %v3971 = vpop.f32.mrb[0].mxu0
        %v3972 = vadd.f32 0.0, %v3971
        %v3973 = vpop.f32.mrb[0].mxu0
        %3974 = vdwg.mxu0
        %3975 = vmatprep.subr.bf16.mxu0 0
        %3976 = vmatpush1.bf16.msra.mxu0 %v3782
        %3977 = vmatprep.subr.bf16.mxu0 0
        %3978 = vmatpush1.bf16.msra.mxu0 %v3783
        %3979 = vmatprep.subr.bf16.mxu0 0
        %3980 = vmatpush1.bf16.msra.mxu0 %v3784
        %3981 = vmatprep.subr.bf16.mxu0 0
        %3982 = vmatpush1.bf16.msra.mxu0 %v3785
        %3983 = vmatprep.subr.bf16.mxu0 0
        %3984 = vmatpush1.bf16.msra.mxu0 %v3786
        %3985 = vmatprep.subr.bf16.mxu0 0
        %3986 = vmatpush1.bf16.msra.mxu0 %v3787
        %3987 = vmatprep.subr.bf16.mxu0 0
        %3988 = vmatpush1.bf16.msra.mxu0 %v3788
        %3989 = vmatprep.subr.bf16.mxu0 0
        %3990 = vmatpush1.bf16.msra.mxu0 %v3789
        %3991 = vmatprep.subr.bf16.mxu0 0
        %3992 = vmatpush1.bf16.msra.mxu0 0
        %3993 = vmatprep.subr.bf16.mxu0 0
        %3994 = vmatpush1.bf16.msra.mxu0 0
        %3995 = vmatprep.subr.bf16.mxu0 0
        %3996 = vmatpush1.bf16.msra.mxu0 0
        %3997 = vmatprep.subr.bf16.mxu0 0
        %3998 = vmatpush1.bf16.msra.mxu0 0
        %3999 = vmatprep.subr.bf16.mxu0 0
        %4000 = vmatpush1.bf16.msra.mxu0 0
        %4001 = vmatprep.subr.bf16.mxu0 0
        %4002 = vmatpush1.bf16.msra.mxu0 0
        %4003 = vmatprep.subr.bf16.mxu0 0
        %4004 = vmatpush1.bf16.msra.mxu0 0
        %4005 = vmatprep.subr.bf16.mxu0 0
        %4006 = vmatpush1.bf16.msra.mxu0 0
        %4007 = vmatprep.mubr.bf16.mxu0 0
        %4008 = vmatmul.mubr.bf16.gmra.mrb[0].mxu0 %v3575
        %v4009 = vpop.f32.mrb[0].mxu0
        %v4010 = vadd.f32 %v3849, %v4009
        %v4011 = vpop.f32.mrb[0].mxu0
        %v4012 = vpop.f32.mrb[0].mxu0
        %v4013 = vadd.f32 %v3852, %v4012
        %v4014 = vpop.f32.mrb[0].mxu0
        %4015 = vmatprep.mubr.bf16.mxu0 0
        %4016 = vmatmul.mubr.bf16.gmra.mrb[0].mxu0 %v3578
        %v4017 = vpop.f32.mrb[0].mxu0
        %v4018 = vadd.f32 %v3857, %v4017
        %v4019 = vpop.f32.mrb[0].mxu0
        %v4020 = vpop.f32.mrb[0].mxu0
        %v4021 = vadd.f32 %v3860, %v4020
        %v4022 = vpop.f32.mrb[0].mxu0
        %4023 = vmatprep.mubr.bf16.mxu0 0
        %4024 = vmatmul.mubr.bf16.gmra.mrb[0].mxu0 %v3581
        %v4025 = vpop.f32.mrb[0].mxu0
        %v4026 = vadd.f32 %v3865, %v4025
        %v4027 = vpop.f32.mrb[0].mxu0
        %v4028 = vpop.f32.mrb[0].mxu0
        %v4029 = vadd.f32 %v3868, %v4028
        %v4030 = vpop.f32.mrb[0].mxu0
        %4031 = vmatprep.mubr.bf16.mxu0 0
        %4032 = vmatmul.mubr.bf16.gmra.mrb[0].mxu0 %v3584
        %v4033 = vpop.f32.mrb[0].mxu0
        %v4034 = vadd.f32 %v3873, %v4033
        %v4035 = vpop.f32.mrb[0].mxu0
        %v4036 = vpop.f32.mrb[0].mxu0
        %v4037 = vadd.f32 %v3876, %v4036
        %v4038 = vpop.f32.mrb[0].mxu0
        %4039 = vmatprep.mubr.bf16.mxu0 0
        %4040 = vmatmul.mubr.bf16.gmra.mrb[0].mxu0 %v3587
        %v4041 = vpop.f32.mrb[0].mxu0
        %v4042 = vadd.f32 %v3881, %v4041
        %v4043 = vpop.f32.mrb[0].mxu0
        %v4044 = vpop.f32.mrb[0].mxu0
        %v4045 = vadd.f32 %v3884, %v4044
        %v4046 = vpop.f32.mrb[0].mxu0
        %4047 = vmatprep.mubr.bf16.mxu0 0
        %4048 = vmatmul.mubr.bf16.gmra.mrb[0].mxu0 %v3590
        %v4049 = vpop.f32.mrb[0].mxu0
        %v4050 = vadd.f32 %v3889, %v4049
        %v4051 = vpop.f32.mrb[0].mxu0
        %v4052 = vpop.f32.mrb[0].mxu0
        %v4053 = vadd.f32 %v3892, %v4052
        %v4054 = vpop.f32.mrb[0].mxu0
        %4055 = vmatprep.mubr.bf16.mxu0 0
        %4056 = vmatmul.mubr.bf16.gmra.mrb[0].mxu0 %v3593
        %v4057 = vpop.f32.mrb[0].mxu0
        %v4058 = vadd.f32 %v3897, %v4057
        %v4059 = vpop.f32.mrb[0].mxu0
        %v4060 = vpop.f32.mrb[0].mxu0
        %v4061 = vadd.f32 %v3900, %v4060
        %v4062 = vpop.f32.mrb[0].mxu0
        %4063 = vmatprep.mubr.bf16.mxu0 0
        %4064 = vmatmul.mubr.bf16.gmra.mrb[0].mxu0 %v3596
        %v4065 = vpop.f32.mrb[0].mxu0
        %v4066 = vadd.f32 %v3905, %v4065
        %v4067 = vpop.f32.mrb[0].mxu0
        %v4068 = vpop.f32.mrb[0].mxu0
        %v4069 = vadd.f32 %v3908, %v4068
        %v4070 = vpop.f32.mrb[0].mxu0
        %4071 = vmatprep.mubr.bf16.mxu0 0
        %4072 = vmatmul.mubr.bf16.gmra.mrb[0].mxu0 %v3599
        %v4073 = vpop.f32.mrb[0].mxu0
        %v4074 = vadd.f32 %v3913, %v4073
        %v4075 = vpop.f32.mrb[0].mxu0
        %v4076 = vpop.f32.mrb[0].mxu0
        %v4077 = vadd.f32 %v3916, %v4076
        %v4078 = vpop.f32.mrb[0].mxu0
        %4079 = vmatprep.mubr.bf16.mxu0 0
        %4080 = vmatmul.mubr.bf16.gmra.mrb[0].mxu0 %v3602
        %v4081 = vpop.f32.mrb[0].mxu0
        %v4082 = vadd.f32 %v3921, %v4081
        %v4083 = vpop.f32.mrb[0].mxu0
        %v4084 = vpop.f32.mrb[0].mxu0
        %v4085 = vadd.f32 %v3924, %v4084
        %v4086 = vpop.f32.mrb[0].mxu0
        %4087 = vmatprep.mubr.bf16.mxu0 0
        %4088 = vmatmul.mubr.bf16.gmra.mrb[0].mxu0 %v3605
        %v4089 = vpop.f32.mrb[0].mxu0
        %v4090 = vadd.f32 %v3929, %v4089
        %v4091 = vpop.f32.mrb[0].mxu0
        %v4092 = vpop.f32.mrb[0].mxu0
        %v4093 = vadd.f32 %v3932, %v4092
        %v4094 = vpop.f32.mrb[0].mxu0
        %4095 = vmatprep.mubr.bf16.mxu0 0
        %4096 = vmatmul.mubr.bf16.gmra.mrb[0].mxu0 %v3608
        %v4097 = vpop.f32.mrb[0].mxu0
        %v4098 = vadd.f32 %v3937, %v4097
        %v4099 = vpop.f32.mrb[0].mxu0
        %v4100 = vpop.f32.mrb[0].mxu0
        %v4101 = vadd.f32 %v3940, %v4100
        %v4102 = vpop.f32.mrb[0].mxu0
        %4103 = vmatprep.mubr.bf16.mxu0 0
        %4104 = vmatmul.mubr.bf16.gmra.mrb[0].mxu0 %v3611
        %v4105 = vpop.f32.mrb[0].mxu0
        %v4106 = vadd.f32 %v3945, %v4105
        %v4107 = vpop.f32.mrb[0].mxu0
        %v4108 = vpop.f32.mrb[0].mxu0
        %v4109 = vadd.f32 %v3948, %v4108
        %v4110 = vpop.f32.mrb[0].mxu0
        %4111 = vmatprep.mubr.bf16.mxu0 0
        %4112 = vmatmul.mubr.bf16.gmra.mrb[0].mxu0 %v3614
        %v4113 = vpop.f32.mrb[0].mxu0
        %v4114 = vadd.f32 %v3953, %v4113
        %v4115 = vpop.f32.mrb[0].mxu0
        %v4116 = vpop.f32.mrb[0].mxu0
        %v4117 = vadd.f32 %v3956, %v4116
        %v4118 = vpop.f32.mrb[0].mxu0
        %4119 = vmatprep.mubr.bf16.mxu0 0
        %4120 = vmatmul.mubr.bf16.gmra.mrb[0].mxu0 %v3617
        %v4121 = vpop.f32.mrb[0].mxu0
        %v4122 = vadd.f32 %v3961, %v4121
        %v4123 = vpop.f32.mrb[0].mxu0
        %v4124 = vpop.f32.mrb[0].mxu0
        %v4125 = vadd.f32 %v3964, %v4124
        %v4126 = vpop.f32.mrb[0].mxu0
        %4127 = vmatprep.mubr.bf16.mxu0 0
        %4128 = vmatmul.mubr.bf16.gmra.mrb[0].mxu0 %v3620
        %v4129 = vpop.f32.mrb[0].mxu0
        %v4130 = vadd.f32 %v3969, %v4129
        %v4131 = vpop.f32.mrb[0].mxu0
        %v4132 = vpop.f32.mrb[0].mxu0
        %v4133 = vadd.f32 %v3972, %v4132
        %v4134 = vpop.f32.mrb[0].mxu0
        %4135 = vdwg.mxu0
        %v4136 = vld [vmem:[#allocation4] sm:$0xff]
        %v4137 = vld [vmem:[#allocation4 + $0x8] sm:$0xff]
        %v4138 = vld [vmem:[#allocation4 + $0x10] sm:$0xff]
        %v4139 = vld [vmem:[#allocation4 + $0x18] sm:$0xff]
        %v4140 = vld [vmem:[#allocation4 + $0x20] sm:$0xff]
        %v4141 = vld [vmem:[#allocation4 + $0x28] sm:$0xff]
        %v4142 = vld [vmem:[#allocation4 + $0x30] sm:$0xff]
        %v4143 = vld [vmem:[#allocation4 + $0x38] sm:$0xff]
        %v4144 = vld [vmem:[#allocation4 + $0x40] sm:$0xff]
        %v4145 = vld [vmem:[#allocation4 + $0x48] sm:$0xff]
        %v4146 = vld [vmem:[#allocation4 + $0x50] sm:$0xff]
        %v4147 = vld [vmem:[#allocation4 + $0x58] sm:$0xff]
        %v4148 = vld [vmem:[#allocation4 + $0x60] sm:$0xff]
        %v4149 = vld [vmem:[#allocation4 + $0x68] sm:$0xff]
        %v4150 = vld [vmem:[#allocation4 + $0x70] sm:$0xff]
        %v4151 = vld [vmem:[#allocation4 + $0x78] sm:$0xff]
        %v4152 = vld [vmem:[#allocation4 + $0x80] sm:$0xff]
        %v4153 = vld [vmem:[#allocation4 + $0x88] sm:$0xff]
        %v4154 = vld [vmem:[#allocation4 + $0x90] sm:$0xff]
        %v4155 = vld [vmem:[#allocation4 + $0x98] sm:$0xff]
        %v4156 = vld [vmem:[#allocation4 + $0xa0] sm:$0xff]
        %v4157 = vld [vmem:[#allocation4 + $0xa8] sm:$0xff]
        %v4158 = vld [vmem:[#allocation4 + $0xb0] sm:$0xff]
        %v4159 = vld [vmem:[#allocation4 + $0xb8] sm:$0xff]
        %v4160 = vld [vmem:[#allocation4 + $0xc0] sm:$0xff]
        %v4161 = vld [vmem:[#allocation4 + $0xc8] sm:$0xff]
        %v4162 = vld [vmem:[#allocation4 + $0xd0] sm:$0xff]
        %v4163 = vld [vmem:[#allocation4 + $0xd8] sm:$0xff]
        %v4164 = vld [vmem:[#allocation4 + $0xe0] sm:$0xff]
        %v4165 = vld [vmem:[#allocation4 + $0xe8] sm:$0xff]
        %v4166 = vld [vmem:[#allocation4 + $0xf0] sm:$0xff]
        %v4167 = vld [vmem:[#allocation4 + $0xf8] sm:$0xff]
        %v4168 = vadd.f32 %v4136, %v4010
        %v4169 = vadd.f32 %v4137, %v4013
        %v4170 = vadd.f32 %v4138, %v4018
        %v4171 = vadd.f32 %v4139, %v4021
        %v4172 = vadd.f32 %v4140, %v4026
        %v4173 = vadd.f32 %v4141, %v4029
        %v4174 = vadd.f32 %v4142, %v4034
        %v4175 = vadd.f32 %v4143, %v4037
        %v4176 = vadd.f32 %v4144, %v4042
        %v4177 = vadd.f32 %v4145, %v4045
        %v4178 = vadd.f32 %v4146, %v4050
        %v4179 = vadd.f32 %v4147, %v4053
        %v4180 = vadd.f32 %v4148, %v4058
        %v4181 = vadd.f32 %v4149, %v4061
        %v4182 = vadd.f32 %v4150, %v4066
        %v4183 = vadd.f32 %v4151, %v4069
        %v4184 = vadd.f32 %v4152, %v4074
        %v4185 = vadd.f32 %v4153, %v4077
        %v4186 = vadd.f32 %v4154, %v4082
        %v4187 = vadd.f32 %v4155, %v4085
        %v4188 = vadd.f32 %v4156, %v4090
        %v4189 = vadd.f32 %v4157, %v4093
        %v4190 = vadd.f32 %v4158, %v4098
        %v4191 = vadd.f32 %v4159, %v4101
        %v4192 = vadd.f32 %v4160, %v4106
        %v4193 = vadd.f32 %v4161, %v4109
        %v4194 = vadd.f32 %v4162, %v4114
        %v4195 = vadd.f32 %v4163, %v4117
        %v4196 = vadd.f32 %v4164, %v4122
        %v4197 = vadd.f32 %v4165, %v4125
        %v4198 = vadd.f32 %v4166, %v4130
        %v4199 = vadd.f32 %v4167, %v4133
        %4200 = vst [vmem:[#allocation4] sm:$0xff] %v4168
        %4201 = vst [vmem:[#allocation4 + $0x8] sm:$0xff] %v4169
        %4202 = vst [vmem:[#allocation4 + $0x10] sm:$0xff] %v4170
        %4203 = vst [vmem:[#allocation4 + $0x18] sm:$0xff] %v4171
        %4204 = vst [vmem:[#allocation4 + $0x20] sm:$0xff] %v4172
        %4205 = vst [vmem:[#allocation4 + $0x28] sm:$0xff] %v4173
        %4206 = vst [vmem:[#allocation4 + $0x30] sm:$0xff] %v4174
        %4207 = vst [vmem:[#allocation4 + $0x38] sm:$0xff] %v4175
        %4208 = vst [vmem:[#allocation4 + $0x40] sm:$0xff] %v4176
        %4209 = vst [vmem:[#allocation4 + $0x48] sm:$0xff] %v4177
        %4210 = vst [vmem:[#allocation4 + $0x50] sm:$0xff] %v4178
        %4211 = vst [vmem:[#allocation4 + $0x58] sm:$0xff] %v4179
        %4212 = vst [vmem:[#allocation4 + $0x60] sm:$0xff] %v4180
        %4213 = vst [vmem:[#allocation4 + $0x68] sm:$0xff] %v4181
        %4214 = vst [vmem:[#allocation4 + $0x70] sm:$0xff] %v4182
        %4215 = vst [vmem:[#allocation4 + $0x78] sm:$0xff] %v4183
        %4216 = vst [vmem:[#allocation4 + $0x80] sm:$0xff] %v4184
        %4217 = vst [vmem:[#allocation4 + $0x88] sm:$0xff] %v4185
        %4218 = vst [vmem:[#allocation4 + $0x90] sm:$0xff] %v4186
        %4219 = vst [vmem:[#allocation4 + $0x98] sm:$0xff] %v4187
        %4220 = vst [vmem:[#allocation4 + $0xa0] sm:$0xff] %v4188
        %4221 = vst [vmem:[#allocation4 + $0xa8] sm:$0xff] %v4189
        %4222 = vst [vmem:[#allocation4 + $0xb0] sm:$0xff] %v4190
        %4223 = vst [vmem:[#allocation4 + $0xb8] sm:$0xff] %v4191
        %4224 = vst [vmem:[#allocation4 + $0xc0] sm:$0xff] %v4192
        %4225 = vst [vmem:[#allocation4 + $0xc8] sm:$0xff] %v4193
        %4226 = vst [vmem:[#allocation4 + $0xd0] sm:$0xff] %v4194
        %4227 = vst [vmem:[#allocation4 + $0xd8] sm:$0xff] %v4195
        %4228 = vst [vmem:[#allocation4 + $0xe0] sm:$0xff] %v4196
        %4229 = vst [vmem:[#allocation4 + $0xe8] sm:$0xff] %v4197
        %4230 = vst [vmem:[#allocation4 + $0xf0] sm:$0xff] %v4198
        %4231 = vst [vmem:[#allocation4 + $0xf8] sm:$0xff] %v4199
        %s4232 = scalar_lea.vmem [#allocation3], 48
        %v4233 = vld [vmem:[%s4232] sm:$0xff]
        %v4234 = vld [vmem:[%s4232 + $0x8] sm:$0xff]
        %v4235 = vld [vmem:[%s4232 + $0x10] sm:$0xff]
        %v4236 = vld [vmem:[%s4232 + $0x18] sm:$0xff]
        %v4237 = vld [vmem:[%s4232 + $0x20] sm:$0xff]
        %v4238 = vld [vmem:[%s4232 + $0x28] sm:$0xff]
        %v4239 = vld [vmem:[%s4232 + $0x30] sm:$0xff]
        %v4240 = vld [vmem:[%s4232 + $0x38] sm:$0xff]
        %v4241 = vld [vmem:[%s4232 + $0x40] sm:$0xff]
        %v4242 = vld [vmem:[%s4232 + $0x48] sm:$0xff]
        %v4243 = vld [vmem:[%s4232 + $0x50] sm:$0xff]
        %v4244 = vld [vmem:[%s4232 + $0x58] sm:$0xff]
        %v4245 = vld [vmem:[%s4232 + $0x60] sm:$0xff]
        %v4246 = vld [vmem:[%s4232 + $0x68] sm:$0xff]
        %v4247 = vld [vmem:[%s4232 + $0x70] sm:$0xff]
        %v4248 = vld [vmem:[%s4232 + $0x78] sm:$0xff]
        %v4249 = vld [vmem:[%s4232 + $0x80] sm:$0xff]
        %v4250 = vld [vmem:[%s4232 + $0x88] sm:$0xff]
        %v4251 = vld [vmem:[%s4232 + $0x90] sm:$0xff]
        %v4252 = vld [vmem:[%s4232 + $0x98] sm:$0xff]
        %v4253 = vld [vmem:[%s4232 + $0xa0] sm:$0xff]
        %v4254 = vld [vmem:[%s4232 + $0xa8] sm:$0xff]
        %v4255 = vld [vmem:[%s4232 + $0xb0] sm:$0xff]
        %v4256 = vld [vmem:[%s4232 + $0xb8] sm:$0xff]
        %v4257 = vld [vmem:[%s4232 + $0xc0] sm:$0xff]
        %v4258 = vld [vmem:[%s4232 + $0xc8] sm:$0xff]
        %v4259 = vld [vmem:[%s4232 + $0xd0] sm:$0xff]
        %v4260 = vld [vmem:[%s4232 + $0xd8] sm:$0xff]
        %v4261 = vld [vmem:[%s4232 + $0xe0] sm:$0xff]
        %v4262 = vld [vmem:[%s4232 + $0xe8] sm:$0xff]
        %v4263 = vld [vmem:[%s4232 + $0xf0] sm:$0xff]
        %v4264 = vld [vmem:[%s4232 + $0xf8] sm:$0xff]
        %v4265 = vld [vmem:[%s4232 + $0x100] sm:$0xff]
        %v4266 = vld [vmem:[%s4232 + $0x108] sm:$0xff]
        %v4267 = vld [vmem:[%s4232 + $0x110] sm:$0xff]
        %v4268 = vld [vmem:[%s4232 + $0x118] sm:$0xff]
        %v4269 = vld [vmem:[%s4232 + $0x120] sm:$0xff]
        %v4270 = vld [vmem:[%s4232 + $0x128] sm:$0xff]
        %v4271 = vld [vmem:[%s4232 + $0x130] sm:$0xff]
        %v4272 = vld [vmem:[%s4232 + $0x138] sm:$0xff]
        %v4273 = vld [vmem:[%s4232 + $0x140] sm:$0xff]
        %v4274 = vld [vmem:[%s4232 + $0x148] sm:$0xff]
        %v4275 = vld [vmem:[%s4232 + $0x150] sm:$0xff]
        %v4276 = vld [vmem:[%s4232 + $0x158] sm:$0xff]
        %v4277 = vld [vmem:[%s4232 + $0x160] sm:$0xff]
        %v4278 = vld [vmem:[%s4232 + $0x168] sm:$0xff]
        %v4279 = vld [vmem:[%s4232 + $0x170] sm:$0xff]
        %v4280 = vld [vmem:[%s4232 + $0x178] sm:$0xff]
        %s4281 = scalar_lea.vmem [#allocation10], 384
        %v4282 = vld [vmem:[%s4281] sm:$0xf]
        %v4283 = vld [vmem:[%s4281 + $0x4] sm:$0xf]
        %v4284 = vld [vmem:[%s4281 + $0x8] sm:$0xf]
        %v4285 = vld [vmem:[%s4281 + $0xc] sm:$0xf]
        %v4286 = vld [vmem:[%s4281 + $0x10] sm:$0xf]
        %v4287 = vld [vmem:[%s4281 + $0x14] sm:$0xf]
        %v4288 = vld [vmem:[%s4281 + $0x18] sm:$0xf]
        %v4289 = vld [vmem:[%s4281 + $0x1c] sm:$0xf]
        %v4290 = vld [vmem:[%s4281 + $0x20] sm:$0xf]
        %v4291 = vld [vmem:[%s4281 + $0x24] sm:$0xf]
        %v4292 = vld [vmem:[%s4281 + $0x28] sm:$0xf]
        %v4293 = vld [vmem:[%s4281 + $0x2c] sm:$0xf]
        %v4294 = vld [vmem:[%s4281 + $0x30] sm:$0xf]
        %v4295 = vld [vmem:[%s4281 + $0x34] sm:$0xf]
        %v4296 = vld [vmem:[%s4281 + $0x38] sm:$0xf]
        %v4297 = vld [vmem:[%s4281 + $0x3c] sm:$0xf]
        %v4298 = vld [vmem:[%s4281 + $0x40] sm:$0xf]
        %v4299 = vld [vmem:[%s4281 + $0x44] sm:$0xf]
        %v4300 = vld [vmem:[%s4281 + $0x48] sm:$0xf]
        %v4301 = vld [vmem:[%s4281 + $0x4c] sm:$0xf]
        %v4302 = vld [vmem:[%s4281 + $0x50] sm:$0xf]
        %v4303 = vld [vmem:[%s4281 + $0x54] sm:$0xf]
        %v4304 = vld [vmem:[%s4281 + $0x58] sm:$0xf]
        %v4305 = vld [vmem:[%s4281 + $0x5c] sm:$0xf]
        %v4306 = vld [vmem:[%s4281 + $0x60] sm:$0xf]
        %v4307 = vld [vmem:[%s4281 + $0x64] sm:$0xf]
        %v4308 = vld [vmem:[%s4281 + $0x68] sm:$0xf]
        %v4309 = vld [vmem:[%s4281 + $0x6c] sm:$0xf]
        %v4310 = vld [vmem:[%s4281 + $0x70] sm:$0xf]
        %v4311 = vld [vmem:[%s4281 + $0x74] sm:$0xf]
        %v4312 = vld [vmem:[%s4281 + $0x78] sm:$0xf]
        %v4313 = vld [vmem:[%s4281 + $0x7c] sm:$0xf]
        %v4314 = vld [vmem:[%s4281 + $0x80] sm:$0xf]
        %v4315 = vld [vmem:[%s4281 + $0x84] sm:$0xf]
        %v4316 = vld [vmem:[%s4281 + $0x88] sm:$0xf]
        %v4317 = vld [vmem:[%s4281 + $0x8c] sm:$0xf]
        %v4318 = vld [vmem:[%s4281 + $0x90] sm:$0xf]
        %v4319 = vld [vmem:[%s4281 + $0x94] sm:$0xf]
        %v4320 = vld [vmem:[%s4281 + $0x98] sm:$0xf]
        %v4321 = vld [vmem:[%s4281 + $0x9c] sm:$0xf]
        %v4322 = vld [vmem:[%s4281 + $0xa0] sm:$0xf]
        %v4323 = vld [vmem:[%s4281 + $0xa4] sm:$0xf]
        %v4324 = vld [vmem:[%s4281 + $0xa8] sm:$0xf]
        %v4325 = vld [vmem:[%s4281 + $0xac] sm:$0xf]
        %v4326 = vld [vmem:[%s4281 + $0xb0] sm:$0xf]
        %v4327 = vld [vmem:[%s4281 + $0xb4] sm:$0xf]
        %v4328 = vld [vmem:[%s4281 + $0xb8] sm:$0xf]
        %v4329 = vld [vmem:[%s4281 + $0xbc] sm:$0xf]
        %v4378 = vunpack.c.l.b16 %v4282
        %v4379 = vunpack.c.l.b16 %v4283
        %v4380 = vunpack.c.l.b16 %v4284
        %v4381 = vunpack.c.l.b16 %v4285
        %v4382 = vunpack.c.l.b16 %v4286
        %v4383 = vunpack.c.l.b16 %v4287
        %v4384 = vunpack.c.l.b16 %v4288
        %v4385 = vunpack.c.l.b16 %v4289
        %v4386 = vunpack.c.l.b16 %v4290
        %v4387 = vunpack.c.l.b16 %v4291
        %v4388 = vunpack.c.l.b16 %v4292
        %v4389 = vunpack.c.l.b16 %v4293
        %v4390 = vunpack.c.l.b16 %v4294
        %v4391 = vunpack.c.l.b16 %v4295
        %v4392 = vunpack.c.l.b16 %v4296
        %v4393 = vunpack.c.l.b16 %v4297
        %v4394 = vunpack.c.l.b16 %v4298
        %v4395 = vunpack.c.l.b16 %v4299
        %v4396 = vunpack.c.l.b16 %v4300
        %v4397 = vunpack.c.l.b16 %v4301
        %v4398 = vunpack.c.l.b16 %v4302
        %v4399 = vunpack.c.l.b16 %v4303
        %v4400 = vunpack.c.l.b16 %v4304
        %v4401 = vunpack.c.l.b16 %v4305
        %v4402 = vunpack.c.l.b16 %v4306
        %v4403 = vunpack.c.l.b16 %v4307
        %v4404 = vunpack.c.l.b16 %v4308
        %v4405 = vunpack.c.l.b16 %v4309
        %v4406 = vunpack.c.l.b16 %v4310
        %v4407 = vunpack.c.l.b16 %v4311
        %v4408 = vunpack.c.l.b16 %v4312
        %v4409 = vunpack.c.l.b16 %v4313
        %v4410 = vunpack.c.l.b16 %v4314
        %v4411 = vunpack.c.l.b16 %v4315
        %v4412 = vunpack.c.l.b16 %v4316
        %v4413 = vunpack.c.l.b16 %v4317
        %v4414 = vunpack.c.l.b16 %v4318
        %v4415 = vunpack.c.l.b16 %v4319
        %v4416 = vunpack.c.l.b16 %v4320
        %v4417 = vunpack.c.l.b16 %v4321
        %v4418 = vunpack.c.l.b16 %v4322
        %v4419 = vunpack.c.l.b16 %v4323
        %v4420 = vunpack.c.l.b16 %v4324
        %v4421 = vunpack.c.l.b16 %v4325
        %v4422 = vunpack.c.l.b16 %v4326
        %v4423 = vunpack.c.l.b16 %v4327
        %v4424 = vunpack.c.l.b16 %v4328
        %v4425 = vunpack.c.l.b16 %v4329
        %v4426 = vpack.c.b16 %v4379, %v4378
        %v4427 = vpack.c.b16 %v4381, %v4380
        %v4428 = vpack.c.b16 %v4383, %v4382
        %v4429 = vpack.c.b16 %v4385, %v4384
        %v4430 = vpack.c.b16 %v4387, %v4386
        %v4431 = vpack.c.b16 %v4389, %v4388
        %v4432 = vpack.c.b16 %v4391, %v4390
        %v4433 = vpack.c.b16 %v4393, %v4392
        %v4434 = vpack.c.b16 %v4395, %v4394
        %v4435 = vpack.c.b16 %v4397, %v4396
        %v4436 = vpack.c.b16 %v4399, %v4398
        %v4437 = vpack.c.b16 %v4401, %v4400
        %v4438 = vpack.c.b16 %v4403, %v4402
        %v4439 = vpack.c.b16 %v4405, %v4404
        %v4440 = vpack.c.b16 %v4407, %v4406
        %v4441 = vpack.c.b16 %v4409, %v4408
        %v4442 = vpack.c.b16 %v4411, %v4410
        %v4443 = vpack.c.b16 %v4413, %v4412
        %v4444 = vpack.c.b16 %v4415, %v4414
        %v4445 = vpack.c.b16 %v4417, %v4416
        %v4446 = vpack.c.b16 %v4419, %v4418
        %v4447 = vpack.c.b16 %v4421, %v4420
        %v4448 = vpack.c.b16 %v4423, %v4422
        %v4449 = vpack.c.b16 %v4425, %v4424
        %4474 = vmatprep.subr.bf16.mxu0 0
        %4475 = vmatpush1.bf16.msra.mxu0 %v4426
        %4476 = vmatprep.subr.bf16.mxu0 0
        %4477 = vmatpush1.bf16.msra.mxu0 %v4427
        %4478 = vmatprep.subr.bf16.mxu0 0
        %4479 = vmatpush1.bf16.msra.mxu0 %v4428
        %4480 = vmatprep.subr.bf16.mxu0 0
        %4481 = vmatpush1.bf16.msra.mxu0 %v4429
        %4482 = vmatprep.subr.bf16.mxu0 0
        %4483 = vmatpush1.bf16.msra.mxu0 %v4430
        %4484 = vmatprep.subr.bf16.mxu0 0
        %4485 = vmatpush1.bf16.msra.mxu0 %v4431
        %4486 = vmatprep.subr.bf16.mxu0 0
        %4487 = vmatpush1.bf16.msra.mxu0 %v4432
        %4488 = vmatprep.subr.bf16.mxu0 0
        %4489 = vmatpush1.bf16.msra.mxu0 %v4433
        %4490 = vmatprep.subr.bf16.mxu0 0
        %4491 = vmatpush1.bf16.msra.mxu0 %v4434
        %4492 = vmatprep.subr.bf16.mxu0 0
        %4493 = vmatpush1.bf16.msra.mxu0 %v4435
        %4494 = vmatprep.subr.bf16.mxu0 0
        %4495 = vmatpush1.bf16.msra.mxu0 %v4436
        %4496 = vmatprep.subr.bf16.mxu0 0
        %4497 = vmatpush1.bf16.msra.mxu0 %v4437
        %4498 = vmatprep.subr.bf16.mxu0 0
        %4499 = vmatpush1.bf16.msra.mxu0 %v4438
        %4500 = vmatprep.subr.bf16.mxu0 0
        %4501 = vmatpush1.bf16.msra.mxu0 %v4439
        %4502 = vmatprep.subr.bf16.mxu0 0
        %4503 = vmatpush1.bf16.msra.mxu0 %v4440
        %4504 = vmatprep.subr.bf16.mxu0 0
        %4505 = vmatpush1.bf16.msra.mxu0 %v4441
        %4506 = vmatprep.mubr.bf16.mxu0 %v4234
        %4507 = vmatmul.mubr.bf16.gmra.mrb[0].mxu0 %v4233
        %v4508 = vpop.f32.mrb[0].mxu0
        %v4509 = vadd.f32 0.0, %v4508
        %v4510 = vpop.f32.mrb[0].mxu0
        %v4511 = vpop.f32.mrb[0].mxu0
        %v4512 = vadd.f32 0.0, %v4511
        %v4513 = vpop.f32.mrb[0].mxu0
        %4514 = vmatprep.mubr.bf16.mxu0 %v4237
        %4515 = vmatmul.mubr.bf16.gmra.mrb[0].mxu0 %v4236
        %v4516 = vpop.f32.mrb[0].mxu0
        %v4517 = vadd.f32 0.0, %v4516
        %v4518 = vpop.f32.mrb[0].mxu0
        %v4519 = vpop.f32.mrb[0].mxu0
        %v4520 = vadd.f32 0.0, %v4519
        %v4521 = vpop.f32.mrb[0].mxu0
        %4522 = vmatprep.mubr.bf16.mxu0 %v4240
        %4523 = vmatmul.mubr.bf16.gmra.mrb[0].mxu0 %v4239
        %v4524 = vpop.f32.mrb[0].mxu0
        %v4525 = vadd.f32 0.0, %v4524
        %v4526 = vpop.f32.mrb[0].mxu0
        %v4527 = vpop.f32.mrb[0].mxu0
        %v4528 = vadd.f32 0.0, %v4527
        %v4529 = vpop.f32.mrb[0].mxu0
        %4530 = vmatprep.mubr.bf16.mxu0 %v4243
        %4531 = vmatmul.mubr.bf16.gmra.mrb[0].mxu0 %v4242
        %v4532 = vpop.f32.mrb[0].mxu0
        %v4533 = vadd.f32 0.0, %v4532
        %v4534 = vpop.f32.mrb[0].mxu0
        %v4535 = vpop.f32.mrb[0].mxu0
        %v4536 = vadd.f32 0.0, %v4535
        %v4537 = vpop.f32.mrb[0].mxu0
        %4538 = vmatprep.mubr.bf16.mxu0 %v4246
        %4539 = vmatmul.mubr.bf16.gmra.mrb[0].mxu0 %v4245
        %v4540 = vpop.f32.mrb[0].mxu0
        %v4541 = vadd.f32 0.0, %v4540
        %v4542 = vpop.f32.mrb[0].mxu0
        %v4543 = vpop.f32.mrb[0].mxu0
        %v4544 = vadd.f32 0.0, %v4543
        %v4545 = vpop.f32.mrb[0].mxu0
        %4546 = vmatprep.mubr.bf16.mxu0 %v4249
        %4547 = vmatmul.mubr.bf16.gmra.mrb[0].mxu0 %v4248
        %v4548 = vpop.f32.mrb[0].mxu0
        %v4549 = vadd.f32 0.0, %v4548
        %v4550 = vpop.f32.mrb[0].mxu0
        %v4551 = vpop.f32.mrb[0].mxu0
        %v4552 = vadd.f32 0.0, %v4551
        %v4553 = vpop.f32.mrb[0].mxu0
        %4554 = vmatprep.mubr.bf16.mxu0 %v4252
        %4555 = vmatmul.mubr.bf16.gmra.mrb[0].mxu0 %v4251
        %v4556 = vpop.f32.mrb[0].mxu0
        %v4557 = vadd.f32 0.0, %v4556
        %v4558 = vpop.f32.mrb[0].mxu0
        %v4559 = vpop.f32.mrb[0].mxu0
        %v4560 = vadd.f32 0.0, %v4559
        %v4561 = vpop.f32.mrb[0].mxu0
        %4562 = vmatprep.mubr.bf16.mxu0 %v4255
        %4563 = vmatmul.mubr.bf16.gmra.mrb[0].mxu0 %v4254
        %v4564 = vpop.f32.mrb[0].mxu0
        %v4565 = vadd.f32 0.0, %v4564
        %v4566 = vpop.f32.mrb[0].mxu0
        %v4567 = vpop.f32.mrb[0].mxu0
        %v4568 = vadd.f32 0.0, %v4567
        %v4569 = vpop.f32.mrb[0].mxu0
        %4570 = vmatprep.mubr.bf16.mxu0 %v4258
        %4571 = vmatmul.mubr.bf16.gmra.mrb[0].mxu0 %v4257
        %v4572 = vpop.f32.mrb[0].mxu0
        %v4573 = vadd.f32 0.0, %v4572
        %v4574 = vpop.f32.mrb[0].mxu0
        %v4575 = vpop.f32.mrb[0].mxu0
        %v4576 = vadd.f32 0.0, %v4575
        %v4577 = vpop.f32.mrb[0].mxu0
        %4578 = vmatprep.mubr.bf16.mxu0 %v4261
        %4579 = vmatmul.mubr.bf16.gmra.mrb[0].mxu0 %v4260
        %v4580 = vpop.f32.mrb[0].mxu0
        %v4581 = vadd.f32 0.0, %v4580
        %v4582 = vpop.f32.mrb[0].mxu0
        %v4583 = vpop.f32.mrb[0].mxu0
        %v4584 = vadd.f32 0.0, %v4583
        %v4585 = vpop.f32.mrb[0].mxu0
        %4586 = vmatprep.mubr.bf16.mxu0 %v4264
        %4587 = vmatmul.mubr.bf16.gmra.mrb[0].mxu0 %v4263
        %v4588 = vpop.f32.mrb[0].mxu0
        %v4589 = vadd.f32 0.0, %v4588
        %v4590 = vpop.f32.mrb[0].mxu0
        %v4591 = vpop.f32.mrb[0].mxu0
        %v4592 = vadd.f32 0.0, %v4591
        %v4593 = vpop.f32.mrb[0].mxu0
        %4594 = vmatprep.mubr.bf16.mxu0 %v4267
        %4595 = vmatmul.mubr.bf16.gmra.mrb[0].mxu0 %v4266
        %v4596 = vpop.f32.mrb[0].mxu0
        %v4597 = vadd.f32 0.0, %v4596
        %v4598 = vpop.f32.mrb[0].mxu0
        %v4599 = vpop.f32.mrb[0].mxu0
        %v4600 = vadd.f32 0.0, %v4599
        %v4601 = vpop.f32.mrb[0].mxu0
        %4602 = vmatprep.mubr.bf16.mxu0 %v4270
        %4603 = vmatmul.mubr.bf16.gmra.mrb[0].mxu0 %v4269
        %v4604 = vpop.f32.mrb[0].mxu0
        %v4605 = vadd.f32 0.0, %v4604
        %v4606 = vpop.f32.mrb[0].mxu0
        %v4607 = vpop.f32.mrb[0].mxu0
        %v4608 = vadd.f32 0.0, %v4607
        %v4609 = vpop.f32.mrb[0].mxu0
        %4610 = vmatprep.mubr.bf16.mxu0 %v4273
        %4611 = vmatmul.mubr.bf16.gmra.mrb[0].mxu0 %v4272
        %v4612 = vpop.f32.mrb[0].mxu0
        %v4613 = vadd.f32 0.0, %v4612
        %v4614 = vpop.f32.mrb[0].mxu0
        %v4615 = vpop.f32.mrb[0].mxu0
        %v4616 = vadd.f32 0.0, %v4615
        %v4617 = vpop.f32.mrb[0].mxu0
        %4618 = vmatprep.mubr.bf16.mxu0 %v4276
        %4619 = vmatmul.mubr.bf16.gmra.mrb[0].mxu0 %v4275
        %v4620 = vpop.f32.mrb[0].mxu0
        %v4621 = vadd.f32 0.0, %v4620
        %v4622 = vpop.f32.mrb[0].mxu0
        %v4623 = vpop.f32.mrb[0].mxu0
        %v4624 = vadd.f32 0.0, %v4623
        %v4625 = vpop.f32.mrb[0].mxu0
        %4626 = vmatprep.mubr.bf16.mxu0 %v4279
        %4627 = vmatmul.mubr.bf16.gmra.mrb[0].mxu0 %v4278
        %v4628 = vpop.f32.mrb[0].mxu0
        %v4629 = vadd.f32 0.0, %v4628
        %v4630 = vpop.f32.mrb[0].mxu0
        %v4631 = vpop.f32.mrb[0].mxu0
        %v4632 = vadd.f32 0.0, %v4631
        %v4633 = vpop.f32.mrb[0].mxu0
        %4634 = vdwg.mxu0
        %4635 = vmatprep.subr.bf16.mxu0 0
        %4636 = vmatpush1.bf16.msra.mxu0 %v4442
        %4637 = vmatprep.subr.bf16.mxu0 0
        %4638 = vmatpush1.bf16.msra.mxu0 %v4443
        %4639 = vmatprep.subr.bf16.mxu0 0
        %4640 = vmatpush1.bf16.msra.mxu0 %v4444
        %4641 = vmatprep.subr.bf16.mxu0 0
        %4642 = vmatpush1.bf16.msra.mxu0 %v4445
        %4643 = vmatprep.subr.bf16.mxu0 0
        %4644 = vmatpush1.bf16.msra.mxu0 %v4446
        %4645 = vmatprep.subr.bf16.mxu0 0
        %4646 = vmatpush1.bf16.msra.mxu0 %v4447
        %4647 = vmatprep.subr.bf16.mxu0 0
        %4648 = vmatpush1.bf16.msra.mxu0 %v4448
        %4649 = vmatprep.subr.bf16.mxu0 0
        %4650 = vmatpush1.bf16.msra.mxu0 %v4449
        %4651 = vmatprep.subr.bf16.mxu0 0
        %4652 = vmatpush1.bf16.msra.mxu0 0
        %4653 = vmatprep.subr.bf16.mxu0 0
        %4654 = vmatpush1.bf16.msra.mxu0 0
        %4655 = vmatprep.subr.bf16.mxu0 0
        %4656 = vmatpush1.bf16.msra.mxu0 0
        %4657 = vmatprep.subr.bf16.mxu0 0
        %4658 = vmatpush1.bf16.msra.mxu0 0
        %4659 = vmatprep.subr.bf16.mxu0 0
        %4660 = vmatpush1.bf16.msra.mxu0 0
        %4661 = vmatprep.subr.bf16.mxu0 0
        %4662 = vmatpush1.bf16.msra.mxu0 0
        %4663 = vmatprep.subr.bf16.mxu0 0
        %4664 = vmatpush1.bf16.msra.mxu0 0
        %4665 = vmatprep.subr.bf16.mxu0 0
        %4666 = vmatpush1.bf16.msra.mxu0 0
        %4667 = vmatprep.mubr.bf16.mxu0 0
        %4668 = vmatmul.mubr.bf16.gmra.mrb[0].mxu0 %v4235
        %v4669 = vpop.f32.mrb[0].mxu0
        %v4670 = vadd.f32 %v4509, %v4669
        %v4671 = vpop.f32.mrb[0].mxu0
        %v4672 = vpop.f32.mrb[0].mxu0
        %v4673 = vadd.f32 %v4512, %v4672
        %v4674 = vpop.f32.mrb[0].mxu0
        %4675 = vmatprep.mubr.bf16.mxu0 0
        %4676 = vmatmul.mubr.bf16.gmra.mrb[0].mxu0 %v4238
        %v4677 = vpop.f32.mrb[0].mxu0
        %v4678 = vadd.f32 %v4517, %v4677
        %v4679 = vpop.f32.mrb[0].mxu0
        %v4680 = vpop.f32.mrb[0].mxu0
        %v4681 = vadd.f32 %v4520, %v4680
        %v4682 = vpop.f32.mrb[0].mxu0
        %4683 = vmatprep.mubr.bf16.mxu0 0
        %4684 = vmatmul.mubr.bf16.gmra.mrb[0].mxu0 %v4241
        %v4685 = vpop.f32.mrb[0].mxu0
        %v4686 = vadd.f32 %v4525, %v4685
        %v4687 = vpop.f32.mrb[0].mxu0
        %v4688 = vpop.f32.mrb[0].mxu0
        %v4689 = vadd.f32 %v4528, %v4688
        %v4690 = vpop.f32.mrb[0].mxu0
        %4691 = vmatprep.mubr.bf16.mxu0 0
        %4692 = vmatmul.mubr.bf16.gmra.mrb[0].mxu0 %v4244
        %v4693 = vpop.f32.mrb[0].mxu0
        %v4694 = vadd.f32 %v4533, %v4693
        %v4695 = vpop.f32.mrb[0].mxu0
        %v4696 = vpop.f32.mrb[0].mxu0
        %v4697 = vadd.f32 %v4536, %v4696
        %v4698 = vpop.f32.mrb[0].mxu0
        %4699 = vmatprep.mubr.bf16.mxu0 0
        %4700 = vmatmul.mubr.bf16.gmra.mrb[0].mxu0 %v4247
        %v4701 = vpop.f32.mrb[0].mxu0
        %v4702 = vadd.f32 %v4541, %v4701
        %v4703 = vpop.f32.mrb[0].mxu0
        %v4704 = vpop.f32.mrb[0].mxu0
        %v4705 = vadd.f32 %v4544, %v4704
        %v4706 = vpop.f32.mrb[0].mxu0
        %4707 = vmatprep.mubr.bf16.mxu0 0
        %4708 = vmatmul.mubr.bf16.gmra.mrb[0].mxu0 %v4250
        %v4709 = vpop.f32.mrb[0].mxu0
        %v4710 = vadd.f32 %v4549, %v4709
        %v4711 = vpop.f32.mrb[0].mxu0
        %v4712 = vpop.f32.mrb[0].mxu0
        %v4713 = vadd.f32 %v4552, %v4712
        %v4714 = vpop.f32.mrb[0].mxu0
        %4715 = vmatprep.mubr.bf16.mxu0 0
        %4716 = vmatmul.mubr.bf16.gmra.mrb[0].mxu0 %v4253
        %v4717 = vpop.f32.mrb[0].mxu0
        %v4718 = vadd.f32 %v4557, %v4717
        %v4719 = vpop.f32.mrb[0].mxu0
        %v4720 = vpop.f32.mrb[0].mxu0
        %v4721 = vadd.f32 %v4560, %v4720
        %v4722 = vpop.f32.mrb[0].mxu0
        %4723 = vmatprep.mubr.bf16.mxu0 0
        %4724 = vmatmul.mubr.bf16.gmra.mrb[0].mxu0 %v4256
        %v4725 = vpop.f32.mrb[0].mxu0
        %v4726 = vadd.f32 %v4565, %v4725
        %v4727 = vpop.f32.mrb[0].mxu0
        %v4728 = vpop.f32.mrb[0].mxu0
        %v4729 = vadd.f32 %v4568, %v4728
        %v4730 = vpop.f32.mrb[0].mxu0
        %4731 = vmatprep.mubr.bf16.mxu0 0
        %4732 = vmatmul.mubr.bf16.gmra.mrb[0].mxu0 %v4259
        %v4733 = vpop.f32.mrb[0].mxu0
        %v4734 = vadd.f32 %v4573, %v4733
        %v4735 = vpop.f32.mrb[0].mxu0
        %v4736 = vpop.f32.mrb[0].mxu0
        %v4737 = vadd.f32 %v4576, %v4736
        %v4738 = vpop.f32.mrb[0].mxu0
        %4739 = vmatprep.mubr.bf16.mxu0 0
        %4740 = vmatmul.mubr.bf16.gmra.mrb[0].mxu0 %v4262
        %v4741 = vpop.f32.mrb[0].mxu0
        %v4742 = vadd.f32 %v4581, %v4741
        %v4743 = vpop.f32.mrb[0].mxu0
        %v4744 = vpop.f32.mrb[0].mxu0
        %v4745 = vadd.f32 %v4584, %v4744
        %v4746 = vpop.f32.mrb[0].mxu0
        %4747 = vmatprep.mubr.bf16.mxu0 0
        %4748 = vmatmul.mubr.bf16.gmra.mrb[0].mxu0 %v4265
        %v4749 = vpop.f32.mrb[0].mxu0
        %v4750 = vadd.f32 %v4589, %v4749
        %v4751 = vpop.f32.mrb[0].mxu0
        %v4752 = vpop.f32.mrb[0].mxu0
        %v4753 = vadd.f32 %v4592, %v4752
        %v4754 = vpop.f32.mrb[0].mxu0
        %4755 = vmatprep.mubr.bf16.mxu0 0
        %4756 = vmatmul.mubr.bf16.gmra.mrb[0].mxu0 %v4268
        %v4757 = vpop.f32.mrb[0].mxu0
        %v4758 = vadd.f32 %v4597, %v4757
        %v4759 = vpop.f32.mrb[0].mxu0
        %v4760 = vpop.f32.mrb[0].mxu0
        %v4761 = vadd.f32 %v4600, %v4760
        %v4762 = vpop.f32.mrb[0].mxu0
        %4763 = vmatprep.mubr.bf16.mxu0 0
        %4764 = vmatmul.mubr.bf16.gmra.mrb[0].mxu0 %v4271
        %v4765 = vpop.f32.mrb[0].mxu0
        %v4766 = vadd.f32 %v4605, %v4765
        %v4767 = vpop.f32.mrb[0].mxu0
        %v4768 = vpop.f32.mrb[0].mxu0
        %v4769 = vadd.f32 %v4608, %v4768
        %v4770 = vpop.f32.mrb[0].mxu0
        %4771 = vmatprep.mubr.bf16.mxu0 0
        %4772 = vmatmul.mubr.bf16.gmra.mrb[0].mxu0 %v4274
        %v4773 = vpop.f32.mrb[0].mxu0
        %v4774 = vadd.f32 %v4613, %v4773
        %v4775 = vpop.f32.mrb[0].mxu0
        %v4776 = vpop.f32.mrb[0].mxu0
        %v4777 = vadd.f32 %v4616, %v4776
        %v4778 = vpop.f32.mrb[0].mxu0
        %4779 = vmatprep.mubr.bf16.mxu0 0
        %4780 = vmatmul.mubr.bf16.gmra.mrb[0].mxu0 %v4277
        %v4781 = vpop.f32.mrb[0].mxu0
        %v4782 = vadd.f32 %v4621, %v4781
        %v4783 = vpop.f32.mrb[0].mxu0
        %v4784 = vpop.f32.mrb[0].mxu0
        %v4785 = vadd.f32 %v4624, %v4784
        %v4786 = vpop.f32.mrb[0].mxu0
        %4787 = vmatprep.mubr.bf16.mxu0 0
        %4788 = vmatmul.mubr.bf16.gmra.mrb[0].mxu0 %v4280
        %v4789 = vpop.f32.mrb[0].mxu0
        %v4790 = vadd.f32 %v4629, %v4789
        %v4791 = vpop.f32.mrb[0].mxu0
        %v4792 = vpop.f32.mrb[0].mxu0
        %v4793 = vadd.f32 %v4632, %v4792
        %v4794 = vpop.f32.mrb[0].mxu0
        %4795 = vdwg.mxu0
        %v4796 = vld [vmem:[#allocation4] sm:$0xff]
        %v4797 = vld [vmem:[#allocation4 + $0x8] sm:$0xff]
        %v4798 = vld [vmem:[#allocation4 + $0x10] sm:$0xff]
        %v4799 = vld [vmem:[#allocation4 + $0x18] sm:$0xff]
        %v4800 = vld [vmem:[#allocation4 + $0x20] sm:$0xff]
        %v4801 = vld [vmem:[#allocation4 + $0x28] sm:$0xff]
        %v4802 = vld [vmem:[#allocation4 + $0x30] sm:$0xff]
        %v4803 = vld [vmem:[#allocation4 + $0x38] sm:$0xff]
        %v4804 = vld [vmem:[#allocation4 + $0x40] sm:$0xff]
        %v4805 = vld [vmem:[#allocation4 + $0x48] sm:$0xff]
        %v4806 = vld [vmem:[#allocation4 + $0x50] sm:$0xff]
        %v4807 = vld [vmem:[#allocation4 + $0x58] sm:$0xff]
        %v4808 = vld [vmem:[#allocation4 + $0x60] sm:$0xff]
        %v4809 = vld [vmem:[#allocation4 + $0x68] sm:$0xff]
        %v4810 = vld [vmem:[#allocation4 + $0x70] sm:$0xff]
        %v4811 = vld [vmem:[#allocation4 + $0x78] sm:$0xff]
        %v4812 = vld [vmem:[#allocation4 + $0x80] sm:$0xff]
        %v4813 = vld [vmem:[#allocation4 + $0x88] sm:$0xff]
        %v4814 = vld [vmem:[#allocation4 + $0x90] sm:$0xff]
        %v4815 = vld [vmem:[#allocation4 + $0x98] sm:$0xff]
        %v4816 = vld [vmem:[#allocation4 + $0xa0] sm:$0xff]
        %v4817 = vld [vmem:[#allocation4 + $0xa8] sm:$0xff]
        %v4818 = vld [vmem:[#allocation4 + $0xb0] sm:$0xff]
        %v4819 = vld [vmem:[#allocation4 + $0xb8] sm:$0xff]
        %v4820 = vld [vmem:[#allocation4 + $0xc0] sm:$0xff]
        %v4821 = vld [vmem:[#allocation4 + $0xc8] sm:$0xff]
        %v4822 = vld [vmem:[#allocation4 + $0xd0] sm:$0xff]
        %v4823 = vld [vmem:[#allocation4 + $0xd8] sm:$0xff]
        %v4824 = vld [vmem:[#allocation4 + $0xe0] sm:$0xff]
        %v4825 = vld [vmem:[#allocation4 + $0xe8] sm:$0xff]
        %v4826 = vld [vmem:[#allocation4 + $0xf0] sm:$0xff]
        %v4827 = vld [vmem:[#allocation4 + $0xf8] sm:$0xff]
        %v4828 = vadd.f32 %v4796, %v4670
        %v4829 = vadd.f32 %v4797, %v4673
        %v4830 = vadd.f32 %v4798, %v4678
        %v4831 = vadd.f32 %v4799, %v4681
        %v4832 = vadd.f32 %v4800, %v4686
        %v4833 = vadd.f32 %v4801, %v4689
        %v4834 = vadd.f32 %v4802, %v4694
        %v4835 = vadd.f32 %v4803, %v4697
        %v4836 = vadd.f32 %v4804, %v4702
        %v4837 = vadd.f32 %v4805, %v4705
        %v4838 = vadd.f32 %v4806, %v4710
        %v4839 = vadd.f32 %v4807, %v4713
        %v4840 = vadd.f32 %v4808, %v4718
        %v4841 = vadd.f32 %v4809, %v4721
        %v4842 = vadd.f32 %v4810, %v4726
        %v4843 = vadd.f32 %v4811, %v4729
        %v4844 = vadd.f32 %v4812, %v4734
        %v4845 = vadd.f32 %v4813, %v4737
        %v4846 = vadd.f32 %v4814, %v4742
        %v4847 = vadd.f32 %v4815, %v4745
        %v4848 = vadd.f32 %v4816, %v4750
        %v4849 = vadd.f32 %v4817, %v4753
        %v4850 = vadd.f32 %v4818, %v4758
        %v4851 = vadd.f32 %v4819, %v4761
        %v4852 = vadd.f32 %v4820, %v4766
        %v4853 = vadd.f32 %v4821, %v4769
        %v4854 = vadd.f32 %v4822, %v4774
        %v4855 = vadd.f32 %v4823, %v4777
        %v4856 = vadd.f32 %v4824, %v4782
        %v4857 = vadd.f32 %v4825, %v4785
        %v4858 = vadd.f32 %v4826, %v4790
        %v4859 = vadd.f32 %v4827, %v4793
        %4860 = vst [vmem:[#allocation4] sm:$0xff] %v4828
        %4861 = vst [vmem:[#allocation4 + $0x8] sm:$0xff] %v4829
        %4862 = vst [vmem:[#allocation4 + $0x10] sm:$0xff] %v4830
        %4863 = vst [vmem:[#allocation4 + $0x18] sm:$0xff] %v4831
        %4864 = vst [vmem:[#allocation4 + $0x20] sm:$0xff] %v4832
        %4865 = vst [vmem:[#allocation4 + $0x28] sm:$0xff] %v4833
        %4866 = vst [vmem:[#allocation4 + $0x30] sm:$0xff] %v4834
        %4867 = vst [vmem:[#allocation4 + $0x38] sm:$0xff] %v4835
        %4868 = vst [vmem:[#allocation4 + $0x40] sm:$0xff] %v4836
        %4869 = vst [vmem:[#allocation4 + $0x48] sm:$0xff] %v4837
        %4870 = vst [vmem:[#allocation4 + $0x50] sm:$0xff] %v4838
        %4871 = vst [vmem:[#allocation4 + $0x58] sm:$0xff] %v4839
        %4872 = vst [vmem:[#allocation4 + $0x60] sm:$0xff] %v4840
        %4873 = vst [vmem:[#allocation4 + $0x68] sm:$0xff] %v4841
        %4874 = vst [vmem:[#allocation4 + $0x70] sm:$0xff] %v4842
        %4875 = vst [vmem:[#allocation4 + $0x78] sm:$0xff] %v4843
        %4876 = vst [vmem:[#allocation4 + $0x80] sm:$0xff] %v4844
        %4877 = vst [vmem:[#allocation4 + $0x88] sm:$0xff] %v4845
        %4878 = vst [vmem:[#allocation4 + $0x90] sm:$0xff] %v4846
        %4879 = vst [vmem:[#allocation4 + $0x98] sm:$0xff] %v4847
        %4880 = vst [vmem:[#allocation4 + $0xa0] sm:$0xff] %v4848
        %4881 = vst [vmem:[#allocation4 + $0xa8] sm:$0xff] %v4849
        %4882 = vst [vmem:[#allocation4 + $0xb0] sm:$0xff] %v4850
        %4883 = vst [vmem:[#allocation4 + $0xb8] sm:$0xff] %v4851
        %4884 = vst [vmem:[#allocation4 + $0xc0] sm:$0xff] %v4852
        %4885 = vst [vmem:[#allocation4 + $0xc8] sm:$0xff] %v4853
        %4886 = vst [vmem:[#allocation4 + $0xd0] sm:$0xff] %v4854
        %4887 = vst [vmem:[#allocation4 + $0xd8] sm:$0xff] %v4855
        %4888 = vst [vmem:[#allocation4 + $0xe0] sm:$0xff] %v4856
        %4889 = vst [vmem:[#allocation4 + $0xe8] sm:$0xff] %v4857
        %4890 = vst [vmem:[#allocation4 + $0xf0] sm:$0xff] %v4858
        %4891 = vst [vmem:[#allocation4 + $0xf8] sm:$0xff] %v4859
        %v4892 = vld [vmem:[%s237] sm:$0xff]
        %v4893 = vld [vmem:[%s237 + $0x8] sm:$0xff]
        %v4894 = vld [vmem:[%s237 + $0x10] sm:$0xff]
        %v4895 = vld [vmem:[%s237 + $0x18] sm:$0xff]
        %v4896 = vld [vmem:[%s237 + $0x20] sm:$0xff]
        %v4897 = vld [vmem:[%s237 + $0x28] sm:$0xff]
        %v4898 = vld [vmem:[%s237 + $0x30] sm:$0xff]
        %v4899 = vld [vmem:[%s237 + $0x38] sm:$0xff]
        %v4900 = vld [vmem:[%s237 + $0x40] sm:$0xff]
        %v4901 = vld [vmem:[%s237 + $0x48] sm:$0xff]
        %v4902 = vld [vmem:[%s237 + $0x50] sm:$0xff]
        %v4903 = vld [vmem:[%s237 + $0x58] sm:$0xff]
        %v4904 = vld [vmem:[%s237 + $0x60] sm:$0xff]
        %v4905 = vld [vmem:[%s237 + $0x68] sm:$0xff]
        %v4906 = vld [vmem:[%s237 + $0x70] sm:$0xff]
        %v4907 = vld [vmem:[%s237 + $0x78] sm:$0xff]
        %v4908 = vld [vmem:[%s237 + $0x80] sm:$0xff]
        %v4909 = vld [vmem:[%s237 + $0x88] sm:$0xff]
        %v4910 = vld [vmem:[%s237 + $0x90] sm:$0xff]
        %v4911 = vld [vmem:[%s237 + $0x98] sm:$0xff]
        %v4912 = vld [vmem:[%s237 + $0xa0] sm:$0xff]
        %v4913 = vld [vmem:[%s237 + $0xa8] sm:$0xff]
        %v4914 = vld [vmem:[%s237 + $0xb0] sm:$0xff]
        %v4915 = vld [vmem:[%s237 + $0xb8] sm:$0xff]
        %v4916 = vld [vmem:[%s237 + $0xc0] sm:$0xff]
        %v4917 = vld [vmem:[%s237 + $0xc8] sm:$0xff]
        %v4918 = vld [vmem:[%s237 + $0xd0] sm:$0xff]
        %v4919 = vld [vmem:[%s237 + $0xd8] sm:$0xff]
        %v4920 = vld [vmem:[%s237 + $0xe0] sm:$0xff]
        %v4921 = vld [vmem:[%s237 + $0xe8] sm:$0xff]
        %v4922 = vld [vmem:[%s237 + $0xf0] sm:$0xff]
        %v4923 = vld [vmem:[%s237 + $0xf8] sm:$0xff]
        %v4924 = vld [vmem:[#allocation4] sm:$0xff]
        %v4925 = vld [vmem:[#allocation4 + $0x8] sm:$0xff]
        %v4926 = vld [vmem:[#allocation4 + $0x10] sm:$0xff]
        %v4927 = vld [vmem:[#allocation4 + $0x18] sm:$0xff]
        %v4928 = vld [vmem:[#allocation4 + $0x20] sm:$0xff]
        %v4929 = vld [vmem:[#allocation4 + $0x28] sm:$0xff]
        %v4930 = vld [vmem:[#allocation4 + $0x30] sm:$0xff]
        %v4931 = vld [vmem:[#allocation4 + $0x38] sm:$0xff]
        %v4932 = vld [vmem:[#allocation4 + $0x40] sm:$0xff]
        %v4933 = vld [vmem:[#allocation4 + $0x48] sm:$0xff]
        %v4934 = vld [vmem:[#allocation4 + $0x50] sm:$0xff]
        %v4935 = vld [vmem:[#allocation4 + $0x58] sm:$0xff]
        %v4936 = vld [vmem:[#allocation4 + $0x60] sm:$0xff]
        %v4937 = vld [vmem:[#allocation4 + $0x68] sm:$0xff]
        %v4938 = vld [vmem:[#allocation4 + $0x70] sm:$0xff]
        %v4939 = vld [vmem:[#allocation4 + $0x78] sm:$0xff]
        %v4940 = vld [vmem:[#allocation4 + $0x80] sm:$0xff]
        %v4941 = vld [vmem:[#allocation4 + $0x88] sm:$0xff]
        %v4942 = vld [vmem:[#allocation4 + $0x90] sm:$0xff]
        %v4943 = vld [vmem:[#allocation4 + $0x98] sm:$0xff]
        %v4944 = vld [vmem:[#allocation4 + $0xa0] sm:$0xff]
        %v4945 = vld [vmem:[#allocation4 + $0xa8] sm:$0xff]
        %v4946 = vld [vmem:[#allocation4 + $0xb0] sm:$0xff]
        %v4947 = vld [vmem:[#allocation4 + $0xb8] sm:$0xff]
        %v4948 = vld [vmem:[#allocation4 + $0xc0] sm:$0xff]
        %v4949 = vld [vmem:[#allocation4 + $0xc8] sm:$0xff]
        %v4950 = vld [vmem:[#allocation4 + $0xd0] sm:$0xff]
        %v4951 = vld [vmem:[#allocation4 + $0xd8] sm:$0xff]
        %v4952 = vld [vmem:[#allocation4 + $0xe0] sm:$0xff]
        %v4953 = vld [vmem:[#allocation4 + $0xe8] sm:$0xff]
        %v4954 = vld [vmem:[#allocation4 + $0xf0] sm:$0xff]
        %v4955 = vld [vmem:[#allocation4 + $0xf8] sm:$0xff]
        %v4956 = vld [vmem:[%s4] sm:$0x1]
        %v4958 = vlaneseq
        %v4959 = vshrl.u32 %v4958, 7
        %v4960 = vsub.s32 0, %v4959
        %v4961 = vrot.slane %v4956, %v4960
        %v4963 = vadd.f32 %v4924, %v4961
        %v4964 = vadd.f32 %v4925, %v4961
        %v4965 = vadd.f32 %v4926, %v4961
        %v4966 = vadd.f32 %v4927, %v4961
        %v4967 = vadd.f32 %v4928, %v4961
        %v4968 = vadd.f32 %v4929, %v4961
        %v4969 = vadd.f32 %v4930, %v4961
        %v4970 = vadd.f32 %v4931, %v4961
        %v4971 = vadd.f32 %v4932, %v4961
        %v4972 = vadd.f32 %v4933, %v4961
        %v4973 = vadd.f32 %v4934, %v4961
        %v4974 = vadd.f32 %v4935, %v4961
        %v4975 = vadd.f32 %v4936, %v4961
        %v4976 = vadd.f32 %v4937, %v4961
        %v4977 = vadd.f32 %v4938, %v4961
        %v4978 = vadd.f32 %v4939, %v4961
        %v4979 = vadd.f32 %v4940, %v4961
        %v4980 = vadd.f32 %v4941, %v4961
        %v4981 = vadd.f32 %v4942, %v4961
        %v4982 = vadd.f32 %v4943, %v4961
        %v4983 = vadd.f32 %v4944, %v4961
        %v4984 = vadd.f32 %v4945, %v4961
        %v4985 = vadd.f32 %v4946, %v4961
        %v4986 = vadd.f32 %v4947, %v4961
        %v4987 = vadd.f32 %v4948, %v4961
        %v4988 = vadd.f32 %v4949, %v4961
        %v4989 = vadd.f32 %v4950, %v4961
        %v4990 = vadd.f32 %v4951, %v4961
        %v4991 = vadd.f32 %v4952, %v4961
        %v4992 = vadd.f32 %v4953, %v4961
        %v4993 = vadd.f32 %v4954, %v4961
        %v4994 = vadd.f32 %v4955, %v4961
        %v4995 = vadd.f32 %v4963, %v4892
        %v4996 = vadd.f32 %v4964, %v4893
        %v4997 = vadd.f32 %v4965, %v4894
        %v4998 = vadd.f32 %v4966, %v4895
        %v4999 = vadd.f32 %v4967, %v4896
        %v5000 = vadd.f32 %v4968, %v4897
        %v5001 = vadd.f32 %v4969, %v4898
        %v5002 = vadd.f32 %v4970, %v4899
        %v5003 = vadd.f32 %v4971, %v4900
        %v5004 = vadd.f32 %v4972, %v4901
        %v5005 = vadd.f32 %v4973, %v4902
        %v5006 = vadd.f32 %v4974, %v4903
        %v5007 = vadd.f32 %v4975, %v4904
        %v5008 = vadd.f32 %v4976, %v4905
        %v5009 = vadd.f32 %v4977, %v4906
        %v5010 = vadd.f32 %v4978, %v4907
        %v5011 = vadd.f32 %v4979, %v4908
        %v5012 = vadd.f32 %v4980, %v4909
        %v5013 = vadd.f32 %v4981, %v4910
        %v5014 = vadd.f32 %v4982, %v4911
        %v5015 = vadd.f32 %v4983, %v4912
        %v5016 = vadd.f32 %v4984, %v4913
        %v5017 = vadd.f32 %v4985, %v4914
        %v5018 = vadd.f32 %v4986, %v4915
        %v5019 = vadd.f32 %v4987, %v4916
        %v5020 = vadd.f32 %v4988, %v4917
        %v5021 = vadd.f32 %v4989, %v4918
        %v5022 = vadd.f32 %v4990, %v4919
        %v5023 = vadd.f32 %v4991, %v4920
        %v5024 = vadd.f32 %v4992, %v4921
        %v5025 = vadd.f32 %v4993, %v4922
        %v5026 = vadd.f32 %v4994, %v4923
        %v5027 = vmax.f32 %v4995, 0.0
        %v5028 = vmax.f32 %v4996, 0.0
        %v5029 = vmax.f32 %v4997, 0.0
        %v5030 = vmax.f32 %v4998, 0.0
        %v5031 = vmax.f32 %v4999, 0.0
        %v5032 = vmax.f32 %v5000, 0.0
        %v5033 = vmax.f32 %v5001, 0.0
        %v5034 = vmax.f32 %v5002, 0.0
        %v5035 = vmax.f32 %v5003, 0.0
        %v5036 = vmax.f32 %v5004, 0.0
        %v5037 = vmax.f32 %v5005, 0.0
        %v5038 = vmax.f32 %v5006, 0.0
        %v5039 = vmax.f32 %v5007, 0.0
        %v5040 = vmax.f32 %v5008, 0.0
        %v5041 = vmax.f32 %v5009, 0.0
        %v5042 = vmax.f32 %v5010, 0.0
        %v5043 = vmax.f32 %v5011, 0.0
        %v5044 = vmax.f32 %v5012, 0.0
        %v5045 = vmax.f32 %v5013, 0.0
        %v5046 = vmax.f32 %v5014, 0.0
        %v5047 = vmax.f32 %v5015, 0.0
        %v5048 = vmax.f32 %v5016, 0.0
        %v5049 = vmax.f32 %v5017, 0.0
        %v5050 = vmax.f32 %v5018, 0.0
        %v5051 = vmax.f32 %v5019, 0.0
        %v5052 = vmax.f32 %v5020, 0.0
        %v5053 = vmax.f32 %v5021, 0.0
        %v5054 = vmax.f32 %v5022, 0.0
        %v5055 = vmax.f32 %v5023, 0.0
        %v5056 = vmax.f32 %v5024, 0.0
        %v5057 = vmax.f32 %v5025, 0.0
        %v5058 = vmax.f32 %v5026, 0.0
        %5059 = vst [vmem:[%s271] sm:$0xff] %v5027
        %5060 = vst [vmem:[%s271 + $0x8] sm:$0xff] %v5028
        %5061 = vst [vmem:[%s271 + $0x10] sm:$0xff] %v5029
        %5062 = vst [vmem:[%s271 + $0x18] sm:$0xff] %v5030
        %5063 = vst [vmem:[%s271 + $0x20] sm:$0xff] %v5031
        %5064 = vst [vmem:[%s271 + $0x28] sm:$0xff] %v5032
        %5065 = vst [vmem:[%s271 + $0x30] sm:$0xff] %v5033
        %5066 = vst [vmem:[%s271 + $0x38] sm:$0xff] %v5034
        %5067 = vst [vmem:[%s271 + $0x40] sm:$0xff] %v5035
        %5068 = vst [vmem:[%s271 + $0x48] sm:$0xff] %v5036
        %5069 = vst [vmem:[%s271 + $0x50] sm:$0xff] %v5037
        %5070 = vst [vmem:[%s271 + $0x58] sm:$0xff] %v5038
        %5071 = vst [vmem:[%s271 + $0x60] sm:$0xff] %v5039
        %5072 = vst [vmem:[%s271 + $0x68] sm:$0xff] %v5040
        %5073 = vst [vmem:[%s271 + $0x70] sm:$0xff] %v5041
        %5074 = vst [vmem:[%s271 + $0x78] sm:$0xff] %v5042
        %5075 = vst [vmem:[%s271 + $0x80] sm:$0xff] %v5043
        %5076 = vst [vmem:[%s271 + $0x88] sm:$0xff] %v5044
        %5077 = vst [vmem:[%s271 + $0x90] sm:$0xff] %v5045
        %5078 = vst [vmem:[%s271 + $0x98] sm:$0xff] %v5046
        %5079 = vst [vmem:[%s271 + $0xa0] sm:$0xff] %v5047
        %5080 = vst [vmem:[%s271 + $0xa8] sm:$0xff] %v5048
        %5081 = vst [vmem:[%s271 + $0xb0] sm:$0xff] %v5049
        %5082 = vst [vmem:[%s271 + $0xb8] sm:$0xff] %v5050
        %5083 = vst [vmem:[%s271 + $0xc0] sm:$0xff] %v5051
        %5084 = vst [vmem:[%s271 + $0xc8] sm:$0xff] %v5052
        %5085 = vst [vmem:[%s271 + $0xd0] sm:$0xff] %v5053
        %5086 = vst [vmem:[%s271 + $0xd8] sm:$0xff] %v5054
        %5087 = vst [vmem:[%s271 + $0xe0] sm:$0xff] %v5055
        %5088 = vst [vmem:[%s271 + $0xe8] sm:$0xff] %v5056
        %5089 = vst [vmem:[%s271 + $0xf0] sm:$0xff] %v5057
        %5090 = vst [vmem:[%s271 + $0xf8] sm:$0xff] %v5058
        %s5091 = sand.u32 %s141, 1
        %s5092 = scalar_lea.sflag [#allocation7], %s5091
        %s5093 = sand.u32 %s141, 1
        %s5094 = smul.addr %s5093, 256
        %s5095 = scalar_lea.vmem [#allocation11], %s5094
        // Predicated region
        $region53: #{tpu_custom_call.1} parent=39 // pred_check
          %p5096 = pneg %p151
        $region54: #{tpu_custom_call.1} parent=39 // pred_check_branch
          %5098 = sbr.rel (%p5096) target = $region56
        $region55: #{tpu_custom_call.1} parent=39 // pred_region
          %s5100 = ssub.s32 4096, 4096
          %5101 = vsyncadd %s5092, %s5100
          %s5102 = smul.addr %s23, 32
          %s5103 = smul.addr %s5102, 128
          %s5104 = scalar_lea.hbm %s5, %s5103
          %s5105 = sshll.u32 %s5095, 4
          %s5106 = int_to_ptr.vmem [resolvable:$true] %s5105
          %5111 = dma.vmem_to_hbm [thread:$0]  %s5106, 4096, %s5104, %s5092, 128, 128, 8
        $region56: #{tpu_custom_call.1} parent=39 // pred_fallthru
          _
      $region40: #{tpu_custom_call.1} parent=5 // pred_fallthru
        _
      %p5112 = scmp.le.s32.totalorder 2, %s18
      // Predicated region
      $region57: #{tpu_custom_call.1} parent=5 // pred_check
        %p5113 = pneg %p5112
      $region58: #{tpu_custom_call.1} parent=5 // pred_check_branch
        %5115 = sbr.rel (%p5113) target = $region60
      $region59: #{tpu_custom_call.1} parent=5 // pred_region
        %s5116 = ssub.s32 %s18, 2
        // Predicated region
        $region61: #{tpu_custom_call.1} parent=59 // pred_check
          %p5117 = pneg %p157
        $region62: #{tpu_custom_call.1} parent=59 // pred_check_branch
          %5119 = sbr.rel (%p5117) target = $region64
        $region63: #{tpu_custom_call.1} parent=59 // pred_region
          %s5120 = sand.u32 %s142, 1
          %s5121 = scalar_lea.sflag [#allocation7], %s5120
          %s5122 = sand.u32 %s142, 1
          %s5123 = smul.addr %s5122, 256
          %s5124 = scalar_lea.vmem [#allocation11], %s5123
          %5125 = dma.done %s5121, 4096
        $region64: #{tpu_custom_call.1} parent=59 // pred_fallthru
          _
      $region60: #{tpu_custom_call.1} parent=5 // pred_fallthru
        _
    $region6: #{tpu_custom_call.1} parent=1 // loop_footer
      %s22 = sadd.s32 1, %s18
    $region7: #{tpu_custom_call.1} parent=1 // loop_footer_branch
      %17 = sbr.rel target = $region3
    $region8: #{tpu_custom_call.1} parent=1 // loop_exit
      _
    %5126 = vsyncpa [#allocation6], 1
    %s5127 = scalar_lea.sflag [#allocation6], 1
    %5128 = vsyncpa %s5127, 1
    %5129 = vsyncpa [#allocation9], 1
    %5130 = vsyncpa [#allocation7], 1
    %s5131 = scalar_lea.sflag [#allocation7], 1
    %5132 = vsyncpa %s5131, 1

</llo_original>
